<compile_context>
chip_gen: v5e
topology: v5e:2x2
jax: 0.10.0
libtpu: 0.0.40
codegen_flags: <defaults>
</compile_context>

<pallas_src>
import jax
import jax.numpy as jnp
from jax.experimental import pallas as pl
from jax.experimental.pallas import tpu as pltpu

EPS = 1e-5
LANE = 128


# ----------------------------- Pallas kernels ------------------------------ #

def _conv1x1_stats_kernel(x_ref, w_ref, y_ref, s_ref, ss_ref):
    # x: (TM, Cin) f32, w: (Cin, Cout) bf16 -> y raw (TM, Cout) bf16 + partial
    # per-channel sum / sum-of-squares (f32) for this tile.
    y = jnp.dot(x_ref[...].astype(jnp.bfloat16), w_ref[...],
                preferred_element_type=jnp.float32)
    y_ref[...] = y.astype(y_ref.dtype)
    s_ref[...] = jnp.broadcast_to(jnp.sum(y, axis=0, keepdims=True), s_ref.shape)
    ss_ref[...] = jnp.broadcast_to(jnp.sum(y * y, axis=0, keepdims=True), ss_ref.shape)


def _bn_relu_conv1x1_stats_kernel(y_ref, sc_ref, sh_ref, w_ref,
                                  z_ref, s_ref, ss_ref):
    # Apply previous stage's BN (precomputed per-channel scale/shift, f32) +
    # ReLU, then the 1x1 conv matmul; emit partial stats for the next BN.
    a = jnp.maximum(y_ref[...].astype(jnp.float32) * sc_ref[...] + sh_ref[...],
                    0.0)
    z = jnp.dot(a.astype(jnp.bfloat16), w_ref[...],
                preferred_element_type=jnp.float32)
    z_ref[...] = z.astype(z_ref.dtype)
    s_ref[...] = jnp.broadcast_to(jnp.sum(z, axis=0, keepdims=True), s_ref.shape)
    ss_ref[...] = jnp.broadcast_to(jnp.sum(z * z, axis=0, keepdims=True), ss_ref.shape)


def _conv3x3_stats_kernel(hp_ref, sc_ref, sh_ref, w_ref, y_ref, s_ref, ss_ref):
    # One spatially padded image (1, H+2, W+2, C).  BN1 + ReLU on the fly,
    # mask the halo ring back to zero (conv padding applies to the *post*
    # BN-ReLU activation), then 9 shifted matmuls accumulated in f32.
    Hp, Wp, C = hp_ref.shape[1], hp_ref.shape[2], hp_ref.shape[3]
    H, W = Hp - 2, Wp - 2
    Cout = w_ref.shape[2]

    x = hp_ref[0].astype(jnp.float32)                          # (Hp, Wp, C)
    a = jnp.maximum(x * sc_ref[...].reshape(1, 1, C)
                    + sh_ref[...].reshape(1, 1, C), 0.0)
    rows = jax.lax.broadcasted_iota(jnp.int32, (Hp, Wp, C), 0)
    cols = jax.lax.broadcasted_iota(jnp.int32, (Hp, Wp, C), 1)
    inside = (rows >= 1) & (rows <= H) & (cols >= 1) & (cols <= W)
    a = jnp.where(inside, a, 0.0)                              # f32

    acc = jnp.zeros((H * W, Cout), jnp.float32)
    for kh in range(3):
        for kw in range(3):
            patch = a[kh:kh + H, kw:kw + W, :].reshape(H * W, C)
            acc = acc + jnp.dot(patch.astype(jnp.bfloat16),
                                w_ref[kh * 3 + kw],
                                preferred_element_type=jnp.float32)

    y_ref[...] = acc.reshape(1, H, W, Cout).astype(y_ref.dtype)
    s_ref[...] = jnp.broadcast_to(jnp.sum(acc, axis=0, keepdims=True), s_ref.shape)
    ss_ref[...] = jnp.broadcast_to(jnp.sum(acc * acc, axis=0, keepdims=True),
                                   ss_ref.shape)


def _bn3_add_relu_kernel(y_ref, sc_ref, sh_ref, r_ref, o_ref):
    # Final BN3 + identity residual + ReLU (pure VPU epilogue, lane-dense).
    o_ref[...] = jnp.maximum(
        y_ref[...].astype(jnp.float32) * sc_ref[...] + sh_ref[...] + r_ref[...],
        0.0)


# ------------------------------ call wrappers ------------------------------ #

def _cparams():
    return pltpu.CompilerParams(
        dimension_semantics=("parallel",),
        vmem_limit_bytes=48 * 1024 * 1024)     # headroom for v7x's 64 MiB VMEM


def _combine_partials(p, n_tiles):
    # (n_tiles*8, C) partial rows (row 0 of each block is valid) -> (C,)
    return p.reshape(n_tiles, 8, p.shape[-1])[:, 0, :].sum(axis=0)


def _bn_scale_shift(s, ss, m, gamma, beta):
    # Per-channel BN folding: scale = g*rsqrt(var+eps), shift = b - mu*scale.
    # (E[y^2]-E[y]^2 in f32; fine at these M — use Welford for very large M.)
    mu = s / m
    var = jnp.maximum(ss / m - mu * mu, 0.0)
    scale = gamma * jax.lax.rsqrt(var + EPS)
    shift = beta - mu * scale
    return scale.reshape(1, -1), shift.reshape(1, -1)


def _conv1x1_with_stats(x2d, w, tm):
    M, Cin = x2d.shape
    Cout = w.shape[1]
    nt = M // tm
    y, s, ss = pl.pallas_call(
        _conv1x1_stats_kernel,
        out_shape=(jax.ShapeDtypeStruct((M, Cout), jnp.bfloat16),
                   jax.ShapeDtypeStruct((nt * 8, Cout), jnp.float32),
                   jax.ShapeDtypeStruct((nt * 8, Cout), jnp.float32)),
        grid_spec=pltpu.PrefetchScalarGridSpec(
            num_scalar_prefetch=0, grid=(nt,),
            in_specs=[pl.BlockSpec((tm, Cin), lambda i: (i, 0)),
                      pl.BlockSpec((Cin, Cout), lambda i: (0, 0))],
            out_specs=(pl.BlockSpec((tm, Cout), lambda i: (i, 0)),
                       pl.BlockSpec((8, Cout), lambda i: (i, 0)),
                       pl.BlockSpec((8, Cout), lambda i: (i, 0)))),
        compiler_params=_cparams(),
    )(x2d, w)
    return y, _combine_partials(s, nt), _combine_partials(ss, nt)


def _bn_relu_conv1x1_with_stats(y2d, scale, shift, w, tm):
    M, Cin = y2d.shape
    Cout = w.shape[1]
    nt = M // tm
    z, s, ss = pl.pallas_call(
        _bn_relu_conv1x1_stats_kernel,
        out_shape=(jax.ShapeDtypeStruct((M, Cout), jnp.bfloat16),
                   jax.ShapeDtypeStruct((nt * 8, Cout), jnp.float32),
                   jax.ShapeDtypeStruct((nt * 8, Cout), jnp.float32)),
        grid_spec=pltpu.PrefetchScalarGridSpec(
            num_scalar_prefetch=0, grid=(nt,),
            in_specs=[pl.BlockSpec((tm, Cin), lambda i: (i, 0)),
                      pl.BlockSpec((1, Cin), lambda i: (0, 0)),
                      pl.BlockSpec((1, Cin), lambda i: (0, 0)),
                      pl.BlockSpec((Cin, Cout), lambda i: (0, 0))],
            out_specs=(pl.BlockSpec((tm, Cout), lambda i: (i, 0)),
                       pl.BlockSpec((8, Cout), lambda i: (i, 0)),
                       pl.BlockSpec((8, Cout), lambda i: (i, 0)))),
        compiler_params=_cparams(),
    )(y2d, scale, shift, w)
    return z, _combine_partials(s, nt), _combine_partials(ss, nt)


def _conv3x3_with_stats(y1_nhwc, scale, shift, w_taps):
    N, H, W, C = y1_nhwc.shape
    Cout = w_taps.shape[2]
    hp = jnp.pad(y1_nhwc, ((0, 0), (1, 1), (1, 1), (0, 0)))   # halo only, no im2col
    y, s, ss = pl.pallas_call(
        _conv3x3_stats_kernel,
        out_shape=(jax.ShapeDtypeStruct((N, H, W, Cout), jnp.bfloat16),
                   jax.ShapeDtypeStruct((N * 8, Cout), jnp.float32),
                   jax.ShapeDtypeStruct((N * 8, Cout), jnp.float32)),
        grid_spec=pltpu.PrefetchScalarGridSpec(
            num_scalar_prefetch=0, grid=(N,),
            in_specs=[pl.BlockSpec((1, H + 2, W + 2, C), lambda n: (n, 0, 0, 0)),
                      pl.BlockSpec((1, C), lambda n: (0, 0)),
                      pl.BlockSpec((1, C), lambda n: (0, 0)),
                      pl.BlockSpec((9, C, Cout), lambda n: (0, 0, 0))],
            out_specs=(pl.BlockSpec((1, H, W, Cout), lambda n: (n, 0, 0, 0)),
                       pl.BlockSpec((8, Cout), lambda n: (n, 0)),
                       pl.BlockSpec((8, Cout), lambda n: (n, 0)))),
        compiler_params=_cparams(),
    )(hp, scale, shift, w_taps)
    return y, _combine_partials(s, N), _combine_partials(ss, N)


def _bn_add_relu(y2d, scale, shift, res2d, tm):
    M, C = y2d.shape
    nt = M // tm
    return pl.pallas_call(
        _bn3_add_relu_kernel,
        out_shape=jax.ShapeDtypeStruct((M, C), jnp.float32),
        grid_spec=pltpu.PrefetchScalarGridSpec(
            num_scalar_prefetch=0, grid=(nt,),
            in_specs=[pl.BlockSpec((tm, C), lambda i: (i, 0)),
                      pl.BlockSpec((1, C), lambda i: (0, 0)),
                      pl.BlockSpec((1, C), lambda i: (0, 0)),
                      pl.BlockSpec((tm, C), lambda i: (i, 0))],
            out_specs=pl.BlockSpec((tm, C), lambda i: (i, 0))),
        compiler_params=_cparams(),
    )(y2d, scale, shift, res2d)


# ------------------------------- JAX glue ---------------------------------- #

def _round_up(x, m):
    return ((x + m - 1) // m) * m


def _pick_tm(M, cap):
    # Largest row-tile <= cap that divides M and is a multiple of 8.
    for t in range(min(cap, M), 7, -1):
        if M % t == 0 and t % 8 == 0:
            return t
    return M


def bottleneck_forward(x_nchw, params, tm_cap=1024):
    """Pallas forward of Bottleneck (stride=1, downsample=None), NCHW in/out."""
    N, Cin, H, W = x_nchw.shape
    P = params["w1"].shape[0]                                   # planes
    assert Cin == 4 * P, "identity residual requires inplanes == planes * 4"
    # TODO(synk): downsample / stride>1 residual path not implemented.

    Cin_p = _round_up(Cin, LANE)
    Cm_p = _round_up(P, LANE)
    Co_p = _round_up(4 * P, LANE)
    assert Cin_p == Co_p                                        # identity residual
    M = N * H * W
    tm = _pick_tm(M, tm_cap)

    # activations: NCHW -> NHWC -> (M, C), channel-padded to a 128 multiple
    x_nhwc = jnp.transpose(x_nchw, (0, 2, 3, 1)).astype(jnp.float32)
    x2d = jnp.pad(x_nhwc.reshape(M, Cin), ((0, 0), (0, Cin_p - Cin)))

    # one-time weight / BN-parameter prep (outside the hot kernels)
    w1 = jnp.zeros((Cin_p, Cm_p), jnp.float32).at[:Cin, :P].set(
        params["w1"][:, :, 0, 0].T).astype(jnp.bfloat16)
    w2 = jnp.zeros((9, Cm_p, Cm_p), jnp.float32)
    for kh in range(3):
        for kw in range(3):
            w2 = w2.at[kh * 3 + kw, :P, :P].set(params["w2"][:, :, kh, kw].T)
    w2 = w2.astype(jnp.bfloat16)
    w3 = jnp.zeros((Cm_p, Co_p), jnp.float32).at[:P, :4 * P].set(
        params["w3"][:, :, 0, 0].T).astype(jnp.bfloat16)

    def padc(v, c):
        v = v.astype(jnp.float32)
        return jnp.pad(v, (0, c - v.shape[0]))

    g1, b1 = padc(params["g1"], Cm_p), padc(params["b1"], Cm_p)
    g2, b2 = padc(params["g2"], Cm_p), padc(params["b2"], Cm_p)
    g3, b3 = padc(params["g3"], Co_p), padc(params["b3"], Co_p)

    # stage 1: conv1 (1x1) + BN1 batch-stat accumulation
    y1, s1, ss1 = _conv1x1_with_stats(x2d, w1, tm)
    sc1, sh1 = _bn_scale_shift(s1, ss1, M, g1, b1)

    # stage 2: [BN1+ReLU fused] conv2 (3x3) + BN2 stats, per-image grid
    y2, s2, ss2 = _conv3x3_with_stats(y1.reshape(N, H, W, Cm_p), sc1, sh1, w2)
    sc2, sh2 = _bn_scale_shift(s2, ss2, M, g2, b2)

    # stage 3: [BN2+ReLU fused] conv3 (1x1) + BN3 stats
    y3, s3, ss3 = _bn_relu_conv1x1_with_stats(y2.reshape(M, Cm_p), sc2, sh2, w3, tm)
    sc3, sh3 = _bn_scale_shift(s3, ss3, M, g3, b3)

    # stage 4: BN3 + identity residual + ReLU
    out2d = _bn_add_relu(y3, sc3, sh3, x2d, tm)

    out = out2d[:, :4 * P].reshape(N, H, W, 4 * P)
    return jnp.transpose(out, (0, 3, 1, 2))                     # back to NCHW


# --------------------------- pure-JAX reference ----------------------------- #

def ref_forward(x, params):
    def bn(y, g, b):
        mu = jnp.mean(y, axis=(0, 2, 3), keepdims=True)
        var = jnp.mean((y - mu) ** 2, axis=(0, 2, 3), keepdims=True)
        return (g.reshape(1, -1, 1, 1) * (y - mu) * jax.lax.rsqrt(var + EPS)
                + b.reshape(1, -1, 1, 1))

    def conv(x, w, pad):
        return jax.lax.conv_general_dilated(
            x, w, (1, 1), pad, dimension_numbers=("NCHW", "OIHW", "NCHW"),
            precision=jax.lax.Precision.HIGHEST)

    out = jax.nn.relu(bn(conv(x, params["w1"], "VALID"), params["g1"], params["b1"]))
    out = jax.nn.relu(bn(conv(out, params["w2"], [(1, 1), (1, 1)]),
                         params["g2"], params["b2"]))
    out = bn(conv(out, params["w3"], "VALID"), params["g3"], params["b3"])
    return jax.nn.relu(out + x)


# ---------------------------------- main ------------------------------------ #

if __name__ == "__main__":
    # Bottleneck(inplanes=16, planes=4, stride=1): small, deterministic shapes.
    N, planes = 2, 4
    inplanes = planes * 4          # expansion = 4, identity residual
    H = W = 16                     # M = 512 -> 4 row-tiles with tm_cap=128

    key = jax.random.PRNGKey(0)
    kx, k1, k2, k3, kg1, kb1, kg2, kb2, kg3, kb3 = jax.random.split(key, 10)

    x = jax.random.normal(kx, (N, inplanes, H, W), dtype=jnp.float32)

    params = {
        # conv weights: OIHW, bias=False
        "w1": jax.random.normal(k1, (planes, inplanes, 1, 1), jnp.float32)
              / jnp.sqrt(inplanes),
        "w2": jax.random.normal(k2, (planes, planes, 3, 3), jnp.float32)
              / jnp.sqrt(9.0 * planes),
        "w3": jax.random.normal(k3, (planes * 4, planes, 1, 1), jnp.float32)
              / jnp.sqrt(planes),
        # BN affine params
        "g1": 1.0 + 0.1 * jax.random.normal(kg1, (planes,), jnp.float32),
        "b1": 0.1 * jax.random.normal(kb1, (planes,), jnp.float32),
        "g2": 1.0 + 0.1 * jax.random.normal(kg2, (planes,), jnp.float32),
        "b2": 0.1 * jax.random.normal(kb2, (planes,), jnp.float32),
        "g3": 1.0 + 0.1 * jax.random.normal(kg3, (planes * 4,), jnp.float32),
        "b3": 0.1 * jax.random.normal(kb3, (planes * 4,), jnp.float32),
    }

    fwd = jax.jit(lambda xx, pp: bottleneck_forward(xx, pp, tm_cap=128))
    out = jax.block_until_ready(fwd(x, params))
    ref = jax.block_until_ready(ref_forward(x, params))

    max_err = float(jnp.max(jnp.abs(out - ref)))
    mean_err = float(jnp.mean(jnp.abs(out - ref)))
    assert out.shape == (N, inplanes, H, W)
    # bf16 MXU inputs + bf16 intermediate activation storage vs an f32
    # HIGHEST-precision reference: expected max-abs deviation is O(1e-2),
    # mean-abs deviation O(1e-3), at these O(1) activation magnitudes.
    assert max_err < 1.5e-1, f"max-abs mismatch vs reference: {max_err}"
    assert mean_err < 1.5e-2, f"mean-abs mismatch vs reference: {mean_err}"

    print("KERNEL_OK")
</pallas_src>

<mosaic_0001>
module attributes {stable_mosaic.version = 11 : i64} {
  func.func @_conv1x1_stats_kernel(%arg0: i32, %arg1: memref<128x128xf32, #tpu.memory_space<vmem>>, %arg2: memref<128x128xbf16, #tpu.memory_space<vmem>>, %arg3: memref<128x128xbf16, #tpu.memory_space<vmem>>, %arg4: memref<8x128xf32, #tpu.memory_space<vmem>>, %arg5: memref<8x128xf32, #tpu.memory_space<vmem>>) attributes {dimension_semantics = [#tpu.dimension_semantics<parallel>], iteration_bounds = array<i64: 4>, scalar_prefetch = 0 : i64, scratch_operands = 0 : i64, tpu.core_type = #tpu.core_type<tc>, window_params = [{transform_indices = @transform_0, window_bounds = array<i64: 128, 128>}, {pipeline_mode = #tpu.pipeline_mode<synchronous>, transform_indices = @transform_1, window_bounds = array<i64: 128, 128>}, {transform_indices = @transform_2, window_bounds = array<i64: 128, 128>}, {transform_indices = @transform_3, window_bounds = array<i64: 8, 128>}, {transform_indices = @transform_4, window_bounds = array<i64: 8, 128>}]} {
    %c0 = arith.constant 0 : index
    %c0_0 = arith.constant 0 : index
    %0 = vector.load %arg1[%c0, %c0_0] : memref<128x128xf32, #tpu.memory_space<vmem>>, vector<128x128xf32>
    %1 = arith.truncf %0 : vector<128x128xf32> to vector<128x128xbf16>
    %c0_1 = arith.constant 0 : index
    %c0_2 = arith.constant 0 : index
    %2 = vector.load %arg2[%c0_1, %c0_2] : memref<128x128xbf16, #tpu.memory_space<vmem>>, vector<128x128xbf16>
    %cst = arith.constant dense<0.000000e+00> : vector<128x128xf32>
    %3 = tpu.matmul %1, %2, %cst {dimension_numbers = #tpu.dot_dimension_numbers<[1], [0], [0], [1], [0, 0, 1, 1], [], []>} : vector<128x128xbf16>, vector<128x128xbf16>, vector<128x128xf32> -> vector<128x128xf32>
    %4 = arith.truncf %3 : vector<128x128xf32> to vector<128x128xbf16>
    %c0_3 = arith.constant 0 : index
    %c0_4 = arith.constant 0 : index
    %5 = vector.load %arg3[%c0_3, %c0_4] : memref<128x128xbf16, #tpu.memory_space<vmem>>, vector<128x128xbf16>
    tpu.vector_store %arg3[%c0_3, %c0_4], %4 {strides = array<i32>} : memref<128x128xbf16, #tpu.memory_space<vmem>>, vector<128x128xbf16>,
    %cst_5 = arith.constant dense<0.000000e+00> : vector<128xf32>
    %6 = vector.multi_reduction <add>, %3, %cst_5 [0] : vector<128x128xf32> to vector<128xf32>
    %7 = vector.shape_cast %6 : vector<128xf32> to vector<1x128xf32>
    %8 = vector.shape_cast %7 : vector<1x128xf32> to vector<1x128xf32>
    %9 = vector.broadcast %8 : vector<1x128xf32> to vector<8x128xf32>
    %c0_6 = arith.constant 0 : index
    %c0_7 = arith.constant 0 : index
    %10 = vector.load %arg4[%c0_6, %c0_7] : memref<8x128xf32, #tpu.memory_space<vmem>>, vector<8x128xf32>
    tpu.vector_store %arg4[%c0_6, %c0_7], %9 {strides = array<i32>} : memref<8x128xf32, #tpu.memory_space<vmem>>, vector<8x128xf32>,
    %11 = arith.mulf %3, %3 : vector<128x128xf32>
    %cst_8 = arith.constant dense<0.000000e+00> : vector<128xf32>
    %12 = vector.multi_reduction <add>, %11, %cst_8 [0] : vector<128x128xf32> to vector<128xf32>
    %13 = vector.shape_cast %12 : vector<128xf32> to vector<1x128xf32>
    %14 = vector.shape_cast %13 : vector<1x128xf32> to vector<1x128xf32>
    %15 = vector.broadcast %14 : vector<1x128xf32> to vector<8x128xf32>
    %c0_9 = arith.constant 0 : index
    %c0_10 = arith.constant 0 : index
    %16 = vector.load %arg5[%c0_9, %c0_10] : memref<8x128xf32, #tpu.memory_space<vmem>>, vector<8x128xf32>
    tpu.vector_store %arg5[%c0_9, %c0_10], %15 {strides = array<i32>} : memref<8x128xf32, #tpu.memory_space<vmem>>, vector<8x128xf32>,
    return
  }
  func.func @transform_0(%arg0: i32) -> (i32, i32) {
    %c0_i32 = arith.constant 0 : i32
    %c0_i32_0 = arith.constant 0 : i32
    return %arg0, %c0_i32 : i32, i32
  }
  func.func @transform_1(%arg0: i32) -> (i32, i32) {
    %c0_i32 = arith.constant 0 : i32
    %c0_i32_0 = arith.constant 0 : i32
    %c0_i32_1 = arith.constant 0 : i32
    return %c0_i32, %c0_i32_0 : i32, i32
  }
  func.func @transform_2(%arg0: i32) -> (i32, i32) {
    %c0_i32 = arith.constant 0 : i32
    %c0_i32_0 = arith.constant 0 : i32
    return %arg0, %c0_i32 : i32, i32
  }
  func.func @transform_3(%arg0: i32) -> (i32, i32) {
    %c0_i32 = arith.constant 0 : i32
    %c0_i32_0 = arith.constant 0 : i32
    return %arg0, %c0_i32 : i32, i32
  }
  func.func @transform_4(%arg0: i32) -> (i32, i32) {
    %c0_i32 = arith.constant 0 : i32
    %c0_i32_0 = arith.constant 0 : i32
    return %arg0, %c0_i32 : i32, i32
  }
}

module attributes {stable_mosaic.version = 11 : i64} {
  func.func @_conv3x3_stats_kernel(%arg0: i32, %arg1: memref<1x18x18x128xbf16, #tpu.memory_space<vmem>>, %arg2: memref<1x128xf32, #tpu.memory_space<vmem>>, %arg3: memref<1x128xf32, #tpu.memory_space<vmem>>, %arg4: memref<9x128x128xbf16, #tpu.memory_space<vmem>>, %arg5: memref<1x16x16x128xbf16, #tpu.memory_space<vmem>>, %arg6: memref<8x128xf32, #tpu.memory_space<vmem>>, %arg7: memref<8x128xf32, #tpu.memory_space<vmem>>) attributes {dimension_semantics = [#tpu.dimension_semantics<parallel>], iteration_bounds = array<i64: 2>, scalar_prefetch = 0 : i64, scratch_operands = 0 : i64, tpu.core_type = #tpu.core_type<tc>, window_params = [{transform_indices = @transform_0, window_bounds = array<i64: 1, 18, 18, 128>}, {pipeline_mode = #tpu.pipeline_mode<synchronous>, transform_indices = @transform_1, window_bounds = array<i64: 1, 128>}, {pipeline_mode = #tpu.pipeline_mode<synchronous>, transform_indices = @transform_2, window_bounds = array<i64: 1, 128>}, {pipeline_mode = #tpu.pipeline_mode<synchronous>, transform_indices = @transform_3, window_bounds = array<i64: 9, 128, 128>}, {transform_indices = @transform_4, window_bounds = array<i64: 1, 16, 16, 128>}, {transform_indices = @transform_5, window_bounds = array<i64: 8, 128>}, {transform_indices = @transform_6, window_bounds = array<i64: 8, 128>}]} {
    %c0 = arith.constant 0 : index
    %c0_0 = arith.constant 0 : index
    %c0_1 = arith.constant 0 : index
    %c0_2 = arith.constant 0 : index
    %0 = vector.load %arg1[%c0, %c0_0, %c0_1, %c0_2] : memref<1x18x18x128xbf16, #tpu.memory_space<vmem>>, vector<1x18x18x128xbf16>
    %1 = vector.shape_cast %0 : vector<1x18x18x128xbf16> to vector<18x18x128xbf16>
    %2 = arith.extf %1 : vector<18x18x128xbf16> to vector<18x18x128xf32>
    %c0_3 = arith.constant 0 : index
    %c0_4 = arith.constant 0 : index
    %3 = vector.load %arg2[%c0_3, %c0_4] : memref<1x128xf32, #tpu.memory_space<vmem>>, vector<1x128xf32>
    %4 = vector.shape_cast %3 : vector<1x128xf32> to vector<1x1x128xf32>
    %5 = vector.broadcast %4 : vector<1x1x128xf32> to vector<18x18x128xf32>
    %6 = arith.mulf %2, %5 : vector<18x18x128xf32>
    %c0_5 = arith.constant 0 : index
    %c0_6 = arith.constant 0 : index
    %7 = vector.load %arg3[%c0_5, %c0_6] : memref<1x128xf32, #tpu.memory_space<vmem>>, vector<1x128xf32>
    %8 = vector.shape_cast %7 : vector<1x128xf32> to vector<1x1x128xf32>
    %9 = vector.broadcast %8 : vector<1x1x128xf32> to vector<18x18x128xf32>
    %10 = arith.addf %6, %9 : vector<18x18x128xf32>
    %cst = arith.constant 0.000000e+00 : f32
    %11 = vector.broadcast %cst : f32 to vector<18x18x128xf32>
    %12 = arith.maximumf %10, %11 : vector<18x18x128xf32>
    %13 = tpu.iota {dimensions = array<i32: 0>} : vector<18x18x128xi32>
    %14 = tpu.iota {dimensions = array<i32: 1>} : vector<18x18x128xi32>
    %c1_i32 = arith.constant 1 : i32
    %15 = vector.broadcast %c1_i32 : i32 to vector<18x18x128xi32>
    %16 = arith.cmpi sge, %13, %15 : vector<18x18x128xi32>
    %c16_i32 = arith.constant 16 : i32
    %17 = vector.broadcast %c16_i32 : i32 to vector<18x18x128xi32>
    %18 = arith.cmpi sle, %13, %17 : vector<18x18x128xi32>
    %19 = arith.andi %16, %18 : vector<18x18x128xi1>
    %c1_i32_7 = arith.constant 1 : i32
    %20 = vector.broadcast %c1_i32_7 : i32 to vector<18x18x128xi32>
    %21 = arith.cmpi sge, %14, %20 : vector<18x18x128xi32>
    %22 = arith.andi %19, %21 : vector<18x18x128xi1>
    %c16_i32_8 = arith.constant 16 : i32
    %23 = vector.broadcast %c16_i32_8 : i32 to vector<18x18x128xi32>
    %24 = arith.cmpi sle, %14, %23 : vector<18x18x128xi32>
    %25 = arith.andi %22, %24 : vector<18x18x128xi1>
    %cst_9 = arith.constant 0.000000e+00 : f32
    %26 = vector.broadcast %cst_9 : f32 to vector<18x18x128xf32>
    %27 = arith.select %25, %12, %26 : vector<18x18x128xi1>, vector<18x18x128xf32>
    %cst_10 = arith.constant 0.000000e+00 : f32
    %28 = vector.broadcast %cst_10 : f32 to vector<256x128xf32>
    %29 = vector.extract_strided_slice %27 {offsets = [0, 0, 0], sizes = [16, 16, 128], strides = [1, 1, 1]} : vector<18x18x128xf32> to vector<16x16x128xf32>
    %30 = vector.shape_cast %29 : vector<16x16x128xf32> to vector<256x128xf32>
    %31 = arith.truncf %30 : vector<256x128xf32> to vector<256x128xbf16>
    %c0_11 = arith.constant 0 : index
    %c0_12 = arith.constant 0 : index
    %c0_13 = arith.constant 0 : index
    %32 = vector.load %arg4[%c0_11, %c0_12, %c0_13] : memref<9x128x128xbf16, #tpu.memory_space<vmem>>, vector<1x128x128xbf16>
    %33 = vector.shape_cast %32 : vector<1x128x128xbf16> to vector<128x128xbf16>
    %cst_14 = arith.constant dense<0.000000e+00> : vector<256x128xf32>
    %34 = tpu.matmul %31, %33, %cst_14 {dimension_numbers = #tpu.dot_dimension_numbers<[1], [0], [0], [1], [0, 0, 1, 1], [], []>} : vector<256x128xbf16>, vector<128x128xbf16>, vector<256x128xf32> -> vector<256x128xf32>
    %35 = arith.addf %28, %34 : vector<256x128xf32>
    %36 = vector.extract_strided_slice %27 {offsets = [0, 1, 0], sizes = [16, 16, 128], strides = [1, 1, 1]} : vector<18x18x128xf32> to vector<16x16x128xf32>
    %37 = vector.shape_cast %36 : vector<16x16x128xf32> to vector<256x128xf32>
    %38 = arith.truncf %37 : vector<256x128xf32> to vector<256x128xbf16>
    %c1 = arith.constant 1 : index
    %c0_15 = arith.constant 0 : index
    %c0_16 = arith.constant 0 : index
    %39 = vector.load %arg4[%c1, %c0_15, %c0_16] : memref<9x128x128xbf16, #tpu.memory_space<vmem>>, vector<1x128x128xbf16>
    %40 = vector.shape_cast %39 : vector<1x128x128xbf16> to vector<128x128xbf16>
    %cst_17 = arith.constant dense<0.000000e+00> : vector<256x128xf32>
    %41 = tpu.matmul %38, %40, %cst_17 {dimension_numbers = #tpu.dot_dimension_numbers<[1], [0], [0], [1], [0, 0, 1, 1], [], []>} : vector<256x128xbf16>, vector<128x128xbf16>, vector<256x128xf32> -> vector<256x128xf32>
    %42 = arith.addf %35, %41 : vector<256x128xf32>
    %43 = vector.extract_strided_slice %27 {offsets = [0, 2, 0], sizes = [16, 16, 128], strides = [1, 1, 1]} : vector<18x18x128xf32> to vector<16x16x128xf32>
    %44 = vector.shape_cast %43 : vector<16x16x128xf32> to vector<256x128xf32>
    %45 = arith.truncf %44 : vector<256x128xf32> to vector<256x128xbf16>
    %c2 = arith.constant 2 : index
    %c0_18 = arith.constant 0 : index
    %c0_19 = arith.constant 0 : index
    %46 = vector.load %arg4[%c2, %c0_18, %c0_19] : memref<9x128x128xbf16, #tpu.memory_space<vmem>>, vector<1x128x128xbf16>
    %47 = vector.shape_cast %46 : vector<1x128x128xbf16> to vector<128x128xbf16>
    %cst_20 = arith.constant dense<0.000000e+00> : vector<256x128xf32>
    %48 = tpu.matmul %45, %47, %cst_20 {dimension_numbers = #tpu.dot_dimension_numbers<[1], [0], [0], [1], [0, 0, 1, 1], [], []>} : vector<256x128xbf16>, vector<128x128xbf16>, vector<256x128xf32> -> vector<256x128xf32>
    %49 = arith.addf %42, %48 : vector<256x128xf32>
    %50 = vector.extract_strided_slice %27 {offsets = [1, 0, 0], sizes = [16, 16, 128], strides = [1, 1, 1]} : vector<18x18x128xf32> to vector<16x16x128xf32>
    %51 = vector.shape_cast %50 : vector<16x16x128xf32> to vector<256x128xf32>
    %52 = arith.truncf %51 : vector<256x128xf32> to vector<256x128xbf16>
    %c3 = arith.constant 3 : index
    %c0_21 = arith.constant 0 : index
    %c0_22 = arith.constant 0 : index
    %53 = vector.load %arg4[%c3, %c0_21, %c0_22] : memref<9x128x128xbf16, #tpu.memory_space<vmem>>, vector<1x128x128xbf16>
    %54 = vector.shape_cast %53 : vector<1x128x128xbf16> to vector<128x128xbf16>
    %cst_23 = arith.constant dense<0.000000e+00> : vector<256x128xf32>
    %55 = tpu.matmul %52, %54, %cst_23 {dimension_numbers = #tpu.dot_dimension_numbers<[1], [0], [0], [1], [0, 0, 1, 1], [], []>} : vector<256x128xbf16>, vector<128x128xbf16>, vector<256x128xf32> -> vector<256x128xf32>
    %56 = arith.addf %49, %55 : vector<256x128xf32>
    %57 = vector.extract_strided_slice %27 {offsets = [1, 1, 0], sizes = [16, 16, 128], strides = [1, 1, 1]} : vector<18x18x128xf32> to vector<16x16x128xf32>
    %58 = vector.shape_cast %57 : vector<16x16x128xf32> to vector<256x128xf32>
    %59 = arith.truncf %58 : vector<256x128xf32> to vector<256x128xbf16>
    %c4 = arith.constant 4 : index
    %c0_24 = arith.constant 0 : index
    %c0_25 = arith.constant 0 : index
    %60 = vector.load %arg4[%c4, %c0_24, %c0_25] : memref<9x128x128xbf16, #tpu.memory_space<vmem>>, vector<1x128x128xbf16>
    %61 = vector.shape_cast %60 : vector<1x128x128xbf16> to vector<128x128xbf16>
    %cst_26 = arith.constant dense<0.000000e+00> : vector<256x128xf32>
    %62 = tpu.matmul %59, %61, %cst_26 {dimension_numbers = #tpu.dot_dimension_numbers<[1], [0], [0], [1], [0, 0, 1, 1], [], []>} : vector<256x128xbf16>, vector<128x128xbf16>, vector<256x128xf32> -> vector<256x128xf32>
    %63 = arith.addf %56, %62 : vector<256x128xf32>
    %64 = vector.extract_strided_slice %27 {offsets = [1, 2, 0], sizes = [16, 16, 128], strides = [1, 1, 1]} : vector<18x18x128xf32> to vector<16x16x128xf32>
    %65 = vector.shape_cast %64 : vector<16x16x128xf32> to vector<256x128xf32>
    %66 = arith.truncf %65 : vector<256x128xf32> to vector<256x128xbf16>
    %c5 = arith.constant 5 : index
    %c0_27 = arith.constant 0 : index
    %c0_28 = arith.constant 0 : index
    %67 = vector.load %arg4[%c5, %c0_27, %c0_28] : memref<9x128x128xbf16, #tpu.memory_space<vmem>>, vector<1x128x128xbf16>
    %68 = vector.shape_cast %67 : vector<1x128x128xbf16> to vector<128x128xbf16>
    %cst_29 = arith.constant dense<0.000000e+00> : vector<256x128xf32>
    %69 = tpu.matmul %66, %68, %cst_29 {dimension_numbers = #tpu.dot_dimension_numbers<[1], [0], [0], [1], [0, 0, 1, 1], [], []>} : vector<256x128xbf16>, vector<128x128xbf16>, vector<256x128xf32> -> vector<256x128xf32>
    %70 = arith.addf %63, %69 : vector<256x128xf32>
    %71 = vector.extract_strided_slice %27 {offsets = [2, 0, 0], sizes = [16, 16, 128], strides = [1, 1, 1]} : vector<18x18x128xf32> to vector<16x16x128xf32>
    %72 = vector.shape_cast %71 : vector<16x16x128xf32> to vector<256x128xf32>
    %73 = arith.truncf %72 : vector<256x128xf32> to vector<256x128xbf16>
    %c6 = arith.constant 6 : index
    %c0_30 = arith.constant 0 : index
    %c0_31 = arith.constant 0 : index
    %74 = vector.load %arg4[%c6, %c0_30, %c0_31] : memref<9x128x128xbf16, #tpu.memory_space<vmem>>, vector<1x128x128xbf16>
    %75 = vector.shape_cast %74 : vector<1x128x128xbf16> to vector<128x128xbf16>
    %cst_32 = arith.constant dense<0.000000e+00> : vector<256x128xf32>
    %76 = tpu.matmul %73, %75, %cst_32 {dimension_numbers = #tpu.dot_dimension_numbers<[1], [0], [0], [1], [0, 0, 1, 1], [], []>} : vector<256x128xbf16>, vector<128x128xbf16>, vector<256x128xf32> -> vector<256x128xf32>
    %77 = arith.addf %70, %76 : vector<256x128xf32>
    %78 = vector.extract_strided_slice %27 {offsets = [2, 1, 0], sizes = [16, 16, 128], strides = [1, 1, 1]} : vector<18x18x128xf32> to vector<16x16x128xf32>
    %79 = vector.shape_cast %78 : vector<16x16x128xf32> to vector<256x128xf32>
    %80 = arith.truncf %79 : vector<256x128xf32> to vector<256x128xbf16>
    %c7 = arith.constant 7 : index
    %c0_33 = arith.constant 0 : index
    %c0_34 = arith.constant 0 : index
    %81 = vector.load %arg4[%c7, %c0_33, %c0_34] : memref<9x128x128xbf16, #tpu.memory_space<vmem>>, vector<1x128x128xbf16>
    %82 = vector.shape_cast %81 : vector<1x128x128xbf16> to vector<128x128xbf16>
    %cst_35 = arith.constant dense<0.000000e+00> : vector<256x128xf32>
    %83 = tpu.matmul %80, %82, %cst_35 {dimension_numbers = #tpu.dot_dimension_numbers<[1], [0], [0], [1], [0, 0, 1, 1], [], []>} : vector<256x128xbf16>, vector<128x128xbf16>, vector<256x128xf32> -> vector<256x128xf32>
    %84 = arith.addf %77, %83 : vector<256x128xf32>
    %85 = vector.extract_strided_slice %27 {offsets = [2, 2, 0], sizes = [16, 16, 128], strides = [1, 1, 1]} : vector<18x18x128xf32> to vector<16x16x128xf32>
    %86 = vector.shape_cast %85 : vector<16x16x128xf32> to vector<256x128xf32>
    %87 = arith.truncf %86 : vector<256x128xf32> to vector<256x128xbf16>
    %c8 = arith.constant 8 : index
    %c0_36 = arith.constant 0 : index
    %c0_37 = arith.constant 0 : index
    %88 = vector.load %arg4[%c8, %c0_36, %c0_37] : memref<9x128x128xbf16, #tpu.memory_space<vmem>>, vector<1x128x128xbf16>
    %89 = vector.shape_cast %88 : vector<1x128x128xbf16> to vector<128x128xbf16>
    %cst_38 = arith.constant dense<0.000000e+00> : vector<256x128xf32>
    %90 = tpu.matmul %87, %89, %cst_38 {dimension_numbers = #tpu.dot_dimension_numbers<[1], [0], [0], [1], [0, 0, 1, 1], [], []>} : vector<256x128xbf16>, vector<128x128xbf16>, vector<256x128xf32> -> vector<256x128xf32>
    %91 = arith.addf %84, %90 : vector<256x128xf32>
    %92 = vector.shape_cast %91 : vector<256x128xf32> to vector<1x16x16x128xf32>
    %93 = arith.truncf %92 : vector<1x16x16x128xf32> to vector<1x16x16x128xbf16>
    %c0_39 = arith.constant 0 : index
    %c0_40 = arith.constant 0 : index
    %c0_41 = arith.constant 0 : index
    %c0_42 = arith.constant 0 : index
    %94 = vector.load %arg5[%c0_39, %c0_40, %c0_41, %c0_42] : memref<1x16x16x128xbf16, #tpu.memory_space<vmem>>, vector<1x16x16x128xbf16>
    tpu.vector_store %arg5[%c0_39, %c0_40, %c0_41, %c0_42], %93 {strides = array<i32>} : memref<1x16x16x128xbf16, #tpu.memory_space<vmem>>, vector<1x16x16x128xbf16>,
    %cst_43 = arith.constant dense<0.000000e+00> : vector<128xf32>
    %95 = vector.multi_reduction <add>, %91, %cst_43 [0] : vector<256x128xf32> to vector<128xf32>
    %96 = vector.shape_cast %95 : vector<128xf32> to vector<1x128xf32>
    %97 = vector.shape_cast %96 : vector<1x128xf32> to vector<1x128xf32>
    %98 = vector.broadcast %97 : vector<1x128xf32> to vector<8x128xf32>
    %c0_44 = arith.constant 0 : index
    %c0_45 = arith.constant 0 : index
    %99 = vector.load %arg6[%c0_44, %c0_45] : memref<8x128xf32, #tpu.memory_space<vmem>>, vector<8x128xf32>
    tpu.vector_store %arg6[%c0_44, %c0_45], %98 {strides = array<i32>} : memref<8x128xf32, #tpu.memory_space<vmem>>, vector<8x128xf32>,
    %100 = arith.mulf %91, %91 : vector<256x128xf32>
    %cst_46 = arith.constant dense<0.000000e+00> : vector<128xf32>
    %101 = vector.multi_reduction <add>, %100, %cst_46 [0] : vector<256x128xf32> to vector<128xf32>
    %102 = vector.shape_cast %101 : vector<128xf32> to vector<1x128xf32>
    %103 = vector.shape_cast %102 : vector<1x128xf32> to vector<1x128xf32>
    %104 = vector.broadcast %103 : vector<1x128xf32> to vector<8x128xf32>
    %c0_47 = arith.constant 0 : index
    %c0_48 = arith.constant 0 : index
    %105 = vector.load %arg7[%c0_47, %c0_48] : memref<8x128xf32, #tpu.memory_space<vmem>>, vector<8x128xf32>
    tpu.vector_store %arg7[%c0_47, %c0_48], %104 {strides = array<i32>} : memref<8x128xf32, #tpu.memory_space<vmem>>, vector<8x128xf32>,
    return
  }
  func.func @transform_0(%arg0: i32) -> (i32, i32, i32, i32) {
    %c0_i32 = arith.constant 0 : i32
    %c0_i32_0 = arith.constant 0 : i32
    %c0_i32_1 = arith.constant 0 : i32
    %c0_i32_2 = arith.constant 0 : i32
    return %arg0, %c0_i32, %c0_i32_0, %c0_i32_1 : i32, i32, i32, i32
  }
  func.func @transform_1(%arg0: i32) -> (i32, i32) {
    %c0_i32 = arith.constant 0 : i32
    %c0_i32_0 = arith.constant 0 : i32
    %c0_i32_1 = arith.constant 0 : i32
    return %c0_i32, %c0_i32_0 : i32, i32
  }
  func.func @transform_2(%arg0: i32) -> (i32, i32) {
    %c0_i32 = arith.constant 0 : i32
    %c0_i32_0 = arith.constant 0 : i32
    %c0_i32_1 = arith.constant 0 : i32
    return %c0_i32, %c0_i32_0 : i32, i32
  }
  func.func @transform_3(%arg0: i32) -> (i32, i32, i32) {
    %c0_i32 = arith.constant 0 : i32
    %c0_i32_0 = arith.constant 0 : i32
    %c0_i32_1 = arith.constant 0 : i32
    %c0_i32_2 = arith.constant 0 : i32
    return %c0_i32, %c0_i32_0, %c0_i32_1 : i32, i32, i32
  }
  func.func @transform_4(%arg0: i32) -> (i32, i32, i32, i32) {
    %c0_i32 = arith.constant 0 : i32
    %c0_i32_0 = arith.constant 0 : i32
    %c0_i32_1 = arith.constant 0 : i32
    %c0_i32_2 = arith.constant 0 : i32
    return %arg0, %c0_i32, %c0_i32_0, %c0_i32_1 : i32, i32, i32, i32
  }
  func.func @transform_5(%arg0: i32) -> (i32, i32) {
    %c0_i32 = arith.constant 0 : i32
    %c0_i32_0 = arith.constant 0 : i32
    return %arg0, %c0_i32 : i32, i32
  }
  func.func @transform_6(%arg0: i32) -> (i32, i32) {
    %c0_i32 = arith.constant 0 : i32
    %c0_i32_0 = arith.constant 0 : i32
    return %arg0, %c0_i32 : i32, i32
  }
}

module attributes {stable_mosaic.version = 11 : i64} {
  func.func @_bn_relu_conv1x1_stats_kernel(%arg0: i32, %arg1: memref<128x128xbf16, #tpu.memory_space<vmem>>, %arg2: memref<1x128xf32, #tpu.memory_space<vmem>>, %arg3: memref<1x128xf32, #tpu.memory_space<vmem>>, %arg4: memref<128x128xbf16, #tpu.memory_space<vmem>>, %arg5: memref<128x128xbf16, #tpu.memory_space<vmem>>, %arg6: memref<8x128xf32, #tpu.memory_space<vmem>>, %arg7: memref<8x128xf32, #tpu.memory_space<vmem>>) attributes {dimension_semantics = [#tpu.dimension_semantics<parallel>], iteration_bounds = array<i64: 4>, scalar_prefetch = 0 : i64, scratch_operands = 0 : i64, tpu.core_type = #tpu.core_type<tc>, window_params = [{transform_indices = @transform_0, window_bounds = array<i64: 128, 128>}, {pipeline_mode = #tpu.pipeline_mode<synchronous>, transform_indices = @transform_1, window_bounds = array<i64: 1, 128>}, {pipeline_mode = #tpu.pipeline_mode<synchronous>, transform_indices = @transform_2, window_bounds = array<i64: 1, 128>}, {pipeline_mode = #tpu.pipeline_mode<synchronous>, transform_indices = @transform_3, window_bounds = array<i64: 128, 128>}, {transform_indices = @transform_4, window_bounds = array<i64: 128, 128>}, {transform_indices = @transform_5, window_bounds = array<i64: 8, 128>}, {transform_indices = @transform_6, window_bounds = array<i64: 8, 128>}]} {
    %c0 = arith.constant 0 : index
    %c0_0 = arith.constant 0 : index
    %0 = vector.load %arg1[%c0, %c0_0] : memref<128x128xbf16, #tpu.memory_space<vmem>>, vector<128x128xbf16>
    %1 = arith.extf %0 : vector<128x128xbf16> to vector<128x128xf32>
    %c0_1 = arith.constant 0 : index
    %c0_2 = arith.constant 0 : index
    %2 = vector.load %arg2[%c0_1, %c0_2] : memref<1x128xf32, #tpu.memory_space<vmem>>, vector<1x128xf32>
    %3 = vector.broadcast %2 : vector<1x128xf32> to vector<128x128xf32>
    %4 = arith.mulf %1, %3 : vector<128x128xf32>
    %c0_3 = arith.constant 0 : index
    %c0_4 = arith.constant 0 : index
    %5 = vector.load %arg3[%c0_3, %c0_4] : memref<1x128xf32, #tpu.memory_space<vmem>>, vector<1x128xf32>
    %6 = vector.broadcast %5 : vector<1x128xf32> to vector<128x128xf32>
    %7 = arith.addf %4, %6 : vector<128x128xf32>
    %cst = arith.constant 0.000000e+00 : f32
    %8 = vector.broadcast %cst : f32 to vector<128x128xf32>
    %9 = arith.maximumf %7, %8 : vector<128x128xf32>
    %10 = arith.truncf %9 : vector<128x128xf32> to vector<128x128xbf16>
    %c0_5 = arith.constant 0 : index
    %c0_6 = arith.constant 0 : index
    %11 = vector.load %arg4[%c0_5, %c0_6] : memref<128x128xbf16, #tpu.memory_space<vmem>>, vector<128x128xbf16>
    %cst_7 = arith.constant dense<0.000000e+00> : vector<128x128xf32>
    %12 = tpu.matmul %10, %11, %cst_7 {dimension_numbers = #tpu.dot_dimension_numbers<[1], [0], [0], [1], [0, 0, 1, 1], [], []>} : vector<128x128xbf16>, vector<128x128xbf16>, vector<128x128xf32> -> vector<128x128xf32>
    %13 = arith.truncf %12 : vector<128x128xf32> to vector<128x128xbf16>
    %c0_8 = arith.constant 0 : index
    %c0_9 = arith.constant 0 : index
    %14 = vector.load %arg5[%c0_8, %c0_9] : memref<128x128xbf16, #tpu.memory_space<vmem>>, vector<128x128xbf16>
    tpu.vector_store %arg5[%c0_8, %c0_9], %13 {strides = array<i32>} : memref<128x128xbf16, #tpu.memory_space<vmem>>, vector<128x128xbf16>,
    %cst_10 = arith.constant dense<0.000000e+00> : vector<128xf32>
    %15 = vector.multi_reduction <add>, %12, %cst_10 [0] : vector<128x128xf32> to vector<128xf32>
    %16 = vector.shape_cast %15 : vector<128xf32> to vector<1x128xf32>
    %17 = vector.shape_cast %16 : vector<1x128xf32> to vector<1x128xf32>
    %18 = vector.broadcast %17 : vector<1x128xf32> to vector<8x128xf32>
    %c0_11 = arith.constant 0 : index
    %c0_12 = arith.constant 0 : index
    %19 = vector.load %arg6[%c0_11, %c0_12] : memref<8x128xf32, #tpu.memory_space<vmem>>, vector<8x128xf32>
    tpu.vector_store %arg6[%c0_11, %c0_12], %18 {strides = array<i32>} : memref<8x128xf32, #tpu.memory_space<vmem>>, vector<8x128xf32>,
    %20 = arith.mulf %12, %12 : vector<128x128xf32>
    %cst_13 = arith.constant dense<0.000000e+00> : vector<128xf32>
    %21 = vector.multi_reduction <add>, %20, %cst_13 [0] : vector<128x128xf32> to vector<128xf32>
    %22 = vector.shape_cast %21 : vector<128xf32> to vector<1x128xf32>
    %23 = vector.shape_cast %22 : vector<1x128xf32> to vector<1x128xf32>
    %24 = vector.broadcast %23 : vector<1x128xf32> to vector<8x128xf32>
    %c0_14 = arith.constant 0 : index
    %c0_15 = arith.constant 0 : index
    %25 = vector.load %arg7[%c0_14, %c0_15] : memref<8x128xf32, #tpu.memory_space<vmem>>, vector<8x128xf32>
    tpu.vector_store %arg7[%c0_14, %c0_15], %24 {strides = array<i32>} : memref<8x128xf32, #tpu.memory_space<vmem>>, vector<8x128xf32>,
    return
  }
  func.func @transform_0(%arg0: i32) -> (i32, i32) {
    %c0_i32 = arith.constant 0 : i32
    %c0_i32_0 = arith.constant 0 : i32
    return %arg0, %c0_i32 : i32, i32
  }
  func.func @transform_1(%arg0: i32) -> (i32, i32) {
    %c0_i32 = arith.constant 0 : i32
    %c0_i32_0 = arith.constant 0 : i32
    %c0_i32_1 = arith.constant 0 : i32
    return %c0_i32, %c0_i32_0 : i32, i32
  }
  func.func @transform_2(%arg0: i32) -> (i32, i32) {
    %c0_i32 = arith.constant 0 : i32
    %c0_i32_0 = arith.constant 0 : i32
    %c0_i32_1 = arith.constant 0 : i32
    return %c0_i32, %c0_i32_0 : i32, i32
  }
  func.func @transform_3(%arg0: i32) -> (i32, i32) {
    %c0_i32 = arith.constant 0 : i32
    %c0_i32_0 = arith.constant 0 : i32
    %c0_i32_1 = arith.constant 0 : i32
    return %c0_i32, %c0_i32_0 : i32, i32
  }
  func.func @transform_4(%arg0: i32) -> (i32, i32) {
    %c0_i32 = arith.constant 0 : i32
    %c0_i32_0 = arith.constant 0 : i32
    return %arg0, %c0_i32 : i32, i32
  }
  func.func @transform_5(%arg0: i32) -> (i32, i32) {
    %c0_i32 = arith.constant 0 : i32
    %c0_i32_0 = arith.constant 0 : i32
    return %arg0, %c0_i32 : i32, i32
  }
  func.func @transform_6(%arg0: i32) -> (i32, i32) {
    %c0_i32 = arith.constant 0 : i32
    %c0_i32_0 = arith.constant 0 : i32
    return %arg0, %c0_i32 : i32, i32
  }
}

module attributes {stable_mosaic.version = 11 : i64} {
  func.func @_bn3_add_relu_kernel(%arg0: i32, %arg1: memref<128x128xbf16, #tpu.memory_space<vmem>>, %arg2: memref<1x128xf32, #tpu.memory_space<vmem>>, %arg3: memref<1x128xf32, #tpu.memory_space<vmem>>, %arg4: memref<128x128xf32, #tpu.memory_space<vmem>>, %arg5: memref<128x128xf32, #tpu.memory_space<vmem>>) attributes {dimension_semantics = [#tpu.dimension_semantics<parallel>], iteration_bounds = array<i64: 4>, scalar_prefetch = 0 : i64, scratch_operands = 0 : i64, tpu.core_type = #tpu.core_type<tc>, window_params = [{transform_indices = @transform_0, window_bounds = array<i64: 128, 128>}, {pipeline_mode = #tpu.pipeline_mode<synchronous>, transform_indices = @transform_1, window_bounds = array<i64: 1, 128>}, {pipeline_mode = #tpu.pipeline_mode<synchronous>, transform_indices = @transform_2, window_bounds = array<i64: 1, 128>}, {transform_indices = @transform_3, window_bounds = array<i64: 128, 128>}, {transform_indices = @transform_4, window_bounds = array<i64: 128, 128>}]} {
    %c0 = arith.constant 0 : index
    %c0_0 = arith.constant 0 : index
    %0 = vector.load %arg1[%c0, %c0_0] : memref<128x128xbf16, #tpu.memory_space<vmem>>, vector<128x128xbf16>
    %1 = arith.extf %0 : vector<128x128xbf16> to vector<128x128xf32>
    %c0_1 = arith.constant 0 : index
    %c0_2 = arith.constant 0 : index
    %2 = vector.load %arg2[%c0_1, %c0_2] : memref<1x128xf32, #tpu.memory_space<vmem>>, vector<1x128xf32>
    %3 = vector.broadcast %2 : vector<1x128xf32> to vector<128x128xf32>
    %4 = arith.mulf %1, %3 : vector<128x128xf32>
    %c0_3 = arith.constant 0 : index
    %c0_4 = arith.constant 0 : index
    %5 = vector.load %arg3[%c0_3, %c0_4] : memref<1x128xf32, #tpu.memory_space<vmem>>, vector<1x128xf32>
    %6 = vector.broadcast %5 : vector<1x128xf32> to vector<128x128xf32>
    %7 = arith.addf %4, %6 : vector<128x128xf32>
    %c0_5 = arith.constant 0 : index
    %c0_6 = arith.constant 0 : index
    %8 = vector.load %arg4[%c0_5, %c0_6] : memref<128x128xf32, #tpu.memory_space<vmem>>, vector<128x128xf32>
    %9 = arith.addf %7, %8 : vector<128x128xf32>
    %cst = arith.constant 0.000000e+00 : f32
    %10 = vector.broadcast %cst : f32 to vector<128x128xf32>
    %11 = arith.maximumf %9, %10 : vector<128x128xf32>
    %c0_7 = arith.constant 0 : index
    %c0_8 = arith.constant 0 : index
    %12 = vector.load %arg5[%c0_7, %c0_8] : memref<128x128xf32, #tpu.memory_space<vmem>>, vector<128x128xf32>
    tpu.vector_store %arg5[%c0_7, %c0_8], %11 {strides = array<i32>} : memref<128x128xf32, #tpu.memory_space<vmem>>, vector<128x128xf32>,
    return
  }
  func.func @transform_0(%arg0: i32) -> (i32, i32) {
    %c0_i32 = arith.constant 0 : i32
    %c0_i32_0 = arith.constant 0 : i32
    return %arg0, %c0_i32 : i32, i32
  }
  func.func @transform_1(%arg0: i32) -> (i32, i32) {
    %c0_i32 = arith.constant 0 : i32
    %c0_i32_0 = arith.constant 0 : i32
    %c0_i32_1 = arith.constant 0 : i32
    return %c0_i32, %c0_i32_0 : i32, i32
  }
  func.func @transform_2(%arg0: i32) -> (i32, i32) {
    %c0_i32 = arith.constant 0 : i32
    %c0_i32_0 = arith.constant 0 : i32
    %c0_i32_1 = arith.constant 0 : i32
    return %c0_i32, %c0_i32_0 : i32, i32
  }
  func.func @transform_3(%arg0: i32) -> (i32, i32) {
    %c0_i32 = arith.constant 0 : i32
    %c0_i32_0 = arith.constant 0 : i32
    return %arg0, %c0_i32 : i32, i32
  }
  func.func @transform_4(%arg0: i32) -> (i32, i32) {
    %c0_i32 = arith.constant 0 : i32
    %c0_i32_0 = arith.constant 0 : i32
    return %arg0, %c0_i32 : i32, i32
  }
}

</mosaic_0001>

<llo_original>
// kernel: _lambda_.4
$region0: #{_lambda_.4}
  #allocation0 [shape = 'u32[]', space=smem, size = 0x4, offset = 0x4, fixed_abs, tag = 'smem constant byte address 0x4 - core index']
  #allocation1 [shape = 'u32[72,128]{1,0:T(1,128)}', space=vmem, size = 0x9000, scoped, tag = 'internal scratch']
  %s0 = inlined_call_operand.vmem [shape: f32[512,128], index: 0, kind: input, shape index: {}]
  %s1 = inlined_call_operand.vmem [shape: bf16[128,128], index: 1, kind: input, shape index: {}]
  %s2 = inlined_call_operand.vmem [shape: bf16[512,128], index: 2, kind: output, shape index: {0}]
  %s3 = inlined_call_operand.vmem [shape: f32[32,128], index: 3, kind: output, shape index: {1}]
  %s4 = inlined_call_operand.vmem [shape: f32[32,128], index: 4, kind: output, shape index: {2}]
  %5 = xla_tuple %s2, %s3, %s4
  %s6 = sld [smem:[#allocation0]]
  $region57: #{_lambda_.4} parent=0
    _
  %s8 = ssub.s32 1, %s6
  %s9 = scalar_select 0, %s8, %s6
  loop: start=0, step=1, limit=6
  $region2: #{_lambda_.4} parent=0 // loop_pre_header
    _
  $region3: #{_lambda_.4} parent=0 // loop_header
    %s11 = sphi 0, %s15
    %p12 = scmp.ge.s32.totalorder %s11, 6
    %s21 = sphi 0, %s23
    %s24 = sphi 0, %s21
    %s25 = sphi 0, %s24
    %s41 = sphi 0, %s25
    %s45 = sphi 0, %s45
    %s47 = sphi 0, %s45
    %s48 = sphi 0, %s47
    %s62 = sphi 0, %s48
    %s68 = sphi 0, %s70
    %s71 = sphi 0, %s68
    %s72 = sphi 0, %s71
    %s88 = sphi 0, %s72
    %s94 = sphi 0, %s96
    %s97 = sphi 0, %s94
    %s98 = sphi 0, %s97
    %s114 = sphi 0, %s98
    %s120 = sphi 0, %s122
    %s123 = sphi 0, %s120
    %s124 = sphi 0, %s123
    %s140 = sphi 0, %s124
  $region4: #{_lambda_.4} parent=0 // loop_header_branch
    %14 = sbr.rel (%p12) target = $region8
  $region5: #{_lambda_.4} parent=0 // loop_body
    %s16 = ssub.s32 %s11, 1
    %s17 = ssub.s32 %s11, 2
    %s18 = sadd.s32 %s11, 1
    %s19 = ssub.s32 %s11, %s18
    %p20 = scmp.eq.s32.totalorder %s19, 0
    %s22 = sadd.s32 %s21, 1
    %s23 = scalar_select %p20, %s21, %s22
    %p26 = pneg %p20
    %p27 = scmp.eq.s32.totalorder %s11, 3
    %p28 = por %p26, %p27
    %p29 = scmp.ne.s32.totalorder %s21, %s24
    %p30 = scmp.eq.s32.totalorder %s11, 0
    %p31 = por %p29, %p30
    %p32 = scmp.ne.s32.totalorder %s21, %s24
    %p33 = scmp.eq.s32.totalorder %s16, 3
    %p34 = por %p32, %p33
    %p35 = scmp.ne.s32.totalorder %s24, %s25
    %p36 = scmp.eq.s32.totalorder %s16, 0
    %p37 = por %p35, %p36
    %p38 = scmp.ne.s32.totalorder %s24, %s25
    %p39 = scmp.eq.s32.totalorder %s17, 3
    %p40 = por %p38, %p39
    %p42 = scmp.ne.s32.totalorder %s25, %s41
    %p43 = scmp.eq.s32.totalorder %s17, 0
    %p44 = por %p42, %p43
    %s46 = sadd.s32 %s45, 1
    %p49 = scmp.eq.s32.totalorder %s11, 3
    %p50 = scmp.ne.s32.totalorder %s45, %s47
    %p51 = scmp.eq.s32.totalorder %s11, 0
    %p52 = por %p50, %p51
    %p53 = scmp.ne.s32.totalorder %s45, %s47
    %p54 = scmp.eq.s32.totalorder %s16, 3
    %p55 = por %p53, %p54
    %p56 = scmp.ne.s32.totalorder %s47, %s48
    %p57 = scmp.eq.s32.totalorder %s16, 0
    %p58 = por %p56, %p57
    %p59 = scmp.ne.s32.totalorder %s47, %s48
    %p60 = scmp.eq.s32.totalorder %s17, 3
    %p61 = por %p59, %p60
    %p63 = scmp.ne.s32.totalorder %s48, %s62
    %p64 = scmp.eq.s32.totalorder %s17, 0
    %p65 = por %p63, %p64
    %s66 = ssub.s32 %s11, %s18
    %p67 = scmp.eq.s32.totalorder %s66, 0
    %s69 = sadd.s32 %s68, 1
    %s70 = scalar_select %p67, %s68, %s69
    %p73 = pneg %p67
    %p74 = scmp.eq.s32.totalorder %s11, 3
    %p75 = por %p73, %p74
    %p76 = scmp.ne.s32.totalorder %s68, %s71
    %p77 = scmp.eq.s32.totalorder %s11, 0
    %p78 = por %p76, %p77
    %p79 = scmp.ne.s32.totalorder %s68, %s71
    %p80 = scmp.eq.s32.totalorder %s16, 3
    %p81 = por %p79, %p80
    %p82 = scmp.ne.s32.totalorder %s71, %s72
    %p83 = scmp.eq.s32.totalorder %s16, 0
    %p84 = por %p82, %p83
    %p85 = scmp.ne.s32.totalorder %s71, %s72
    %p86 = scmp.eq.s32.totalorder %s17, 3
    %p87 = por %p85, %p86
    %p89 = scmp.ne.s32.totalorder %s72, %s88
    %p90 = scmp.eq.s32.totalorder %s17, 0
    %p91 = por %p89, %p90
    %s92 = ssub.s32 %s11, %s18
    %p93 = scmp.eq.s32.totalorder %s92, 0
    %s95 = sadd.s32 %s94, 1
    %s96 = scalar_select %p93, %s94, %s95
    %p99 = pneg %p93
    %p100 = scmp.eq.s32.totalorder %s11, 3
    %p101 = por %p99, %p100
    %p102 = scmp.ne.s32.totalorder %s94, %s97
    %p103 = scmp.eq.s32.totalorder %s11, 0
    %p104 = por %p102, %p103
    %p105 = scmp.ne.s32.totalorder %s94, %s97
    %p106 = scmp.eq.s32.totalorder %s16, 3
    %p107 = por %p105, %p106
    %p108 = scmp.ne.s32.totalorder %s97, %s98
    %p109 = scmp.eq.s32.totalorder %s16, 0
    %p110 = por %p108, %p109
    %p111 = scmp.ne.s32.totalorder %s97, %s98
    %p112 = scmp.eq.s32.totalorder %s17, 3
    %p113 = por %p111, %p112
    %p115 = scmp.ne.s32.totalorder %s98, %s114
    %p116 = scmp.eq.s32.totalorder %s17, 0
    %p117 = por %p115, %p116
    %s118 = ssub.s32 %s11, %s18
    %p119 = scmp.eq.s32.totalorder %s118, 0
    %s121 = sadd.s32 %s120, 1
    %s122 = scalar_select %p119, %s120, %s121
    %p125 = pneg %p119
    %p126 = scmp.eq.s32.totalorder %s11, 3
    %p127 = por %p125, %p126
    %p128 = scmp.ne.s32.totalorder %s120, %s123
    %p129 = scmp.eq.s32.totalorder %s11, 0
    %p130 = por %p128, %p129
    %p131 = scmp.ne.s32.totalorder %s120, %s123
    %p132 = scmp.eq.s32.totalorder %s16, 3
    %p133 = por %p131, %p132
    %p134 = scmp.ne.s32.totalorder %s123, %s124
    %p135 = scmp.eq.s32.totalorder %s16, 0
    %p136 = por %p134, %p135
    %p137 = scmp.ne.s32.totalorder %s123, %s124
    %p138 = scmp.eq.s32.totalorder %s17, 3
    %p139 = por %p137, %p138
    %p141 = scmp.ne.s32.totalorder %s124, %s140
    %p142 = scmp.eq.s32.totalorder %s17, 0
    %p143 = por %p141, %p142
    %p144 = scmp.le.s32.totalorder 1, %s11
    %p145 = scmp.lt.s32.totalorder %s11, 5
    %p146 = pnand %p144, %p145
    %p147 = pneg %p146
    // Predicated region
    $region9: #{_lambda_.4} parent=5 // pred_check
      _
    $region10: #{_lambda_.4} parent=5 // pred_check_branch
      %149 = sbr.rel (%p146) target = $region12
    $region11: #{_lambda_.4} parent=5 // pred_region
      %s150 = ssub.s32 %s11, 1
      // Predicated region
      $region13: #{_lambda_.4} parent=11 // pred_check
        %p151 = pneg %p58
      $region14: #{_lambda_.4} parent=11 // pred_check_branch
        %153 = sbr.rel (%p151) target = $region16
      $region15: #{_lambda_.4} parent=11 // pred_region
        _
      $region16: #{_lambda_.4} parent=11 // pred_fallthru
        _
    $region12: #{_lambda_.4} parent=5 // pred_fallthru
      _
    %p154 = scmp.lt.s32.totalorder %s11, 4
    // Predicated region
    $region17: #{_lambda_.4} parent=5 // pred_check
      %p155 = pneg %p154
    $region18: #{_lambda_.4} parent=5 // pred_check_branch
      %157 = sbr.rel (%p155) target = $region20
    $region19: #{_lambda_.4} parent=5 // pred_region
      // Predicated region
      $region21: #{_lambda_.4} parent=19 // pred_check
        %p158 = pneg %p31
      $region22: #{_lambda_.4} parent=19 // pred_check_branch
        %160 = sbr.rel (%p158) target = $region24
      $region23: #{_lambda_.4} parent=19 // pred_region
        %s161 = smul.u32 16, %s11
        %p162 = scmp.lt.s32.totalorder %s161, 63
        %s163 = scalar_select %p162, %s161, 63
        %s164 = smul.addr %s163, 8
        %s165 = scalar_lea.vmem %s0, %s164
        %s166 = smul.u32 16, %s11
      $region24: #{_lambda_.4} parent=19 // pred_fallthru
        _
    $region20: #{_lambda_.4} parent=5 // pred_fallthru
      _
    %p167 = scmp.le.s32.totalorder 1, %s11
    %p168 = scmp.lt.s32.totalorder %s11, 5
    %p169 = pnand %p167, %p168
    %p170 = pneg %p169
    // Predicated region
    $region25: #{_lambda_.4} parent=5 // pred_check
      _
    $region26: #{_lambda_.4} parent=5 // pred_check_branch
      %172 = sbr.rel (%p169) target = $region28
    $region27: #{_lambda_.4} parent=5 // pred_region
      %s173 = ssub.s32 %s11, 1
      %s174 = smul.u32 16, %s16
      %p175 = scmp.lt.s32.totalorder %s174, 63
      %s176 = scalar_select %p175, %s174, 63
      %s177 = smul.addr %s176, 8
      %s178 = scalar_lea.vmem %s0, %s177
      %p179 = pneg %p37
      %p180 = pneg %p34
      %p181 = pneg %p58
      %p182 = pneg %p55
      %p183 = pneg %p84
      %p184 = pneg %p81
      %s185 = smul.u32 16, %s16
      %p186 = scmp.lt.s32.totalorder %s185, 63
      %s187 = scalar_select %p186, %s185, 63
      %s188 = smul.addr %s187, 4
      %s189 = scalar_lea.vmem %s2, %s188
      %p190 = pneg %p110
      %p191 = pneg %p107
      %p192 = scmp.lt.s32.totalorder %s16, 3
      %s193 = scalar_select %p192, %s16, 3
      %s194 = smul.addr %s193, 8
      %s195 = scalar_lea.vmem %s3, %s194
      %p196 = pneg %p136
      %p197 = pneg %p133
      %p198 = scmp.lt.s32.totalorder %s16, 3
      %s199 = scalar_select %p198, %s16, 3
      %s200 = smul.addr %s199, 8
      %s201 = scalar_lea.vmem %s4, %s200
      %s202 = smul.u32 16, %s16
      %p203 = scmp.lt.s32.totalorder %s202, 63
      %s204 = scalar_select %p203, %s202, 63
      %s205 = smul.addr %s204, 8
      %s206 = scalar_lea.vmem %s0, %s205
      %s207 = smul.u32 16, %s16
      %s208 = smul.u32 16, %s16
      %p209 = scmp.lt.s32.totalorder %s208, 63
      %s210 = scalar_select %p209, %s208, 63
      %s211 = smul.addr %s210, 4
      %s212 = scalar_lea.vmem %s2, %s211
      %s213 = smul.u32 16, %s16
      %p214 = scmp.lt.s32.totalorder %s16, 3
      %s215 = scalar_select %p214, %s16, 3
      %s216 = smul.addr %s215, 8
      %s217 = scalar_lea.vmem %s3, %s216
      %p218 = scmp.lt.s32.totalorder %s16, 3
      %s219 = scalar_select %p218, %s16, 3
      %s220 = smul.addr %s219, 8
      %s221 = scalar_lea.vmem %s4, %s220
      %v222 = vld [vmem:[%s206] sm:$0xff]
      %v223 = vld [vmem:[%s206 + $0x8] sm:$0xff]
      %v224 = vld [vmem:[%s206 + $0x10] sm:$0xff]
      %v225 = vld [vmem:[%s206 + $0x18] sm:$0xff]
      %v226 = vld [vmem:[%s206 + $0x20] sm:$0xff]
      %v227 = vld [vmem:[%s206 + $0x28] sm:$0xff]
      %v228 = vld [vmem:[%s206 + $0x30] sm:$0xff]
      %v229 = vld [vmem:[%s206 + $0x38] sm:$0xff]
      %v230 = vld [vmem:[%s206 + $0x40] sm:$0xff]
      %v231 = vld [vmem:[%s206 + $0x48] sm:$0xff]
      %v232 = vld [vmem:[%s206 + $0x50] sm:$0xff]
      %v233 = vld [vmem:[%s206 + $0x58] sm:$0xff]
      %v234 = vld [vmem:[%s206 + $0x60] sm:$0xff]
      %v235 = vld [vmem:[%s206 + $0x68] sm:$0xff]
      %v236 = vld [vmem:[%s206 + $0x70] sm:$0xff]
      %v237 = vld [vmem:[%s206 + $0x78] sm:$0xff]
      %v238 = vpack.c.bf16 %v223, %v222
      %v239 = vpack.c.bf16 %v225, %v224
      %v240 = vpack.c.bf16 %v227, %v226
      %v241 = vpack.c.bf16 %v229, %v228
      %v242 = vpack.c.bf16 %v231, %v230
      %v243 = vpack.c.bf16 %v233, %v232
      %v244 = vpack.c.bf16 %v235, %v234
      %v245 = vpack.c.bf16 %v237, %v236
      %v246 = vld [vmem:[%s1] sm:$0xf]
      %v247 = vld [vmem:[%s1 + $0x4] sm:$0xf]
      %v248 = vld [vmem:[%s1 + $0x8] sm:$0xf]
      %v249 = vld [vmem:[%s1 + $0xc] sm:$0xf]
      %v250 = vld [vmem:[%s1 + $0x10] sm:$0xf]
      %v251 = vld [vmem:[%s1 + $0x14] sm:$0xf]
      %v252 = vld [vmem:[%s1 + $0x18] sm:$0xf]
      %v253 = vld [vmem:[%s1 + $0x1c] sm:$0xf]
      %v254 = vld [vmem:[%s1 + $0x20] sm:$0xf]
      %v255 = vld [vmem:[%s1 + $0x24] sm:$0xf]
      %v256 = vld [vmem:[%s1 + $0x28] sm:$0xf]
      %v257 = vld [vmem:[%s1 + $0x2c] sm:$0xf]
      %v258 = vld [vmem:[%s1 + $0x30] sm:$0xf]
      %v259 = vld [vmem:[%s1 + $0x34] sm:$0xf]
      %v260 = vld [vmem:[%s1 + $0x38] sm:$0xf]
      %v261 = vld [vmem:[%s1 + $0x3c] sm:$0xf]
      %v278 = vunpack.c.l.b16 %v246
      %v279 = vunpack.c.l.b16 %v247
      %v280 = vunpack.c.l.b16 %v248
      %v281 = vunpack.c.l.b16 %v249
      %v282 = vunpack.c.l.b16 %v250
      %v283 = vunpack.c.l.b16 %v251
      %v284 = vunpack.c.l.b16 %v252
      %v285 = vunpack.c.l.b16 %v253
      %v286 = vunpack.c.l.b16 %v254
      %v287 = vunpack.c.l.b16 %v255
      %v288 = vunpack.c.l.b16 %v256
      %v289 = vunpack.c.l.b16 %v257
      %v290 = vunpack.c.l.b16 %v258
      %v291 = vunpack.c.l.b16 %v259
      %v292 = vunpack.c.l.b16 %v260
      %v293 = vunpack.c.l.b16 %v261
      %v294 = vpack.c.b16 %v279, %v278
      %v295 = vpack.c.b16 %v281, %v280
      %v296 = vpack.c.b16 %v283, %v282
      %v297 = vpack.c.b16 %v285, %v284
      %v298 = vpack.c.b16 %v287, %v286
      %v299 = vpack.c.b16 %v289, %v288
      %v300 = vpack.c.b16 %v291, %v290
      %v301 = vpack.c.b16 %v293, %v292
      %310 = vmatpush.bf16.msra.mxu0 %v301
      %311 = vmatpush.bf16.msra.mxu0 %v300
      %312 = vmatpush.bf16.msra.mxu0 %v299
      %313 = vmatpush.bf16.msra.mxu0 %v298
      %314 = vmatpush.bf16.msra.mxu0 %v297
      %315 = vmatpush.bf16.msra.mxu0 %v296
      %316 = vmatpush.bf16.msra.mxu0 %v295
      %317 = vmatpush.bf16.msra.mxu0 %v294
      %318 = vmatmul.bf16.gmra.mxu0 %v238
      %v319 = vpop.f32.mrf.mxu0
      %v320 = vadd.f32 0.0, %v319
      %v321 = vpop.f32.mrf.mxu0
      %v322 = vadd.f32 0.0, %v321
      %323 = vmatmul.bf16.gmra.mxu0 %v239
      %v324 = vpop.f32.mrf.mxu0
      %v325 = vadd.f32 0.0, %v324
      %v326 = vpop.f32.mrf.mxu0
      %v327 = vadd.f32 0.0, %v326
      %328 = vmatmul.bf16.gmra.mxu0 %v240
      %v329 = vpop.f32.mrf.mxu0
      %v330 = vadd.f32 0.0, %v329
      %v331 = vpop.f32.mrf.mxu0
      %v332 = vadd.f32 0.0, %v331
      %333 = vmatmul.bf16.gmra.mxu0 %v241
      %v334 = vpop.f32.mrf.mxu0
      %v335 = vadd.f32 0.0, %v334
      %v336 = vpop.f32.mrf.mxu0
      %v337 = vadd.f32 0.0, %v336
      %338 = vmatmul.bf16.gmra.mxu0 %v242
      %v339 = vpop.f32.mrf.mxu0
      %v340 = vadd.f32 0.0, %v339
      %v341 = vpop.f32.mrf.mxu0
      %v342 = vadd.f32 0.0, %v341
      %343 = vmatmul.bf16.gmra.mxu0 %v243
      %v344 = vpop.f32.mrf.mxu0
      %v345 = vadd.f32 0.0, %v344
      %v346 = vpop.f32.mrf.mxu0
      %v347 = vadd.f32 0.0, %v346
      %348 = vmatmul.bf16.gmra.mxu0 %v244
      %v349 = vpop.f32.mrf.mxu0
      %v350 = vadd.f32 0.0, %v349
      %v351 = vpop.f32.mrf.mxu0
      %v352 = vadd.f32 0.0, %v351
      %353 = vmatmul.bf16.gmra.mxu0 %v245
      %v354 = vpop.f32.mrf.mxu0
      %v355 = vadd.f32 0.0, %v354
      %v356 = vpop.f32.mrf.mxu0
      %v357 = vadd.f32 0.0, %v356
      %358 = vdwg.mxu0
      %v359 = vpack.c.bf16 %v320, %v320
      %v360 = vpack.c.bf16 %v322, %v322
      %v361 = vpack.c.bf16 %v325, %v325
      %v362 = vpack.c.bf16 %v327, %v327
      %v363 = vpack.c.bf16 %v330, %v330
      %v364 = vpack.c.bf16 %v332, %v332
      %v365 = vpack.c.bf16 %v335, %v335
      %v366 = vpack.c.bf16 %v337, %v337
      %v367 = vpack.c.bf16 %v340, %v340
      %v368 = vpack.c.bf16 %v342, %v342
      %v369 = vpack.c.bf16 %v345, %v345
      %v370 = vpack.c.bf16 %v347, %v347
      %v371 = vpack.c.bf16 %v350, %v350
      %v372 = vpack.c.bf16 %v352, %v352
      %v373 = vpack.c.bf16 %v355, %v355
      %v374 = vpack.c.bf16 %v357, %v357
      %375 = vst [vmem:[%s212] sm:$0xf] %v359
      %376 = vst [vmem:[%s212 + $0x4] sm:$0xf] %v360
      %377 = vst [vmem:[%s212 + $0x8] sm:$0xf] %v361
      %378 = vst [vmem:[%s212 + $0xc] sm:$0xf] %v362
      %379 = vst [vmem:[%s212 + $0x10] sm:$0xf] %v363
      %380 = vst [vmem:[%s212 + $0x14] sm:$0xf] %v364
      %381 = vst [vmem:[%s212 + $0x18] sm:$0xf] %v365
      %382 = vst [vmem:[%s212 + $0x1c] sm:$0xf] %v366
      %383 = vst [vmem:[%s212 + $0x20] sm:$0xf] %v367
      %384 = vst [vmem:[%s212 + $0x24] sm:$0xf] %v368
      %385 = vst [vmem:[%s212 + $0x28] sm:$0xf] %v369
      %386 = vst [vmem:[%s212 + $0x2c] sm:$0xf] %v370
      %387 = vst [vmem:[%s212 + $0x30] sm:$0xf] %v371
      %388 = vst [vmem:[%s212 + $0x34] sm:$0xf] %v372
      %389 = vst [vmem:[%s212 + $0x38] sm:$0xf] %v373
      %390 = vst [vmem:[%s212 + $0x3c] sm:$0xf] %v374
      %v391 = vadd.f32 %v320, %v322
      %v392 = vadd.f32 %v391, %v325
      %v393 = vadd.f32 %v392, %v327
      %v394 = vadd.f32 %v393, %v330
      %v395 = vadd.f32 %v394, %v332
      %v396 = vadd.f32 %v395, %v335
      %v397 = vadd.f32 %v396, %v337
      %v398 = vadd.f32 %v397, %v340
      %v399 = vadd.f32 %v398, %v342
      %v400 = vadd.f32 %v399, %v345
      %v401 = vadd.f32 %v400, %v347
      %v402 = vadd.f32 %v401, %v350
      %v403 = vadd.f32 %v402, %v352
      %v404 = vadd.f32 %v403, %v355
      %v405 = vadd.f32 %v404, %v357
      %v406 = vrot.slane %v405, 4
      %v407 = vadd.f32 %v405, %v406
      %v408 = vrot.slane %v407, 2
      %v409 = vadd.f32 %v407, %v408
      %v410 = vrot.slane %v409, 1
      %v411 = vadd.f32 %v409, %v410
      %412 = vst [vmem:[%s217] sm:$0xff] %v411
      %v413 = vmul.f32 %v320, %v320
      %v414 = vmul.f32 %v322, %v322
      %v415 = vmul.f32 %v325, %v325
      %v416 = vmul.f32 %v327, %v327
      %v417 = vmul.f32 %v330, %v330
      %v418 = vmul.f32 %v332, %v332
      %v419 = vmul.f32 %v335, %v335
      %v420 = vmul.f32 %v337, %v337
      %v421 = vmul.f32 %v340, %v340
      %v422 = vmul.f32 %v342, %v342
      %v423 = vmul.f32 %v345, %v345
      %v424 = vmul.f32 %v347, %v347
      %v425 = vmul.f32 %v350, %v350
      %v426 = vmul.f32 %v352, %v352
      %v427 = vmul.f32 %v355, %v355
      %v428 = vmul.f32 %v357, %v357
      %v429 = vadd.f32 %v413, %v414
      %v430 = vadd.f32 %v429, %v415
      %v431 = vadd.f32 %v430, %v416
      %v432 = vadd.f32 %v431, %v417
      %v433 = vadd.f32 %v432, %v418
      %v434 = vadd.f32 %v433, %v419
      %v435 = vadd.f32 %v434, %v420
      %v436 = vadd.f32 %v435, %v421
      %v437 = vadd.f32 %v436, %v422
      %v438 = vadd.f32 %v437, %v423
      %v439 = vadd.f32 %v438, %v424
      %v440 = vadd.f32 %v439, %v425
      %v441 = vadd.f32 %v440, %v426
      %v442 = vadd.f32 %v441, %v427
      %v443 = vadd.f32 %v442, %v428
      %v444 = vrot.slane %v443, 4
      %v445 = vadd.f32 %v443, %v444
      %v446 = vrot.slane %v445, 2
      %v447 = vadd.f32 %v445, %v446
      %v448 = vrot.slane %v447, 1
      %v449 = vadd.f32 %v447, %v448
      %450 = vst [vmem:[%s221] sm:$0xff] %v449
      %s451 = smul.u32 16, %s16
      %p452 = scmp.lt.s32.totalorder %s451, 63
      %s453 = scalar_select %p452, %s451, 63
      %s454 = smul.addr %s453, 4
      %s455 = scalar_lea.vmem %s2, %s454
      %p456 = scmp.lt.s32.totalorder %s16, 3
      %s457 = scalar_select %p456, %s16, 3
      %s458 = smul.addr %s457, 8
      %s459 = scalar_lea.vmem %s3, %s458
      %p460 = scmp.lt.s32.totalorder %s16, 3
      %s461 = scalar_select %p460, %s16, 3
      %s462 = smul.addr %s461, 8
      %s463 = scalar_lea.vmem %s4, %s462
      // Predicated region
      $region29: #{_lambda_.4} parent=27 // pred_check
        %p464 = pneg %p81
      $region30: #{_lambda_.4} parent=27 // pred_check_branch
        %466 = sbr.rel (%p464) target = $region32
      $region31: #{_lambda_.4} parent=27 // pred_region
        %s467 = smul.u32 16, %s16
      $region32: #{_lambda_.4} parent=27 // pred_fallthru
        _
      // Predicated region
      $region33: #{_lambda_.4} parent=27 // pred_check
        %p468 = pneg %p107
      $region34: #{_lambda_.4} parent=27 // pred_check_branch
        %470 = sbr.rel (%p468) target = $region36
      $region35: #{_lambda_.4} parent=27 // pred_region
        _
      $region36: #{_lambda_.4} parent=27 // pred_fallthru
        _
      // Predicated region
      $region37: #{_lambda_.4} parent=27 // pred_check
        %p471 = pneg %p133
      $region38: #{_lambda_.4} parent=27 // pred_check_branch
        %473 = sbr.rel (%p471) target = $region40
      $region39: #{_lambda_.4} parent=27 // pred_region
        _
      $region40: #{_lambda_.4} parent=27 // pred_fallthru
        _
    $region28: #{_lambda_.4} parent=5 // pred_fallthru
      _
    %p474 = scmp.le.s32.totalorder 2, %s11
    // Predicated region
    $region41: #{_lambda_.4} parent=5 // pred_check
      %p475 = pneg %p474
    $region42: #{_lambda_.4} parent=5 // pred_check_branch
      %477 = sbr.rel (%p475) target = $region44
    $region43: #{_lambda_.4} parent=5 // pred_region
      %s478 = ssub.s32 %s11, 2
      // Predicated region
      $region45: #{_lambda_.4} parent=43 // pred_check
        %p479 = pneg %p87
      $region46: #{_lambda_.4} parent=43 // pred_check_branch
        %481 = sbr.rel (%p479) target = $region48
      $region47: #{_lambda_.4} parent=43 // pred_region
        %s482 = smul.u32 16, %s17
        %p483 = scmp.lt.s32.totalorder %s482, 63
        %s484 = scalar_select %p483, %s482, 63
        %s485 = smul.addr %s484, 4
        %s486 = scalar_lea.vmem %s2, %s485
      $region48: #{_lambda_.4} parent=43 // pred_fallthru
        _
      // Predicated region
      $region49: #{_lambda_.4} parent=43 // pred_check
        %p487 = pneg %p113
      $region50: #{_lambda_.4} parent=43 // pred_check_branch
        %489 = sbr.rel (%p487) target = $region52
      $region51: #{_lambda_.4} parent=43 // pred_region
        %p490 = scmp.lt.s32.totalorder %s17, 3
        %s491 = scalar_select %p490, %s17, 3
        %s492 = smul.addr %s491, 8
        %s493 = scalar_lea.vmem %s3, %s492
      $region52: #{_lambda_.4} parent=43 // pred_fallthru
        _
      // Predicated region
      $region53: #{_lambda_.4} parent=43 // pred_check
        %p494 = pneg %p139
      $region54: #{_lambda_.4} parent=43 // pred_check_branch
        %496 = sbr.rel (%p494) target = $region56
      $region55: #{_lambda_.4} parent=43 // pred_region
        %p497 = scmp.lt.s32.totalorder %s17, 3
        %s498 = scalar_select %p497, %s17, 3
        %s499 = smul.addr %s498, 8
        %s500 = scalar_lea.vmem %s4, %s499
      $region56: #{_lambda_.4} parent=43 // pred_fallthru
        _
    $region44: #{_lambda_.4} parent=5 // pred_fallthru
      _
  $region6: #{_lambda_.4} parent=0 // loop_footer
    %s15 = sadd.s32 1, %s11
  $region7: #{_lambda_.4} parent=0 // loop_footer_branch
    %10 = sbr.rel target = $region3
  $region8: #{_lambda_.4} parent=0 // loop_exit
    _

// kernel: _lambda_.6
$region0: #{_lambda_.6}
  #allocation0 [shape = 'u32[]', space=smem, size = 0x4, offset = 0x4, fixed_abs, tag = 'smem constant byte address 0x4 - core index']
  #allocation1 [shape = 'u32[72,128]{1,0:T(1,128)}', space=vmem, size = 0x9000, scoped, tag = 'internal scratch']
  %s0 = inlined_call_operand.vmem [shape: bf16[512,128], index: 0, kind: input, shape index: {}]
  %s1 = inlined_call_operand.vmem [shape: f32[1,128], index: 1, kind: input, shape index: {}]
  %s2 = inlined_call_operand.vmem [shape: f32[1,128], index: 2, kind: input, shape index: {}]
  %s3 = inlined_call_operand.vmem [shape: bf16[128,128], index: 3, kind: input, shape index: {}]
  %s4 = inlined_call_operand.vmem [shape: bf16[512,128], index: 4, kind: output, shape index: {0}]
  %s5 = inlined_call_operand.vmem [shape: f32[32,128], index: 5, kind: output, shape index: {1}]
  %s6 = inlined_call_operand.vmem [shape: f32[32,128], index: 6, kind: output, shape index: {2}]
  %7 = xla_tuple %s4, %s5, %s6
  %s8 = sld [smem:[#allocation0]]
  $region65: #{_lambda_.6} parent=0
    _
  %s10 = ssub.s32 1, %s8
  %s11 = scalar_select 0, %s10, %s8
  loop: start=0, step=1, limit=6
  $region2: #{_lambda_.6} parent=0 // loop_pre_header
    _
  $region3: #{_lambda_.6} parent=0 // loop_header
    %s13 = sphi 0, %s17
    %p14 = scmp.ge.s32.totalorder %s13, 6
    %s23 = sphi 0, %s25
    %s26 = sphi 0, %s23
    %s27 = sphi 0, %s26
    %s43 = sphi 0, %s27
    %s47 = sphi 0, %s47
    %s49 = sphi 0, %s47
    %s50 = sphi 0, %s49
    %s64 = sphi 0, %s50
    %s68 = sphi 0, %s68
    %s70 = sphi 0, %s68
    %s71 = sphi 0, %s70
    %s85 = sphi 0, %s71
    %s89 = sphi 0, %s89
    %s91 = sphi 0, %s89
    %s92 = sphi 0, %s91
    %s106 = sphi 0, %s92
    %s112 = sphi 0, %s114
    %s115 = sphi 0, %s112
    %s116 = sphi 0, %s115
    %s132 = sphi 0, %s116
    %s138 = sphi 0, %s140
    %s141 = sphi 0, %s138
    %s142 = sphi 0, %s141
    %s158 = sphi 0, %s142
    %s164 = sphi 0, %s166
    %s167 = sphi 0, %s164
    %s168 = sphi 0, %s167
    %s184 = sphi 0, %s168
  $region4: #{_lambda_.6} parent=0 // loop_header_branch
    %16 = sbr.rel (%p14) target = $region8
  $region5: #{_lambda_.6} parent=0 // loop_body
    %s18 = ssub.s32 %s13, 1
    %s19 = ssub.s32 %s13, 2
    %s20 = sadd.s32 %s13, 1
    %s21 = ssub.s32 %s13, %s20
    %p22 = scmp.eq.s32.totalorder %s21, 0
    %s24 = sadd.s32 %s23, 1
    %s25 = scalar_select %p22, %s23, %s24
    %p28 = pneg %p22
    %p29 = scmp.eq.s32.totalorder %s13, 3
    %p30 = por %p28, %p29
    %p31 = scmp.ne.s32.totalorder %s23, %s26
    %p32 = scmp.eq.s32.totalorder %s13, 0
    %p33 = por %p31, %p32
    %p34 = scmp.ne.s32.totalorder %s23, %s26
    %p35 = scmp.eq.s32.totalorder %s18, 3
    %p36 = por %p34, %p35
    %p37 = scmp.ne.s32.totalorder %s26, %s27
    %p38 = scmp.eq.s32.totalorder %s18, 0
    %p39 = por %p37, %p38
    %p40 = scmp.ne.s32.totalorder %s26, %s27
    %p41 = scmp.eq.s32.totalorder %s19, 3
    %p42 = por %p40, %p41
    %p44 = scmp.ne.s32.totalorder %s27, %s43
    %p45 = scmp.eq.s32.totalorder %s19, 0
    %p46 = por %p44, %p45
    %s48 = sadd.s32 %s47, 1
    %p51 = scmp.eq.s32.totalorder %s13, 3
    %p52 = scmp.ne.s32.totalorder %s47, %s49
    %p53 = scmp.eq.s32.totalorder %s13, 0
    %p54 = por %p52, %p53
    %p55 = scmp.ne.s32.totalorder %s47, %s49
    %p56 = scmp.eq.s32.totalorder %s18, 3
    %p57 = por %p55, %p56
    %p58 = scmp.ne.s32.totalorder %s49, %s50
    %p59 = scmp.eq.s32.totalorder %s18, 0
    %p60 = por %p58, %p59
    %p61 = scmp.ne.s32.totalorder %s49, %s50
    %p62 = scmp.eq.s32.totalorder %s19, 3
    %p63 = por %p61, %p62
    %p65 = scmp.ne.s32.totalorder %s50, %s64
    %p66 = scmp.eq.s32.totalorder %s19, 0
    %p67 = por %p65, %p66
    %s69 = sadd.s32 %s68, 1
    %p72 = scmp.eq.s32.totalorder %s13, 3
    %p73 = scmp.ne.s32.totalorder %s68, %s70
    %p74 = scmp.eq.s32.totalorder %s13, 0
    %p75 = por %p73, %p74
    %p76 = scmp.ne.s32.totalorder %s68, %s70
    %p77 = scmp.eq.s32.totalorder %s18, 3
    %p78 = por %p76, %p77
    %p79 = scmp.ne.s32.totalorder %s70, %s71
    %p80 = scmp.eq.s32.totalorder %s18, 0
    %p81 = por %p79, %p80
    %p82 = scmp.ne.s32.totalorder %s70, %s71
    %p83 = scmp.eq.s32.totalorder %s19, 3
    %p84 = por %p82, %p83
    %p86 = scmp.ne.s32.totalorder %s71, %s85
    %p87 = scmp.eq.s32.totalorder %s19, 0
    %p88 = por %p86, %p87
    %s90 = sadd.s32 %s89, 1
    %p93 = scmp.eq.s32.totalorder %s13, 3
    %p94 = scmp.ne.s32.totalorder %s89, %s91
    %p95 = scmp.eq.s32.totalorder %s13, 0
    %p96 = por %p94, %p95
    %p97 = scmp.ne.s32.totalorder %s89, %s91
    %p98 = scmp.eq.s32.totalorder %s18, 3
    %p99 = por %p97, %p98
    %p100 = scmp.ne.s32.totalorder %s91, %s92
    %p101 = scmp.eq.s32.totalorder %s18, 0
    %p102 = por %p100, %p101
    %p103 = scmp.ne.s32.totalorder %s91, %s92
    %p104 = scmp.eq.s32.totalorder %s19, 3
    %p105 = por %p103, %p104
    %p107 = scmp.ne.s32.totalorder %s92, %s106
    %p108 = scmp.eq.s32.totalorder %s19, 0
    %p109 = por %p107, %p108
    %s110 = ssub.s32 %s13, %s20
    %p111 = scmp.eq.s32.totalorder %s110, 0
    %s113 = sadd.s32 %s112, 1
    %s114 = scalar_select %p111, %s112, %s113
    %p117 = pneg %p111
    %p118 = scmp.eq.s32.totalorder %s13, 3
    %p119 = por %p117, %p118
    %p120 = scmp.ne.s32.totalorder %s112, %s115
    %p121 = scmp.eq.s32.totalorder %s13, 0
    %p122 = por %p120, %p121
    %p123 = scmp.ne.s32.totalorder %s112, %s115
    %p124 = scmp.eq.s32.totalorder %s18, 3
    %p125 = por %p123, %p124
    %p126 = scmp.ne.s32.totalorder %s115, %s116
    %p127 = scmp.eq.s32.totalorder %s18, 0
    %p128 = por %p126, %p127
    %p129 = scmp.ne.s32.totalorder %s115, %s116
    %p130 = scmp.eq.s32.totalorder %s19, 3
    %p131 = por %p129, %p130
    %p133 = scmp.ne.s32.totalorder %s116, %s132
    %p134 = scmp.eq.s32.totalorder %s19, 0
    %p135 = por %p133, %p134
    %s136 = ssub.s32 %s13, %s20
    %p137 = scmp.eq.s32.totalorder %s136, 0
    %s139 = sadd.s32 %s138, 1
    %s140 = scalar_select %p137, %s138, %s139
    %p143 = pneg %p137
    %p144 = scmp.eq.s32.totalorder %s13, 3
    %p145 = por %p143, %p144
    %p146 = scmp.ne.s32.totalorder %s138, %s141
    %p147 = scmp.eq.s32.totalorder %s13, 0
    %p148 = por %p146, %p147
    %p149 = scmp.ne.s32.totalorder %s138, %s141
    %p150 = scmp.eq.s32.totalorder %s18, 3
    %p151 = por %p149, %p150
    %p152 = scmp.ne.s32.totalorder %s141, %s142
    %p153 = scmp.eq.s32.totalorder %s18, 0
    %p154 = por %p152, %p153
    %p155 = scmp.ne.s32.totalorder %s141, %s142
    %p156 = scmp.eq.s32.totalorder %s19, 3
    %p157 = por %p155, %p156
    %p159 = scmp.ne.s32.totalorder %s142, %s158
    %p160 = scmp.eq.s32.totalorder %s19, 0
    %p161 = por %p159, %p160
    %s162 = ssub.s32 %s13, %s20
    %p163 = scmp.eq.s32.totalorder %s162, 0
    %s165 = sadd.s32 %s164, 1
    %s166 = scalar_select %p163, %s164, %s165
    %p169 = pneg %p163
    %p170 = scmp.eq.s32.totalorder %s13, 3
    %p171 = por %p169, %p170
    %p172 = scmp.ne.s32.totalorder %s164, %s167
    %p173 = scmp.eq.s32.totalorder %s13, 0
    %p174 = por %p172, %p173
    %p175 = scmp.ne.s32.totalorder %s164, %s167
    %p176 = scmp.eq.s32.totalorder %s18, 3
    %p177 = por %p175, %p176
    %p178 = scmp.ne.s32.totalorder %s167, %s168
    %p179 = scmp.eq.s32.totalorder %s18, 0
    %p180 = por %p178, %p179
    %p181 = scmp.ne.s32.totalorder %s167, %s168
    %p182 = scmp.eq.s32.totalorder %s19, 3
    %p183 = por %p181, %p182
    %p185 = scmp.ne.s32.totalorder %s168, %s184
    %p186 = scmp.eq.s32.totalorder %s19, 0
    %p187 = por %p185, %p186
    %p188 = scmp.le.s32.totalorder 1, %s13
    %p189 = scmp.lt.s32.totalorder %s13, 5
    %p190 = pnand %p188, %p189
    %p191 = pneg %p190
    // Predicated region
    $region9: #{_lambda_.6} parent=5 // pred_check
      _
    $region10: #{_lambda_.6} parent=5 // pred_check_branch
      %193 = sbr.rel (%p190) target = $region12
    $region11: #{_lambda_.6} parent=5 // pred_region
      %s194 = ssub.s32 %s13, 1
      // Predicated region
      $region13: #{_lambda_.6} parent=11 // pred_check
        %p195 = pneg %p60
      $region14: #{_lambda_.6} parent=11 // pred_check_branch
        %197 = sbr.rel (%p195) target = $region16
      $region15: #{_lambda_.6} parent=11 // pred_region
        _
      $region16: #{_lambda_.6} parent=11 // pred_fallthru
        _
      // Predicated region
      $region17: #{_lambda_.6} parent=11 // pred_check
        %p198 = pneg %p81
      $region18: #{_lambda_.6} parent=11 // pred_check_branch
        %200 = sbr.rel (%p198) target = $region20
      $region19: #{_lambda_.6} parent=11 // pred_region
        _
      $region20: #{_lambda_.6} parent=11 // pred_fallthru
        _
      // Predicated region
      $region21: #{_lambda_.6} parent=11 // pred_check
        %p201 = pneg %p102
      $region22: #{_lambda_.6} parent=11 // pred_check_branch
        %203 = sbr.rel (%p201) target = $region24
      $region23: #{_lambda_.6} parent=11 // pred_region
        _
      $region24: #{_lambda_.6} parent=11 // pred_fallthru
        _
    $region12: #{_lambda_.6} parent=5 // pred_fallthru
      _
    %p204 = scmp.lt.s32.totalorder %s13, 4
    // Predicated region
    $region25: #{_lambda_.6} parent=5 // pred_check
      %p205 = pneg %p204
    $region26: #{_lambda_.6} parent=5 // pred_check_branch
      %207 = sbr.rel (%p205) target = $region28
    $region27: #{_lambda_.6} parent=5 // pred_region
      // Predicated region
      $region29: #{_lambda_.6} parent=27 // pred_check
        %p208 = pneg %p33
      $region30: #{_lambda_.6} parent=27 // pred_check_branch
        %210 = sbr.rel (%p208) target = $region32
      $region31: #{_lambda_.6} parent=27 // pred_region
        %s211 = smul.u32 16, %s13
        %p212 = scmp.lt.s32.totalorder %s211, 63
        %s213 = scalar_select %p212, %s211, 63
        %s214 = smul.addr %s213, 4
        %s215 = scalar_lea.vmem %s0, %s214
        %s216 = smul.u32 16, %s13
      $region32: #{_lambda_.6} parent=27 // pred_fallthru
        _
    $region28: #{_lambda_.6} parent=5 // pred_fallthru
      _
    %p217 = scmp.le.s32.totalorder 1, %s13
    %p218 = scmp.lt.s32.totalorder %s13, 5
    %p219 = pnand %p217, %p218
    %p220 = pneg %p219
    // Predicated region
    $region33: #{_lambda_.6} parent=5 // pred_check
      _
    $region34: #{_lambda_.6} parent=5 // pred_check_branch
      %222 = sbr.rel (%p219) target = $region36
    $region35: #{_lambda_.6} parent=5 // pred_region
      %s223 = ssub.s32 %s13, 1
      %s224 = smul.u32 16, %s18
      %p225 = scmp.lt.s32.totalorder %s224, 63
      %s226 = scalar_select %p225, %s224, 63
      %s227 = smul.addr %s226, 4
      %s228 = scalar_lea.vmem %s0, %s227
      %p229 = pneg %p39
      %p230 = pneg %p36
      %p231 = pneg %p60
      %p232 = pneg %p57
      %p233 = pneg %p81
      %p234 = pneg %p78
      %p235 = pneg %p102
      %p236 = pneg %p99
      %p237 = pneg %p128
      %p238 = pneg %p125
      %s239 = smul.u32 16, %s18
      %p240 = scmp.lt.s32.totalorder %s239, 63
      %s241 = scalar_select %p240, %s239, 63
      %s242 = smul.addr %s241, 4
      %s243 = scalar_lea.vmem %s4, %s242
      %p244 = pneg %p154
      %p245 = pneg %p151
      %p246 = scmp.lt.s32.totalorder %s18, 3
      %s247 = scalar_select %p246, %s18, 3
      %s248 = smul.addr %s247, 8
      %s249 = scalar_lea.vmem %s5, %s248
      %p250 = pneg %p180
      %p251 = pneg %p177
      %p252 = scmp.lt.s32.totalorder %s18, 3
      %s253 = scalar_select %p252, %s18, 3
      %s254 = smul.addr %s253, 8
      %s255 = scalar_lea.vmem %s6, %s254
      %s256 = smul.u32 16, %s18
      %p257 = scmp.lt.s32.totalorder %s256, 63
      %s258 = scalar_select %p257, %s256, 63
      %s259 = smul.addr %s258, 4
      %s260 = scalar_lea.vmem %s0, %s259
      %s261 = smul.u32 16, %s18
      %s262 = smul.u32 16, %s18
      %p263 = scmp.lt.s32.totalorder %s262, 63
      %s264 = scalar_select %p263, %s262, 63
      %s265 = smul.addr %s264, 4
      %s266 = scalar_lea.vmem %s4, %s265
      %s267 = smul.u32 16, %s18
      %p268 = scmp.lt.s32.totalorder %s18, 3
      %s269 = scalar_select %p268, %s18, 3
      %s270 = smul.addr %s269, 8
      %s271 = scalar_lea.vmem %s5, %s270
      %p272 = scmp.lt.s32.totalorder %s18, 3
      %s273 = scalar_select %p272, %s18, 3
      %s274 = smul.addr %s273, 8
      %s275 = scalar_lea.vmem %s6, %s274
      %v276 = vld [vmem:[%s260] sm:$0xf]
      %v277 = vld [vmem:[%s260 + $0x4] sm:$0xf]
      %v278 = vld [vmem:[%s260 + $0x8] sm:$0xf]
      %v279 = vld [vmem:[%s260 + $0xc] sm:$0xf]
      %v280 = vld [vmem:[%s260 + $0x10] sm:$0xf]
      %v281 = vld [vmem:[%s260 + $0x14] sm:$0xf]
      %v282 = vld [vmem:[%s260 + $0x18] sm:$0xf]
      %v283 = vld [vmem:[%s260 + $0x1c] sm:$0xf]
      %v284 = vld [vmem:[%s260 + $0x20] sm:$0xf]
      %v285 = vld [vmem:[%s260 + $0x24] sm:$0xf]
      %v286 = vld [vmem:[%s260 + $0x28] sm:$0xf]
      %v287 = vld [vmem:[%s260 + $0x2c] sm:$0xf]
      %v288 = vld [vmem:[%s260 + $0x30] sm:$0xf]
      %v289 = vld [vmem:[%s260 + $0x34] sm:$0xf]
      %v290 = vld [vmem:[%s260 + $0x38] sm:$0xf]
      %v291 = vld [vmem:[%s260 + $0x3c] sm:$0xf]
      %v292 = vunpack.c.l.bf16 %v276
      %v293 = vunpack.c.l.bf16 %v277
      %v294 = vunpack.c.l.bf16 %v278
      %v295 = vunpack.c.l.bf16 %v279
      %v296 = vunpack.c.l.bf16 %v280
      %v297 = vunpack.c.l.bf16 %v281
      %v298 = vunpack.c.l.bf16 %v282
      %v299 = vunpack.c.l.bf16 %v283
      %v300 = vunpack.c.l.bf16 %v284
      %v301 = vunpack.c.l.bf16 %v285
      %v302 = vunpack.c.l.bf16 %v286
      %v303 = vunpack.c.l.bf16 %v287
      %v304 = vunpack.c.l.bf16 %v288
      %v305 = vunpack.c.l.bf16 %v289
      %v306 = vunpack.c.l.bf16 %v290
      %v307 = vunpack.c.l.bf16 %v291
      %v308 = vld [vmem:[%s1] sm:$0x1]
      %v310 = vperm.slane %v308, 0
      %v312 = vmul.f32 %v292, %v310
      %v313 = vmul.f32 %v293, %v310
      %v314 = vmul.f32 %v294, %v310
      %v315 = vmul.f32 %v295, %v310
      %v316 = vmul.f32 %v296, %v310
      %v317 = vmul.f32 %v297, %v310
      %v318 = vmul.f32 %v298, %v310
      %v319 = vmul.f32 %v299, %v310
      %v320 = vmul.f32 %v300, %v310
      %v321 = vmul.f32 %v301, %v310
      %v322 = vmul.f32 %v302, %v310
      %v323 = vmul.f32 %v303, %v310
      %v324 = vmul.f32 %v304, %v310
      %v325 = vmul.f32 %v305, %v310
      %v326 = vmul.f32 %v306, %v310
      %v327 = vmul.f32 %v307, %v310
      %v328 = vld [vmem:[%s2] sm:$0x1]
      %v330 = vperm.slane %v328, 0
      %v332 = vadd.f32 %v312, %v330
      %v333 = vadd.f32 %v313, %v330
      %v334 = vadd.f32 %v314, %v330
      %v335 = vadd.f32 %v315, %v330
      %v336 = vadd.f32 %v316, %v330
      %v337 = vadd.f32 %v317, %v330
      %v338 = vadd.f32 %v318, %v330
      %v339 = vadd.f32 %v319, %v330
      %v340 = vadd.f32 %v320, %v330
      %v341 = vadd.f32 %v321, %v330
      %v342 = vadd.f32 %v322, %v330
      %v343 = vadd.f32 %v323, %v330
      %v344 = vadd.f32 %v324, %v330
      %v345 = vadd.f32 %v325, %v330
      %v346 = vadd.f32 %v326, %v330
      %v347 = vadd.f32 %v327, %v330
      %v348 = vmax.f32 %v332, 0.0
      %v349 = vmax.f32 %v333, 0.0
      %v350 = vmax.f32 %v334, 0.0
      %v351 = vmax.f32 %v335, 0.0
      %v352 = vmax.f32 %v336, 0.0
      %v353 = vmax.f32 %v337, 0.0
      %v354 = vmax.f32 %v338, 0.0
      %v355 = vmax.f32 %v339, 0.0
      %v356 = vmax.f32 %v340, 0.0
      %v357 = vmax.f32 %v341, 0.0
      %v358 = vmax.f32 %v342, 0.0
      %v359 = vmax.f32 %v343, 0.0
      %v360 = vmax.f32 %v344, 0.0
      %v361 = vmax.f32 %v345, 0.0
      %v362 = vmax.f32 %v346, 0.0
      %v363 = vmax.f32 %v347, 0.0
      %v364 = vpack.c.bf16 %v349, %v348
      %v365 = vpack.c.bf16 %v351, %v350
      %v366 = vpack.c.bf16 %v353, %v352
      %v367 = vpack.c.bf16 %v355, %v354
      %v368 = vpack.c.bf16 %v357, %v356
      %v369 = vpack.c.bf16 %v359, %v358
      %v370 = vpack.c.bf16 %v361, %v360
      %v371 = vpack.c.bf16 %v363, %v362
      %v372 = vld [vmem:[%s3] sm:$0xf]
      %v373 = vld [vmem:[%s3 + $0x4] sm:$0xf]
      %v374 = vld [vmem:[%s3 + $0x8] sm:$0xf]
      %v375 = vld [vmem:[%s3 + $0xc] sm:$0xf]
      %v376 = vld [vmem:[%s3 + $0x10] sm:$0xf]
      %v377 = vld [vmem:[%s3 + $0x14] sm:$0xf]
      %v378 = vld [vmem:[%s3 + $0x18] sm:$0xf]
      %v379 = vld [vmem:[%s3 + $0x1c] sm:$0xf]
      %v380 = vld [vmem:[%s3 + $0x20] sm:$0xf]
      %v381 = vld [vmem:[%s3 + $0x24] sm:$0xf]
      %v382 = vld [vmem:[%s3 + $0x28] sm:$0xf]
      %v383 = vld [vmem:[%s3 + $0x2c] sm:$0xf]
      %v384 = vld [vmem:[%s3 + $0x30] sm:$0xf]
      %v385 = vld [vmem:[%s3 + $0x34] sm:$0xf]
      %v386 = vld [vmem:[%s3 + $0x38] sm:$0xf]
      %v387 = vld [vmem:[%s3 + $0x3c] sm:$0xf]
      %v404 = vunpack.c.l.b16 %v372
      %v405 = vunpack.c.l.b16 %v373
      %v406 = vunpack.c.l.b16 %v374
      %v407 = vunpack.c.l.b16 %v375
      %v408 = vunpack.c.l.b16 %v376
      %v409 = vunpack.c.l.b16 %v377
      %v410 = vunpack.c.l.b16 %v378
      %v411 = vunpack.c.l.b16 %v379
      %v412 = vunpack.c.l.b16 %v380
      %v413 = vunpack.c.l.b16 %v381
      %v414 = vunpack.c.l.b16 %v382
      %v415 = vunpack.c.l.b16 %v383
      %v416 = vunpack.c.l.b16 %v384
      %v417 = vunpack.c.l.b16 %v385
      %v418 = vunpack.c.l.b16 %v386
      %v419 = vunpack.c.l.b16 %v387
      %v420 = vpack.c.b16 %v405, %v404
      %v421 = vpack.c.b16 %v407, %v406
      %v422 = vpack.c.b16 %v409, %v408
      %v423 = vpack.c.b16 %v411, %v410
      %v424 = vpack.c.b16 %v413, %v412
      %v425 = vpack.c.b16 %v415, %v414
      %v426 = vpack.c.b16 %v417, %v416
      %v427 = vpack.c.b16 %v419, %v418
      %436 = vmatpush.bf16.msra.mxu0 %v427
      %437 = vmatpush.bf16.msra.mxu0 %v426
      %438 = vmatpush.bf16.msra.mxu0 %v425
      %439 = vmatpush.bf16.msra.mxu0 %v424
      %440 = vmatpush.bf16.msra.mxu0 %v423
      %441 = vmatpush.bf16.msra.mxu0 %v422
      %442 = vmatpush.bf16.msra.mxu0 %v421
      %443 = vmatpush.bf16.msra.mxu0 %v420
      %444 = vmatmul.bf16.gmra.mxu0 %v364
      %v445 = vpop.f32.mrf.mxu0
      %v446 = vadd.f32 0.0, %v445
      %v447 = vpop.f32.mrf.mxu0
      %v448 = vadd.f32 0.0, %v447
      %449 = vmatmul.bf16.gmra.mxu0 %v365
      %v450 = vpop.f32.mrf.mxu0
      %v451 = vadd.f32 0.0, %v450
      %v452 = vpop.f32.mrf.mxu0
      %v453 = vadd.f32 0.0, %v452
      %454 = vmatmul.bf16.gmra.mxu0 %v366
      %v455 = vpop.f32.mrf.mxu0
      %v456 = vadd.f32 0.0, %v455
      %v457 = vpop.f32.mrf.mxu0
      %v458 = vadd.f32 0.0, %v457
      %459 = vmatmul.bf16.gmra.mxu0 %v367
      %v460 = vpop.f32.mrf.mxu0
      %v461 = vadd.f32 0.0, %v460
      %v462 = vpop.f32.mrf.mxu0
      %v463 = vadd.f32 0.0, %v462
      %464 = vmatmul.bf16.gmra.mxu0 %v368
      %v465 = vpop.f32.mrf.mxu0
      %v466 = vadd.f32 0.0, %v465
      %v467 = vpop.f32.mrf.mxu0
      %v468 = vadd.f32 0.0, %v467
      %469 = vmatmul.bf16.gmra.mxu0 %v369
      %v470 = vpop.f32.mrf.mxu0
      %v471 = vadd.f32 0.0, %v470
      %v472 = vpop.f32.mrf.mxu0
      %v473 = vadd.f32 0.0, %v472
      %474 = vmatmul.bf16.gmra.mxu0 %v370
      %v475 = vpop.f32.mrf.mxu0
      %v476 = vadd.f32 0.0, %v475
      %v477 = vpop.f32.mrf.mxu0
      %v478 = vadd.f32 0.0, %v477
      %479 = vmatmul.bf16.gmra.mxu0 %v371
      %v480 = vpop.f32.mrf.mxu0
      %v481 = vadd.f32 0.0, %v480
      %v482 = vpop.f32.mrf.mxu0
      %v483 = vadd.f32 0.0, %v482
      %484 = vdwg.mxu0
      %v485 = vpack.c.bf16 %v446, %v446
      %v486 = vpack.c.bf16 %v448, %v448
      %v487 = vpack.c.bf16 %v451, %v451
      %v488 = vpack.c.bf16 %v453, %v453
      %v489 = vpack.c.bf16 %v456, %v456
      %v490 = vpack.c.bf16 %v458, %v458
      %v491 = vpack.c.bf16 %v461, %v461
      %v492 = vpack.c.bf16 %v463, %v463
      %v493 = vpack.c.bf16 %v466, %v466
      %v494 = vpack.c.bf16 %v468, %v468
      %v495 = vpack.c.bf16 %v471, %v471
      %v496 = vpack.c.bf16 %v473, %v473
      %v497 = vpack.c.bf16 %v476, %v476
      %v498 = vpack.c.bf16 %v478, %v478
      %v499 = vpack.c.bf16 %v481, %v481
      %v500 = vpack.c.bf16 %v483, %v483
      %501 = vst [vmem:[%s266] sm:$0xf] %v485
      %502 = vst [vmem:[%s266 + $0x4] sm:$0xf] %v486
      %503 = vst [vmem:[%s266 + $0x8] sm:$0xf] %v487
      %504 = vst [vmem:[%s266 + $0xc] sm:$0xf] %v488
      %505 = vst [vmem:[%s266 + $0x10] sm:$0xf] %v489
      %506 = vst [vmem:[%s266 + $0x14] sm:$0xf] %v490
      %507 = vst [vmem:[%s266 + $0x18] sm:$0xf] %v491
      %508 = vst [vmem:[%s266 + $0x1c] sm:$0xf] %v492
      %509 = vst [vmem:[%s266 + $0x20] sm:$0xf] %v493
      %510 = vst [vmem:[%s266 + $0x24] sm:$0xf] %v494
      %511 = vst [vmem:[%s266 + $0x28] sm:$0xf] %v495
      %512 = vst [vmem:[%s266 + $0x2c] sm:$0xf] %v496
      %513 = vst [vmem:[%s266 + $0x30] sm:$0xf] %v497
      %514 = vst [vmem:[%s266 + $0x34] sm:$0xf] %v498
      %515 = vst [vmem:[%s266 + $0x38] sm:$0xf] %v499
      %516 = vst [vmem:[%s266 + $0x3c] sm:$0xf] %v500
      %v517 = vadd.f32 %v446, %v448
      %v518 = vadd.f32 %v517, %v451
      %v519 = vadd.f32 %v518, %v453
      %v520 = vadd.f32 %v519, %v456
      %v521 = vadd.f32 %v520, %v458
      %v522 = vadd.f32 %v521, %v461
      %v523 = vadd.f32 %v522, %v463
      %v524 = vadd.f32 %v523, %v466
      %v525 = vadd.f32 %v524, %v468
      %v526 = vadd.f32 %v525, %v471
      %v527 = vadd.f32 %v526, %v473
      %v528 = vadd.f32 %v527, %v476
      %v529 = vadd.f32 %v528, %v478
      %v530 = vadd.f32 %v529, %v481
      %v531 = vadd.f32 %v530, %v483
      %v532 = vrot.slane %v531, 4
      %v533 = vadd.f32 %v531, %v532
      %v534 = vrot.slane %v533, 2
      %v535 = vadd.f32 %v533, %v534
      %v536 = vrot.slane %v535, 1
      %v537 = vadd.f32 %v535, %v536
      %538 = vst [vmem:[%s271] sm:$0xff] %v537
      %v539 = vmul.f32 %v446, %v446
      %v540 = vmul.f32 %v448, %v448
      %v541 = vmul.f32 %v451, %v451
      %v542 = vmul.f32 %v453, %v453
      %v543 = vmul.f32 %v456, %v456
      %v544 = vmul.f32 %v458, %v458
      %v545 = vmul.f32 %v461, %v461
      %v546 = vmul.f32 %v463, %v463
      %v547 = vmul.f32 %v466, %v466
      %v548 = vmul.f32 %v468, %v468
      %v549 = vmul.f32 %v471, %v471
      %v550 = vmul.f32 %v473, %v473
      %v551 = vmul.f32 %v476, %v476
      %v552 = vmul.f32 %v478, %v478
      %v553 = vmul.f32 %v481, %v481
      %v554 = vmul.f32 %v483, %v483
      %v555 = vadd.f32 %v539, %v540
      %v556 = vadd.f32 %v555, %v541
      %v557 = vadd.f32 %v556, %v542
      %v558 = vadd.f32 %v557, %v543
      %v559 = vadd.f32 %v558, %v544
      %v560 = vadd.f32 %v559, %v545
      %v561 = vadd.f32 %v560, %v546
      %v562 = vadd.f32 %v561, %v547
      %v563 = vadd.f32 %v562, %v548
      %v564 = vadd.f32 %v563, %v549
      %v565 = vadd.f32 %v564, %v550
      %v566 = vadd.f32 %v565, %v551
      %v567 = vadd.f32 %v566, %v552
      %v568 = vadd.f32 %v567, %v553
      %v569 = vadd.f32 %v568, %v554
      %v570 = vrot.slane %v569, 4
      %v571 = vadd.f32 %v569, %v570
      %v572 = vrot.slane %v571, 2
      %v573 = vadd.f32 %v571, %v572
      %v574 = vrot.slane %v573, 1
      %v575 = vadd.f32 %v573, %v574
      %576 = vst [vmem:[%s275] sm:$0xff] %v575
      %s577 = smul.u32 16, %s18
      %p578 = scmp.lt.s32.totalorder %s577, 63
      %s579 = scalar_select %p578, %s577, 63
      %s580 = smul.addr %s579, 4
      %s581 = scalar_lea.vmem %s4, %s580
      %p582 = scmp.lt.s32.totalorder %s18, 3
      %s583 = scalar_select %p582, %s18, 3
      %s584 = smul.addr %s583, 8
      %s585 = scalar_lea.vmem %s5, %s584
      %p586 = scmp.lt.s32.totalorder %s18, 3
      %s587 = scalar_select %p586, %s18, 3
      %s588 = smul.addr %s587, 8
      %s589 = scalar_lea.vmem %s6, %s588
      // Predicated region
      $region37: #{_lambda_.6} parent=35 // pred_check
        %p590 = pneg %p125
      $region38: #{_lambda_.6} parent=35 // pred_check_branch
        %592 = sbr.rel (%p590) target = $region40
      $region39: #{_lambda_.6} parent=35 // pred_region
        %s593 = smul.u32 16, %s18
      $region40: #{_lambda_.6} parent=35 // pred_fallthru
        _
      // Predicated region
      $region41: #{_lambda_.6} parent=35 // pred_check
        %p594 = pneg %p151
      $region42: #{_lambda_.6} parent=35 // pred_check_branch
        %596 = sbr.rel (%p594) target = $region44
      $region43: #{_lambda_.6} parent=35 // pred_region
        _
      $region44: #{_lambda_.6} parent=35 // pred_fallthru
        _
      // Predicated region
      $region45: #{_lambda_.6} parent=35 // pred_check
        %p597 = pneg %p177
      $region46: #{_lambda_.6} parent=35 // pred_check_branch
        %599 = sbr.rel (%p597) target = $region48
      $region47: #{_lambda_.6} parent=35 // pred_region
        _
      $region48: #{_lambda_.6} parent=35 // pred_fallthru
        _
    $region36: #{_lambda_.6} parent=5 // pred_fallthru
      _
    %p600 = scmp.le.s32.totalorder 2, %s13
    // Predicated region
    $region49: #{_lambda_.6} parent=5 // pred_check
      %p601 = pneg %p600
    $region50: #{_lambda_.6} parent=5 // pred_check_branch
      %603 = sbr.rel (%p601) target = $region52
    $region51: #{_lambda_.6} parent=5 // pred_region
      %s604 = ssub.s32 %s13, 2
      // Predicated region
      $region53: #{_lambda_.6} parent=51 // pred_check
        %p605 = pneg %p131
      $region54: #{_lambda_.6} parent=51 // pred_check_branch
        %607 = sbr.rel (%p605) target = $region56
      $region55: #{_lambda_.6} parent=51 // pred_region
        %s608 = smul.u32 16, %s19
        %p609 = scmp.lt.s32.totalorder %s608, 63
        %s610 = scalar_select %p609, %s608, 63
        %s611 = smul.addr %s610, 4
        %s612 = scalar_lea.vmem %s4, %s611
      $region56: #{_lambda_.6} parent=51 // pred_fallthru
        _
      // Predicated region
      $region57: #{_lambda_.6} parent=51 // pred_check
        %p613 = pneg %p157
      $region58: #{_lambda_.6} parent=51 // pred_check_branch
        %615 = sbr.rel (%p613) target = $region60
      $region59: #{_lambda_.6} parent=51 // pred_region
        %p616 = scmp.lt.s32.totalorder %s19, 3
        %s617 = scalar_select %p616, %s19, 3
        %s618 = smul.addr %s617, 8
        %s619 = scalar_lea.vmem %s5, %s618
      $region60: #{_lambda_.6} parent=51 // pred_fallthru
        _
      // Predicated region
      $region61: #{_lambda_.6} parent=51 // pred_check
        %p620 = pneg %p183
      $region62: #{_lambda_.6} parent=51 // pred_check_branch
        %622 = sbr.rel (%p620) target = $region64
      $region63: #{_lambda_.6} parent=51 // pred_region
        %p623 = scmp.lt.s32.totalorder %s19, 3
        %s624 = scalar_select %p623, %s19, 3
        %s625 = smul.addr %s624, 8
        %s626 = scalar_lea.vmem %s6, %s625
      $region64: #{_lambda_.6} parent=51 // pred_fallthru
        _
    $region52: #{_lambda_.6} parent=5 // pred_fallthru
      _
  $region6: #{_lambda_.6} parent=0 // loop_footer
    %s17 = sadd.s32 1, %s13
  $region7: #{_lambda_.6} parent=0 // loop_footer_branch
    %12 = sbr.rel target = $region3
  $region8: #{_lambda_.6} parent=0 // loop_exit
    _

// kernel: _lambda_.7
$region0: #{_lambda_.7}
  #allocation0 [shape = 'u32[]', space=smem, size = 0x4, offset = 0x4, fixed_abs, tag = 'smem constant byte address 0x4 - core index']
  #allocation1 [shape = 'u32[72,128]{1,0:T(1,128)}', space=vmem, size = 0x9000, scoped, tag = 'internal scratch']
  %s0 = inlined_call_operand.vmem [shape: bf16[512,128], index: 0, kind: input, shape index: {}]
  %s1 = inlined_call_operand.vmem [shape: f32[1,128], index: 1, kind: input, shape index: {}]
  %s2 = inlined_call_operand.vmem [shape: f32[1,128], index: 2, kind: input, shape index: {}]
  %s3 = inlined_call_operand.vmem [shape: f32[512,128], index: 3, kind: input, shape index: {}]
  %s4 = inlined_call_operand.vmem [shape: f32[512,128], index: 4, kind: output, shape index: {}]
  %s5 = sld [smem:[#allocation0]]
  $region49: #{_lambda_.7} parent=0
    _
  %s7 = ssub.s32 1, %s5
  %s8 = scalar_select 0, %s7, %s5
  loop: start=0, step=1, limit=6
  $region2: #{_lambda_.7} parent=0 // loop_pre_header
    _
  $region3: #{_lambda_.7} parent=0 // loop_header
    %s10 = sphi 0, %s14
    %p11 = scmp.ge.s32.totalorder %s10, 6
    %s20 = sphi 0, %s22
    %s23 = sphi 0, %s20
    %s24 = sphi 0, %s23
    %s40 = sphi 0, %s24
    %s44 = sphi 0, %s44
    %s46 = sphi 0, %s44
    %s47 = sphi 0, %s46
    %s61 = sphi 0, %s47
    %s65 = sphi 0, %s65
    %s67 = sphi 0, %s65
    %s68 = sphi 0, %s67
    %s82 = sphi 0, %s68
    %s88 = sphi 0, %s90
    %s91 = sphi 0, %s88
    %s92 = sphi 0, %s91
    %s108 = sphi 0, %s92
    %s114 = sphi 0, %s116
    %s117 = sphi 0, %s114
    %s118 = sphi 0, %s117
    %s134 = sphi 0, %s118
  $region4: #{_lambda_.7} parent=0 // loop_header_branch
    %13 = sbr.rel (%p11) target = $region8
  $region5: #{_lambda_.7} parent=0 // loop_body
    %s15 = ssub.s32 %s10, 1
    %s16 = ssub.s32 %s10, 2
    %s17 = sadd.s32 %s10, 1
    %s18 = ssub.s32 %s10, %s17
    %p19 = scmp.eq.s32.totalorder %s18, 0
    %s21 = sadd.s32 %s20, 1
    %s22 = scalar_select %p19, %s20, %s21
    %p25 = pneg %p19
    %p26 = scmp.eq.s32.totalorder %s10, 3
    %p27 = por %p25, %p26
    %p28 = scmp.ne.s32.totalorder %s20, %s23
    %p29 = scmp.eq.s32.totalorder %s10, 0
    %p30 = por %p28, %p29
    %p31 = scmp.ne.s32.totalorder %s20, %s23
    %p32 = scmp.eq.s32.totalorder %s15, 3
    %p33 = por %p31, %p32
    %p34 = scmp.ne.s32.totalorder %s23, %s24
    %p35 = scmp.eq.s32.totalorder %s15, 0
    %p36 = por %p34, %p35
    %p37 = scmp.ne.s32.totalorder %s23, %s24
    %p38 = scmp.eq.s32.totalorder %s16, 3
    %p39 = por %p37, %p38
    %p41 = scmp.ne.s32.totalorder %s24, %s40
    %p42 = scmp.eq.s32.totalorder %s16, 0
    %p43 = por %p41, %p42
    %s45 = sadd.s32 %s44, 1
    %p48 = scmp.eq.s32.totalorder %s10, 3
    %p49 = scmp.ne.s32.totalorder %s44, %s46
    %p50 = scmp.eq.s32.totalorder %s10, 0
    %p51 = por %p49, %p50
    %p52 = scmp.ne.s32.totalorder %s44, %s46
    %p53 = scmp.eq.s32.totalorder %s15, 3
    %p54 = por %p52, %p53
    %p55 = scmp.ne.s32.totalorder %s46, %s47
    %p56 = scmp.eq.s32.totalorder %s15, 0
    %p57 = por %p55, %p56
    %p58 = scmp.ne.s32.totalorder %s46, %s47
    %p59 = scmp.eq.s32.totalorder %s16, 3
    %p60 = por %p58, %p59
    %p62 = scmp.ne.s32.totalorder %s47, %s61
    %p63 = scmp.eq.s32.totalorder %s16, 0
    %p64 = por %p62, %p63
    %s66 = sadd.s32 %s65, 1
    %p69 = scmp.eq.s32.totalorder %s10, 3
    %p70 = scmp.ne.s32.totalorder %s65, %s67
    %p71 = scmp.eq.s32.totalorder %s10, 0
    %p72 = por %p70, %p71
    %p73 = scmp.ne.s32.totalorder %s65, %s67
    %p74 = scmp.eq.s32.totalorder %s15, 3
    %p75 = por %p73, %p74
    %p76 = scmp.ne.s32.totalorder %s67, %s68
    %p77 = scmp.eq.s32.totalorder %s15, 0
    %p78 = por %p76, %p77
    %p79 = scmp.ne.s32.totalorder %s67, %s68
    %p80 = scmp.eq.s32.totalorder %s16, 3
    %p81 = por %p79, %p80
    %p83 = scmp.ne.s32.totalorder %s68, %s82
    %p84 = scmp.eq.s32.totalorder %s16, 0
    %p85 = por %p83, %p84
    %s86 = ssub.s32 %s10, %s17
    %p87 = scmp.eq.s32.totalorder %s86, 0
    %s89 = sadd.s32 %s88, 1
    %s90 = scalar_select %p87, %s88, %s89
    %p93 = pneg %p87
    %p94 = scmp.eq.s32.totalorder %s10, 3
    %p95 = por %p93, %p94
    %p96 = scmp.ne.s32.totalorder %s88, %s91
    %p97 = scmp.eq.s32.totalorder %s10, 0
    %p98 = por %p96, %p97
    %p99 = scmp.ne.s32.totalorder %s88, %s91
    %p100 = scmp.eq.s32.totalorder %s15, 3
    %p101 = por %p99, %p100
    %p102 = scmp.ne.s32.totalorder %s91, %s92
    %p103 = scmp.eq.s32.totalorder %s15, 0
    %p104 = por %p102, %p103
    %p105 = scmp.ne.s32.totalorder %s91, %s92
    %p106 = scmp.eq.s32.totalorder %s16, 3
    %p107 = por %p105, %p106
    %p109 = scmp.ne.s32.totalorder %s92, %s108
    %p110 = scmp.eq.s32.totalorder %s16, 0
    %p111 = por %p109, %p110
    %s112 = ssub.s32 %s10, %s17
    %p113 = scmp.eq.s32.totalorder %s112, 0
    %s115 = sadd.s32 %s114, 1
    %s116 = scalar_select %p113, %s114, %s115
    %p119 = pneg %p113
    %p120 = scmp.eq.s32.totalorder %s10, 3
    %p121 = por %p119, %p120
    %p122 = scmp.ne.s32.totalorder %s114, %s117
    %p123 = scmp.eq.s32.totalorder %s10, 0
    %p124 = por %p122, %p123
    %p125 = scmp.ne.s32.totalorder %s114, %s117
    %p126 = scmp.eq.s32.totalorder %s15, 3
    %p127 = por %p125, %p126
    %p128 = scmp.ne.s32.totalorder %s117, %s118
    %p129 = scmp.eq.s32.totalorder %s15, 0
    %p130 = por %p128, %p129
    %p131 = scmp.ne.s32.totalorder %s117, %s118
    %p132 = scmp.eq.s32.totalorder %s16, 3
    %p133 = por %p131, %p132
    %p135 = scmp.ne.s32.totalorder %s118, %s134
    %p136 = scmp.eq.s32.totalorder %s16, 0
    %p137 = por %p135, %p136
    %p138 = scmp.le.s32.totalorder 1, %s10
    %p139 = scmp.lt.s32.totalorder %s10, 5
    %p140 = pnand %p138, %p139
    %p141 = pneg %p140
    // Predicated region
    $region9: #{_lambda_.7} parent=5 // pred_check
      _
    $region10: #{_lambda_.7} parent=5 // pred_check_branch
      %143 = sbr.rel (%p140) target = $region12
    $region11: #{_lambda_.7} parent=5 // pred_region
      %s144 = ssub.s32 %s10, 1
      // Predicated region
      $region13: #{_lambda_.7} parent=11 // pred_check
        %p145 = pneg %p57
      $region14: #{_lambda_.7} parent=11 // pred_check_branch
        %147 = sbr.rel (%p145) target = $region16
      $region15: #{_lambda_.7} parent=11 // pred_region
        _
      $region16: #{_lambda_.7} parent=11 // pred_fallthru
        _
      // Predicated region
      $region17: #{_lambda_.7} parent=11 // pred_check
        %p148 = pneg %p78
      $region18: #{_lambda_.7} parent=11 // pred_check_branch
        %150 = sbr.rel (%p148) target = $region20
      $region19: #{_lambda_.7} parent=11 // pred_region
        _
      $region20: #{_lambda_.7} parent=11 // pred_fallthru
        _
    $region12: #{_lambda_.7} parent=5 // pred_fallthru
      _
    %p151 = scmp.lt.s32.totalorder %s10, 4
    // Predicated region
    $region21: #{_lambda_.7} parent=5 // pred_check
      %p152 = pneg %p151
    $region22: #{_lambda_.7} parent=5 // pred_check_branch
      %154 = sbr.rel (%p152) target = $region24
    $region23: #{_lambda_.7} parent=5 // pred_region
      // Predicated region
      $region25: #{_lambda_.7} parent=23 // pred_check
        %p155 = pneg %p30
      $region26: #{_lambda_.7} parent=23 // pred_check_branch
        %157 = sbr.rel (%p155) target = $region28
      $region27: #{_lambda_.7} parent=23 // pred_region
        %s158 = smul.u32 16, %s10
        %p159 = scmp.lt.s32.totalorder %s158, 63
        %s160 = scalar_select %p159, %s158, 63
        %s161 = smul.addr %s160, 4
        %s162 = scalar_lea.vmem %s0, %s161
        %s163 = smul.u32 16, %s10
      $region28: #{_lambda_.7} parent=23 // pred_fallthru
        _
      // Predicated region
      $region29: #{_lambda_.7} parent=23 // pred_check
        %p164 = pneg %p98
      $region30: #{_lambda_.7} parent=23 // pred_check_branch
        %166 = sbr.rel (%p164) target = $region32
      $region31: #{_lambda_.7} parent=23 // pred_region
        %s167 = smul.u32 16, %s10
        %p168 = scmp.lt.s32.totalorder %s167, 63
        %s169 = scalar_select %p168, %s167, 63
        %s170 = smul.addr %s169, 8
        %s171 = scalar_lea.vmem %s3, %s170
        %s172 = smul.u32 16, %s10
      $region32: #{_lambda_.7} parent=23 // pred_fallthru
        _
    $region24: #{_lambda_.7} parent=5 // pred_fallthru
      _
    %p173 = scmp.le.s32.totalorder 1, %s10
    %p174 = scmp.lt.s32.totalorder %s10, 5
    %p175 = pnand %p173, %p174
    %p176 = pneg %p175
    // Predicated region
    $region33: #{_lambda_.7} parent=5 // pred_check
      _
    $region34: #{_lambda_.7} parent=5 // pred_check_branch
      %178 = sbr.rel (%p175) target = $region36
    $region35: #{_lambda_.7} parent=5 // pred_region
      %s179 = ssub.s32 %s10, 1
      %s180 = smul.u32 16, %s15
      %p181 = scmp.lt.s32.totalorder %s180, 63
      %s182 = scalar_select %p181, %s180, 63
      %s183 = smul.addr %s182, 4
      %s184 = scalar_lea.vmem %s0, %s183
      %p185 = pneg %p36
      %p186 = pneg %p33
      %p187 = pneg %p57
      %p188 = pneg %p54
      %p189 = pneg %p78
      %p190 = pneg %p75
      %s191 = smul.u32 16, %s15
      %p192 = scmp.lt.s32.totalorder %s191, 63
      %s193 = scalar_select %p192, %s191, 63
      %s194 = smul.addr %s193, 8
      %s195 = scalar_lea.vmem %s3, %s194
      %p196 = pneg %p104
      %p197 = pneg %p101
      %p198 = pneg %p130
      %p199 = pneg %p127
      %s200 = smul.u32 16, %s15
      %p201 = scmp.lt.s32.totalorder %s200, 63
      %s202 = scalar_select %p201, %s200, 63
      %s203 = smul.addr %s202, 8
      %s204 = scalar_lea.vmem %s4, %s203
      %s205 = smul.u32 16, %s15
      %p206 = scmp.lt.s32.totalorder %s205, 63
      %s207 = scalar_select %p206, %s205, 63
      %s208 = smul.addr %s207, 4
      %s209 = scalar_lea.vmem %s0, %s208
      %s210 = smul.u32 16, %s15
      %s211 = smul.u32 16, %s15
      %p212 = scmp.lt.s32.totalorder %s211, 63
      %s213 = scalar_select %p212, %s211, 63
      %s214 = smul.addr %s213, 8
      %s215 = scalar_lea.vmem %s3, %s214
      %s216 = smul.u32 16, %s15
      %s217 = smul.u32 16, %s15
      %p218 = scmp.lt.s32.totalorder %s217, 63
      %s219 = scalar_select %p218, %s217, 63
      %s220 = smul.addr %s219, 8
      %s221 = scalar_lea.vmem %s4, %s220
      %s222 = smul.u32 16, %s15
      %v223 = vld [vmem:[%s209] sm:$0xf]
      %v224 = vld [vmem:[%s209 + $0x4] sm:$0xf]
      %v225 = vld [vmem:[%s209 + $0x8] sm:$0xf]
      %v226 = vld [vmem:[%s209 + $0xc] sm:$0xf]
      %v227 = vld [vmem:[%s209 + $0x10] sm:$0xf]
      %v228 = vld [vmem:[%s209 + $0x14] sm:$0xf]
      %v229 = vld [vmem:[%s209 + $0x18] sm:$0xf]
      %v230 = vld [vmem:[%s209 + $0x1c] sm:$0xf]
      %v231 = vld [vmem:[%s209 + $0x20] sm:$0xf]
      %v232 = vld [vmem:[%s209 + $0x24] sm:$0xf]
      %v233 = vld [vmem:[%s209 + $0x28] sm:$0xf]
      %v234 = vld [vmem:[%s209 + $0x2c] sm:$0xf]
      %v235 = vld [vmem:[%s209 + $0x30] sm:$0xf]
      %v236 = vld [vmem:[%s209 + $0x34] sm:$0xf]
      %v237 = vld [vmem:[%s209 + $0x38] sm:$0xf]
      %v238 = vld [vmem:[%s209 + $0x3c] sm:$0xf]
      %v239 = vunpack.c.l.bf16 %v223
      %v240 = vunpack.c.l.bf16 %v224
      %v241 = vunpack.c.l.bf16 %v225
      %v242 = vunpack.c.l.bf16 %v226
      %v243 = vunpack.c.l.bf16 %v227
      %v244 = vunpack.c.l.bf16 %v228
      %v245 = vunpack.c.l.bf16 %v229
      %v246 = vunpack.c.l.bf16 %v230
      %v247 = vunpack.c.l.bf16 %v231
      %v248 = vunpack.c.l.bf16 %v232
      %v249 = vunpack.c.l.bf16 %v233
      %v250 = vunpack.c.l.bf16 %v234
      %v251 = vunpack.c.l.bf16 %v235
      %v252 = vunpack.c.l.bf16 %v236
      %v253 = vunpack.c.l.bf16 %v237
      %v254 = vunpack.c.l.bf16 %v238
      %v255 = vld [vmem:[%s1] sm:$0x1]
      %v257 = vperm.slane %v255, 0
      %v259 = vmul.f32 %v239, %v257
      %v260 = vmul.f32 %v240, %v257
      %v261 = vmul.f32 %v241, %v257
      %v262 = vmul.f32 %v242, %v257
      %v263 = vmul.f32 %v243, %v257
      %v264 = vmul.f32 %v244, %v257
      %v265 = vmul.f32 %v245, %v257
      %v266 = vmul.f32 %v246, %v257
      %v267 = vmul.f32 %v247, %v257
      %v268 = vmul.f32 %v248, %v257
      %v269 = vmul.f32 %v249, %v257
      %v270 = vmul.f32 %v250, %v257
      %v271 = vmul.f32 %v251, %v257
      %v272 = vmul.f32 %v252, %v257
      %v273 = vmul.f32 %v253, %v257
      %v274 = vmul.f32 %v254, %v257
      %v275 = vld [vmem:[%s2] sm:$0x1]
      %v277 = vperm.slane %v275, 0
      %v279 = vadd.f32 %v259, %v277
      %v280 = vadd.f32 %v260, %v277
      %v281 = vadd.f32 %v261, %v277
      %v282 = vadd.f32 %v262, %v277
      %v283 = vadd.f32 %v263, %v277
      %v284 = vadd.f32 %v264, %v277
      %v285 = vadd.f32 %v265, %v277
      %v286 = vadd.f32 %v266, %v277
      %v287 = vadd.f32 %v267, %v277
      %v288 = vadd.f32 %v268, %v277
      %v289 = vadd.f32 %v269, %v277
      %v290 = vadd.f32 %v270, %v277
      %v291 = vadd.f32 %v271, %v277
      %v292 = vadd.f32 %v272, %v277
      %v293 = vadd.f32 %v273, %v277
      %v294 = vadd.f32 %v274, %v277
      %v295 = vld [vmem:[%s215] sm:$0xff]
      %v296 = vld [vmem:[%s215 + $0x8] sm:$0xff]
      %v297 = vld [vmem:[%s215 + $0x10] sm:$0xff]
      %v298 = vld [vmem:[%s215 + $0x18] sm:$0xff]
      %v299 = vld [vmem:[%s215 + $0x20] sm:$0xff]
      %v300 = vld [vmem:[%s215 + $0x28] sm:$0xff]
      %v301 = vld [vmem:[%s215 + $0x30] sm:$0xff]
      %v302 = vld [vmem:[%s215 + $0x38] sm:$0xff]
      %v303 = vld [vmem:[%s215 + $0x40] sm:$0xff]
      %v304 = vld [vmem:[%s215 + $0x48] sm:$0xff]
      %v305 = vld [vmem:[%s215 + $0x50] sm:$0xff]
      %v306 = vld [vmem:[%s215 + $0x58] sm:$0xff]
      %v307 = vld [vmem:[%s215 + $0x60] sm:$0xff]
      %v308 = vld [vmem:[%s215 + $0x68] sm:$0xff]
      %v309 = vld [vmem:[%s215 + $0x70] sm:$0xff]
      %v310 = vld [vmem:[%s215 + $0x78] sm:$0xff]
      %v311 = vadd.f32 %v279, %v295
      %v312 = vadd.f32 %v280, %v296
      %v313 = vadd.f32 %v281, %v297
      %v314 = vadd.f32 %v282, %v298
      %v315 = vadd.f32 %v283, %v299
      %v316 = vadd.f32 %v284, %v300
      %v317 = vadd.f32 %v285, %v301
      %v318 = vadd.f32 %v286, %v302
      %v319 = vadd.f32 %v287, %v303
      %v320 = vadd.f32 %v288, %v304
      %v321 = vadd.f32 %v289, %v305
      %v322 = vadd.f32 %v290, %v306
      %v323 = vadd.f32 %v291, %v307
      %v324 = vadd.f32 %v292, %v308
      %v325 = vadd.f32 %v293, %v309
      %v326 = vadd.f32 %v294, %v310
      %v327 = vmax.f32 %v311, 0.0
      %v328 = vmax.f32 %v312, 0.0
      %v329 = vmax.f32 %v313, 0.0
      %v330 = vmax.f32 %v314, 0.0
      %v331 = vmax.f32 %v315, 0.0
      %v332 = vmax.f32 %v316, 0.0
      %v333 = vmax.f32 %v317, 0.0
      %v334 = vmax.f32 %v318, 0.0
      %v335 = vmax.f32 %v319, 0.0
      %v336 = vmax.f32 %v320, 0.0
      %v337 = vmax.f32 %v321, 0.0
      %v338 = vmax.f32 %v322, 0.0
      %v339 = vmax.f32 %v323, 0.0
      %v340 = vmax.f32 %v324, 0.0
      %v341 = vmax.f32 %v325, 0.0
      %v342 = vmax.f32 %v326, 0.0
      %343 = vst [vmem:[%s221] sm:$0xff] %v327
      %344 = vst [vmem:[%s221 + $0x8] sm:$0xff] %v328
      %345 = vst [vmem:[%s221 + $0x10] sm:$0xff] %v329
      %346 = vst [vmem:[%s221 + $0x18] sm:$0xff] %v330
      %347 = vst [vmem:[%s221 + $0x20] sm:$0xff] %v331
      %348 = vst [vmem:[%s221 + $0x28] sm:$0xff] %v332
      %349 = vst [vmem:[%s221 + $0x30] sm:$0xff] %v333
      %350 = vst [vmem:[%s221 + $0x38] sm:$0xff] %v334
      %351 = vst [vmem:[%s221 + $0x40] sm:$0xff] %v335
      %352 = vst [vmem:[%s221 + $0x48] sm:$0xff] %v336
      %353 = vst [vmem:[%s221 + $0x50] sm:$0xff] %v337
      %354 = vst [vmem:[%s221 + $0x58] sm:$0xff] %v338
      %355 = vst [vmem:[%s221 + $0x60] sm:$0xff] %v339
      %356 = vst [vmem:[%s221 + $0x68] sm:$0xff] %v340
      %357 = vst [vmem:[%s221 + $0x70] sm:$0xff] %v341
      %358 = vst [vmem:[%s221 + $0x78] sm:$0xff] %v342
      %s359 = smul.u32 16, %s15
      %p360 = scmp.lt.s32.totalorder %s359, 63
      %s361 = scalar_select %p360, %s359, 63
      %s362 = smul.addr %s361, 8
      %s363 = scalar_lea.vmem %s4, %s362
      // Predicated region
      $region37: #{_lambda_.7} parent=35 // pred_check
        %p364 = pneg %p127
      $region38: #{_lambda_.7} parent=35 // pred_check_branch
        %366 = sbr.rel (%p364) target = $region40
      $region39: #{_lambda_.7} parent=35 // pred_region
        %s367 = smul.u32 16, %s15
      $region40: #{_lambda_.7} parent=35 // pred_fallthru
        _
    $region36: #{_lambda_.7} parent=5 // pred_fallthru
      _
    %p368 = scmp.le.s32.totalorder 2, %s10
    // Predicated region
    $region41: #{_lambda_.7} parent=5 // pred_check
      %p369 = pneg %p368
    $region42: #{_lambda_.7} parent=5 // pred_check_branch
      %371 = sbr.rel (%p369) target = $region44
    $region43: #{_lambda_.7} parent=5 // pred_region
      %s372 = ssub.s32 %s10, 2
      // Predicated region
      $region45: #{_lambda_.7} parent=43 // pred_check
        %p373 = pneg %p133
      $region46: #{_lambda_.7} parent=43 // pred_check_branch
        %375 = sbr.rel (%p373) target = $region48
      $region47: #{_lambda_.7} parent=43 // pred_region
        %s376 = smul.u32 16, %s16
        %p377 = scmp.lt.s32.totalorder %s376, 63
        %s378 = scalar_select %p377, %s376, 63
        %s379 = smul.addr %s378, 8
        %s380 = scalar_lea.vmem %s4, %s379
      $region48: #{_lambda_.7} parent=43 // pred_fallthru
        _
    $region44: #{_lambda_.7} parent=5 // pred_fallthru
      _
  $region6: #{_lambda_.7} parent=0 // loop_footer
    %s14 = sadd.s32 1, %s10
  $region7: #{_lambda_.7} parent=0 // loop_footer_branch
    %9 = sbr.rel target = $region3
  $region8: #{_lambda_.7} parent=0 // loop_exit
    _

// kernel: _lambda_.5
$region0: #{_lambda_.5}
  #allocation0 [shape = 'u32[]', space=smem, size = 0x4, offset = 0x4, fixed_abs, tag = 'smem constant byte address 0x4 - core index']
  #allocation1 [shape = 'u32[72,128]{1,0:T(1,128)}', space=vmem, size = 0x9000, scoped, tag = 'internal scratch']
  %s0 = inlined_call_operand.vmem [shape: bf16[2,18,18,128], index: 0, kind: input, shape index: {}]
  %s1 = inlined_call_operand.vmem [shape: f32[1,128], index: 1, kind: input, shape index: {}]
  %s2 = inlined_call_operand.vmem [shape: f32[1,128], index: 2, kind: input, shape index: {}]
  %s3 = inlined_call_operand.vmem [shape: bf16[9,128,128], index: 3, kind: input, shape index: {}]
  %s4 = inlined_call_operand.vmem [shape: bf16[2,16,16,128], index: 4, kind: output, shape index: {0}]
  %s5 = inlined_call_operand.vmem [shape: f32[16,128], index: 5, kind: output, shape index: {1}]
  %s6 = inlined_call_operand.vmem [shape: f32[16,128], index: 6, kind: output, shape index: {2}]
  %7 = xla_tuple %s4, %s5, %s6
  %s8 = sld [smem:[#allocation0]]
  $region65: #{_lambda_.5} parent=0
    _
  %s10 = ssub.s32 1, %s8
  %s11 = scalar_select 0, %s10, %s8
  loop: start=0, step=1, limit=4
  $region2: #{_lambda_.5} parent=0 // loop_pre_header
    _
  $region3: #{_lambda_.5} parent=0 // loop_header
    %s13 = sphi 0, %s17
    %p14 = scmp.ge.s32.totalorder %s13, 4
    %s23 = sphi 0, %s25
    %s26 = sphi 0, %s23
    %s27 = sphi 0, %s26
    %s43 = sphi 0, %s27
    %s47 = sphi 0, %s47
    %s49 = sphi 0, %s47
    %s50 = sphi 0, %s49
    %s64 = sphi 0, %s50
    %s68 = sphi 0, %s68
    %s70 = sphi 0, %s68
    %s71 = sphi 0, %s70
    %s85 = sphi 0, %s71
    %s89 = sphi 0, %s89
    %s91 = sphi 0, %s89
    %s92 = sphi 0, %s91
    %s106 = sphi 0, %s92
    %s112 = sphi 0, %s114
    %s115 = sphi 0, %s112
    %s116 = sphi 0, %s115
    %s132 = sphi 0, %s116
    %s138 = sphi 0, %s140
    %s141 = sphi 0, %s138
    %s142 = sphi 0, %s141
    %s158 = sphi 0, %s142
    %s164 = sphi 0, %s166
    %s167 = sphi 0, %s164
    %s168 = sphi 0, %s167
    %s184 = sphi 0, %s168
  $region4: #{_lambda_.5} parent=0 // loop_header_branch
    %16 = sbr.rel (%p14) target = $region8
  $region5: #{_lambda_.5} parent=0 // loop_body
    %s18 = ssub.s32 %s13, 1
    %s19 = ssub.s32 %s13, 2
    %s20 = sadd.s32 %s13, 1
    %s21 = ssub.s32 %s13, %s20
    %p22 = scmp.eq.s32.totalorder %s21, 0
    %s24 = sadd.s32 %s23, 1
    %s25 = scalar_select %p22, %s23, %s24
    %p28 = pneg %p22
    %p29 = scmp.eq.s32.totalorder %s13, 1
    %p30 = por %p28, %p29
    %p31 = scmp.ne.s32.totalorder %s23, %s26
    %p32 = scmp.eq.s32.totalorder %s13, 0
    %p33 = por %p31, %p32
    %p34 = scmp.ne.s32.totalorder %s23, %s26
    %p35 = scmp.eq.s32.totalorder %s18, 1
    %p36 = por %p34, %p35
    %p37 = scmp.ne.s32.totalorder %s26, %s27
    %p38 = scmp.eq.s32.totalorder %s18, 0
    %p39 = por %p37, %p38
    %p40 = scmp.ne.s32.totalorder %s26, %s27
    %p41 = scmp.eq.s32.totalorder %s19, 1
    %p42 = por %p40, %p41
    %p44 = scmp.ne.s32.totalorder %s27, %s43
    %p45 = scmp.eq.s32.totalorder %s19, 0
    %p46 = por %p44, %p45
    %s48 = sadd.s32 %s47, 1
    %p51 = scmp.eq.s32.totalorder %s13, 1
    %p52 = scmp.ne.s32.totalorder %s47, %s49
    %p53 = scmp.eq.s32.totalorder %s13, 0
    %p54 = por %p52, %p53
    %p55 = scmp.ne.s32.totalorder %s47, %s49
    %p56 = scmp.eq.s32.totalorder %s18, 1
    %p57 = por %p55, %p56
    %p58 = scmp.ne.s32.totalorder %s49, %s50
    %p59 = scmp.eq.s32.totalorder %s18, 0
    %p60 = por %p58, %p59
    %p61 = scmp.ne.s32.totalorder %s49, %s50
    %p62 = scmp.eq.s32.totalorder %s19, 1
    %p63 = por %p61, %p62
    %p65 = scmp.ne.s32.totalorder %s50, %s64
    %p66 = scmp.eq.s32.totalorder %s19, 0
    %p67 = por %p65, %p66
    %s69 = sadd.s32 %s68, 1
    %p72 = scmp.eq.s32.totalorder %s13, 1
    %p73 = scmp.ne.s32.totalorder %s68, %s70
    %p74 = scmp.eq.s32.totalorder %s13, 0
    %p75 = por %p73, %p74
    %p76 = scmp.ne.s32.totalorder %s68, %s70
    %p77 = scmp.eq.s32.totalorder %s18, 1
    %p78 = por %p76, %p77
    %p79 = scmp.ne.s32.totalorder %s70, %s71
    %p80 = scmp.eq.s32.totalorder %s18, 0
    %p81 = por %p79, %p80
    %p82 = scmp.ne.s32.totalorder %s70, %s71
    %p83 = scmp.eq.s32.totalorder %s19, 1
    %p84 = por %p82, %p83
    %p86 = scmp.ne.s32.totalorder %s71, %s85
    %p87 = scmp.eq.s32.totalorder %s19, 0
    %p88 = por %p86, %p87
    %s90 = sadd.s32 %s89, 1
    %p93 = scmp.eq.s32.totalorder %s13, 1
    %p94 = scmp.ne.s32.totalorder %s89, %s91
    %p95 = scmp.eq.s32.totalorder %s13, 0
    %p96 = por %p94, %p95
    %p97 = scmp.ne.s32.totalorder %s89, %s91
    %p98 = scmp.eq.s32.totalorder %s18, 1
    %p99 = por %p97, %p98
    %p100 = scmp.ne.s32.totalorder %s91, %s92
    %p101 = scmp.eq.s32.totalorder %s18, 0
    %p102 = por %p100, %p101
    %p103 = scmp.ne.s32.totalorder %s91, %s92
    %p104 = scmp.eq.s32.totalorder %s19, 1
    %p105 = por %p103, %p104
    %p107 = scmp.ne.s32.totalorder %s92, %s106
    %p108 = scmp.eq.s32.totalorder %s19, 0
    %p109 = por %p107, %p108
    %s110 = ssub.s32 %s13, %s20
    %p111 = scmp.eq.s32.totalorder %s110, 0
    %s113 = sadd.s32 %s112, 1
    %s114 = scalar_select %p111, %s112, %s113
    %p117 = pneg %p111
    %p118 = scmp.eq.s32.totalorder %s13, 1
    %p119 = por %p117, %p118
    %p120 = scmp.ne.s32.totalorder %s112, %s115
    %p121 = scmp.eq.s32.totalorder %s13, 0
    %p122 = por %p120, %p121
    %p123 = scmp.ne.s32.totalorder %s112, %s115
    %p124 = scmp.eq.s32.totalorder %s18, 1
    %p125 = por %p123, %p124
    %p126 = scmp.ne.s32.totalorder %s115, %s116
    %p127 = scmp.eq.s32.totalorder %s18, 0
    %p128 = por %p126, %p127
    %p129 = scmp.ne.s32.totalorder %s115, %s116
    %p130 = scmp.eq.s32.totalorder %s19, 1
    %p131 = por %p129, %p130
    %p133 = scmp.ne.s32.totalorder %s116, %s132
    %p134 = scmp.eq.s32.totalorder %s19, 0
    %p135 = por %p133, %p134
    %s136 = ssub.s32 %s13, %s20
    %p137 = scmp.eq.s32.totalorder %s136, 0
    %s139 = sadd.s32 %s138, 1
    %s140 = scalar_select %p137, %s138, %s139
    %p143 = pneg %p137
    %p144 = scmp.eq.s32.totalorder %s13, 1
    %p145 = por %p143, %p144
    %p146 = scmp.ne.s32.totalorder %s138, %s141
    %p147 = scmp.eq.s32.totalorder %s13, 0
    %p148 = por %p146, %p147
    %p149 = scmp.ne.s32.totalorder %s138, %s141
    %p150 = scmp.eq.s32.totalorder %s18, 1
    %p151 = por %p149, %p150
    %p152 = scmp.ne.s32.totalorder %s141, %s142
    %p153 = scmp.eq.s32.totalorder %s18, 0
    %p154 = por %p152, %p153
    %p155 = scmp.ne.s32.totalorder %s141, %s142
    %p156 = scmp.eq.s32.totalorder %s19, 1
    %p157 = por %p155, %p156
    %p159 = scmp.ne.s32.totalorder %s142, %s158
    %p160 = scmp.eq.s32.totalorder %s19, 0
    %p161 = por %p159, %p160
    %s162 = ssub.s32 %s13, %s20
    %p163 = scmp.eq.s32.totalorder %s162, 0
    %s165 = sadd.s32 %s164, 1
    %s166 = scalar_select %p163, %s164, %s165
    %p169 = pneg %p163
    %p170 = scmp.eq.s32.totalorder %s13, 1
    %p171 = por %p169, %p170
    %p172 = scmp.ne.s32.totalorder %s164, %s167
    %p173 = scmp.eq.s32.totalorder %s13, 0
    %p174 = por %p172, %p173
    %p175 = scmp.ne.s32.totalorder %s164, %s167
    %p176 = scmp.eq.s32.totalorder %s18, 1
    %p177 = por %p175, %p176
    %p178 = scmp.ne.s32.totalorder %s167, %s168
    %p179 = scmp.eq.s32.totalorder %s18, 0
    %p180 = por %p178, %p179
    %p181 = scmp.ne.s32.totalorder %s167, %s168
    %p182 = scmp.eq.s32.totalorder %s19, 1
    %p183 = por %p181, %p182
    %p185 = scmp.ne.s32.totalorder %s168, %s184
    %p186 = scmp.eq.s32.totalorder %s19, 0
    %p187 = por %p185, %p186
    %p188 = scmp.le.s32.totalorder 1, %s13
    %p189 = scmp.lt.s32.totalorder %s13, 3
    %p190 = pnand %p188, %p189
    %p191 = pneg %p190
    // Predicated region
    $region9: #{_lambda_.5} parent=5 // pred_check
      _
    $region10: #{_lambda_.5} parent=5 // pred_check_branch
      %193 = sbr.rel (%p190) target = $region12
    $region11: #{_lambda_.5} parent=5 // pred_region
      %s194 = ssub.s32 %s13, 1
      // Predicated region
      $region13: #{_lambda_.5} parent=11 // pred_check
        %p195 = pneg %p60
      $region14: #{_lambda_.5} parent=11 // pred_check_branch
        %197 = sbr.rel (%p195) target = $region16
      $region15: #{_lambda_.5} parent=11 // pred_region
        _
      $region16: #{_lambda_.5} parent=11 // pred_fallthru
        _
      // Predicated region
      $region17: #{_lambda_.5} parent=11 // pred_check
        %p198 = pneg %p81
      $region18: #{_lambda_.5} parent=11 // pred_check_branch
        %200 = sbr.rel (%p198) target = $region20
      $region19: #{_lambda_.5} parent=11 // pred_region
        _
      $region20: #{_lambda_.5} parent=11 // pred_fallthru
        _
      // Predicated region
      $region21: #{_lambda_.5} parent=11 // pred_check
        %p201 = pneg %p102
      $region22: #{_lambda_.5} parent=11 // pred_check_branch
        %203 = sbr.rel (%p201) target = $region24
      $region23: #{_lambda_.5} parent=11 // pred_region
        _
      $region24: #{_lambda_.5} parent=11 // pred_fallthru
        _
    $region12: #{_lambda_.5} parent=5 // pred_fallthru
      _
    %p204 = scmp.lt.s32.totalorder %s13, 2
    // Predicated region
    $region25: #{_lambda_.5} parent=5 // pred_check
      %p205 = pneg %p204
    $region26: #{_lambda_.5} parent=5 // pred_check_branch
      %207 = sbr.rel (%p205) target = $region28
    $region27: #{_lambda_.5} parent=5 // pred_region
      // Predicated region
      $region29: #{_lambda_.5} parent=27 // pred_check
        %p208 = pneg %p33
      $region30: #{_lambda_.5} parent=27 // pred_check_branch
        %210 = sbr.rel (%p208) target = $region32
      $region31: #{_lambda_.5} parent=27 // pred_region
        %p211 = scmp.lt.s32.totalorder %s13, 1
        %s212 = scalar_select %p211, %s13, 1
        %s213 = smul.addr %s212, 54
        %s214 = smul.addr %s213, 4
        %s215 = scalar_lea.vmem %s0, %s214
      $region32: #{_lambda_.5} parent=27 // pred_fallthru
        _
    $region28: #{_lambda_.5} parent=5 // pred_fallthru
      _
    %p216 = scmp.le.s32.totalorder 1, %s13
    %p217 = scmp.lt.s32.totalorder %s13, 3
    %p218 = pnand %p216, %p217
    %p219 = pneg %p218
    // Predicated region
    $region33: #{_lambda_.5} parent=5 // pred_check
      _
    $region34: #{_lambda_.5} parent=5 // pred_check_branch
      %221 = sbr.rel (%p218) target = $region36
    $region35: #{_lambda_.5} parent=5 // pred_region
      %s222 = ssub.s32 %s13, 1
      %p223 = scmp.lt.s32.totalorder %s18, 1
      %s224 = scalar_select %p223, %s18, 1
      %s225 = smul.addr %s224, 54
      %s226 = smul.addr %s225, 4
      %s227 = scalar_lea.vmem %s0, %s226
      %p228 = pneg %p39
      %p229 = pneg %p36
      %p230 = pneg %p60
      %p231 = pneg %p57
      %p232 = pneg %p81
      %p233 = pneg %p78
      %p234 = pneg %p102
      %p235 = pneg %p99
      %p236 = pneg %p128
      %p237 = pneg %p125
      %p238 = scmp.lt.s32.totalorder %s18, 1
      %s239 = scalar_select %p238, %s18, 1
      %s240 = smul.addr %s239, 32
      %s241 = smul.addr %s240, 4
      %s242 = scalar_lea.vmem %s4, %s241
      %p243 = pneg %p154
      %p244 = pneg %p151
      %p245 = scmp.lt.s32.totalorder %s18, 1
      %s246 = scalar_select %p245, %s18, 1
      %s247 = smul.addr %s246, 8
      %s248 = scalar_lea.vmem %s5, %s247
      %p249 = pneg %p180
      %p250 = pneg %p177
      %p251 = scmp.lt.s32.totalorder %s18, 1
      %s252 = scalar_select %p251, %s18, 1
      %s253 = smul.addr %s252, 8
      %s254 = scalar_lea.vmem %s6, %s253
      %p255 = scmp.lt.s32.totalorder %s18, 1
      %s256 = scalar_select %p255, %s18, 1
      %s257 = smul.addr %s256, 54
      %s258 = smul.addr %s257, 4
      %s259 = scalar_lea.vmem %s0, %s258
      %p260 = scmp.lt.s32.totalorder %s18, 1
      %s261 = scalar_select %p260, %s18, 1
      %s262 = smul.addr %s261, 32
      %s263 = smul.addr %s262, 4
      %s264 = scalar_lea.vmem %s4, %s263
      %p265 = scmp.lt.s32.totalorder %s18, 1
      %s266 = scalar_select %p265, %s18, 1
      %s267 = smul.addr %s266, 8
      %s268 = scalar_lea.vmem %s5, %s267
      %p269 = scmp.lt.s32.totalorder %s18, 1
      %s270 = scalar_select %p269, %s18, 1
      %s271 = smul.addr %s270, 8
      %s272 = scalar_lea.vmem %s6, %s271
      %v273 = vld [vmem:[%s259] sm:$0xf]
      %v274 = vld [vmem:[%s259 + $0x4] sm:$0xf]
      %v275 = vld [vmem:[%s259 + $0x8] sm:$0x1]
      %v276 = vld [vmem:[%s259 + $0xc] sm:$0xf]
      %v277 = vld [vmem:[%s259 + $0x10] sm:$0xf]
      %v278 = vld [vmem:[%s259 + $0x14] sm:$0x1]
      %v279 = vld [vmem:[%s259 + $0x18] sm:$0xf]
      %v280 = vld [vmem:[%s259 + $0x1c] sm:$0xf]
      %v281 = vld [vmem:[%s259 + $0x20] sm:$0x1]
      %v282 = vld [vmem:[%s259 + $0x24] sm:$0xf]
      %v283 = vld [vmem:[%s259 + $0x28] sm:$0xf]
      %v284 = vld [vmem:[%s259 + $0x2c] sm:$0x1]
      %v285 = vld [vmem:[%s259 + $0x30] sm:$0xf]
      %v286 = vld [vmem:[%s259 + $0x34] sm:$0xf]
      %v287 = vld [vmem:[%s259 + $0x38] sm:$0x1]
      %v288 = vld [vmem:[%s259 + $0x3c] sm:$0xf]
      %v289 = vld [vmem:[%s259 + $0x40] sm:$0xf]
      %v290 = vld [vmem:[%s259 + $0x44] sm:$0x1]
      %v291 = vld [vmem:[%s259 + $0x48] sm:$0xf]
      %v292 = vld [vmem:[%s259 + $0x4c] sm:$0xf]
      %v293 = vld [vmem:[%s259 + $0x50] sm:$0x1]
      %v294 = vld [vmem:[%s259 + $0x54] sm:$0xf]
      %v295 = vld [vmem:[%s259 + $0x58] sm:$0xf]
      %v296 = vld [vmem:[%s259 + $0x5c] sm:$0x1]
      %v297 = vld [vmem:[%s259 + $0x60] sm:$0xf]
      %v298 = vld [vmem:[%s259 + $0x64] sm:$0xf]
      %v299 = vld [vmem:[%s259 + $0x68] sm:$0x1]
      %v300 = vld [vmem:[%s259 + $0x6c] sm:$0xf]
      %v301 = vld [vmem:[%s259 + $0x70] sm:$0xf]
      %v302 = vld [vmem:[%s259 + $0x74] sm:$0x1]
      %v303 = vld [vmem:[%s259 + $0x78] sm:$0xf]
      %v304 = vld [vmem:[%s259 + $0x7c] sm:$0xf]
      %v305 = vld [vmem:[%s259 + $0x80] sm:$0x1]
      %v306 = vld [vmem:[%s259 + $0x84] sm:$0xf]
      %v307 = vld [vmem:[%s259 + $0x88] sm:$0xf]
      %v308 = vld [vmem:[%s259 + $0x8c] sm:$0x1]
      %v309 = vld [vmem:[%s259 + $0x90] sm:$0xf]
      %v310 = vld [vmem:[%s259 + $0x94] sm:$0xf]
      %v311 = vld [vmem:[%s259 + $0x98] sm:$0x1]
      %v312 = vld [vmem:[%s259 + $0x9c] sm:$0xf]
      %v313 = vld [vmem:[%s259 + $0xa0] sm:$0xf]
      %v314 = vld [vmem:[%s259 + $0xa4] sm:$0x1]
      %v315 = vld [vmem:[%s259 + $0xa8] sm:$0xf]
      %v316 = vld [vmem:[%s259 + $0xac] sm:$0xf]
      %v317 = vld [vmem:[%s259 + $0xb0] sm:$0x1]
      %v318 = vld [vmem:[%s259 + $0xb4] sm:$0xf]
      %v319 = vld [vmem:[%s259 + $0xb8] sm:$0xf]
      %v320 = vld [vmem:[%s259 + $0xbc] sm:$0x1]
      %v321 = vld [vmem:[%s259 + $0xc0] sm:$0xf]
      %v322 = vld [vmem:[%s259 + $0xc4] sm:$0xf]
      %v323 = vld [vmem:[%s259 + $0xc8] sm:$0x1]
      %v324 = vld [vmem:[%s259 + $0xcc] sm:$0xf]
      %v325 = vld [vmem:[%s259 + $0xd0] sm:$0xf]
      %v326 = vld [vmem:[%s259 + $0xd4] sm:$0x1]
      %v327 = vunpack.c.l.bf16 %v273
      %v328 = vunpack.c.l.bf16 %v274
      %v329 = vunpack.c.l.bf16 %v275
      %v330 = vunpack.c.l.bf16 %v276
      %v331 = vunpack.c.l.bf16 %v277
      %v332 = vunpack.c.l.bf16 %v278
      %v333 = vunpack.c.l.bf16 %v279
      %v334 = vunpack.c.l.bf16 %v280
      %v335 = vunpack.c.l.bf16 %v281
      %v336 = vunpack.c.l.bf16 %v282
      %v337 = vunpack.c.l.bf16 %v283
      %v338 = vunpack.c.l.bf16 %v284
      %v339 = vunpack.c.l.bf16 %v285
      %v340 = vunpack.c.l.bf16 %v286
      %v341 = vunpack.c.l.bf16 %v287
      %v342 = vunpack.c.l.bf16 %v288
      %v343 = vunpack.c.l.bf16 %v289
      %v344 = vunpack.c.l.bf16 %v290
      %v345 = vunpack.c.l.bf16 %v291
      %v346 = vunpack.c.l.bf16 %v292
      %v347 = vunpack.c.l.bf16 %v293
      %v348 = vunpack.c.l.bf16 %v294
      %v349 = vunpack.c.l.bf16 %v295
      %v350 = vunpack.c.l.bf16 %v296
      %v351 = vunpack.c.l.bf16 %v297
      %v352 = vunpack.c.l.bf16 %v298
      %v353 = vunpack.c.l.bf16 %v299
      %v354 = vunpack.c.l.bf16 %v300
      %v355 = vunpack.c.l.bf16 %v301
      %v356 = vunpack.c.l.bf16 %v302
      %v357 = vunpack.c.l.bf16 %v303
      %v358 = vunpack.c.l.bf16 %v304
      %v359 = vunpack.c.l.bf16 %v305
      %v360 = vunpack.c.l.bf16 %v306
      %v361 = vunpack.c.l.bf16 %v307
      %v362 = vunpack.c.l.bf16 %v308
      %v363 = vunpack.c.l.bf16 %v309
      %v364 = vunpack.c.l.bf16 %v310
      %v365 = vunpack.c.l.bf16 %v311
      %v366 = vunpack.c.l.bf16 %v312
      %v367 = vunpack.c.l.bf16 %v313
      %v368 = vunpack.c.l.bf16 %v314
      %v369 = vunpack.c.l.bf16 %v315
      %v370 = vunpack.c.l.bf16 %v316
      %v371 = vunpack.c.l.bf16 %v317
      %v372 = vunpack.c.l.bf16 %v318
      %v373 = vunpack.c.l.bf16 %v319
      %v374 = vunpack.c.l.bf16 %v320
      %v375 = vunpack.c.l.bf16 %v321
      %v376 = vunpack.c.l.bf16 %v322
      %v377 = vunpack.c.l.bf16 %v323
      %v378 = vunpack.c.l.bf16 %v324
      %v379 = vunpack.c.l.bf16 %v325
      %v380 = vunpack.c.l.bf16 %v326
      %v381 = vld [vmem:[%s1] sm:$0x1]
      %v383 = vperm.slane %v381, 0
      %v385 = vmul.f32 %v327, %v383
      %v386 = vmul.f32 %v328, %v383
      %v387 = vmul.f32 %v329, %v383
      %v388 = vmul.f32 %v330, %v383
      %v389 = vmul.f32 %v331, %v383
      %v390 = vmul.f32 %v332, %v383
      %v391 = vmul.f32 %v333, %v383
      %v392 = vmul.f32 %v334, %v383
      %v393 = vmul.f32 %v335, %v383
      %v394 = vmul.f32 %v336, %v383
      %v395 = vmul.f32 %v337, %v383
      %v396 = vmul.f32 %v338, %v383
      %v397 = vmul.f32 %v339, %v383
      %v398 = vmul.f32 %v340, %v383
      %v399 = vmul.f32 %v341, %v383
      %v400 = vmul.f32 %v342, %v383
      %v401 = vmul.f32 %v343, %v383
      %v402 = vmul.f32 %v344, %v383
      %v403 = vmul.f32 %v345, %v383
      %v404 = vmul.f32 %v346, %v383
      %v405 = vmul.f32 %v347, %v383
      %v406 = vmul.f32 %v348, %v383
      %v407 = vmul.f32 %v349, %v383
      %v408 = vmul.f32 %v350, %v383
      %v409 = vmul.f32 %v351, %v383
      %v410 = vmul.f32 %v352, %v383
      %v411 = vmul.f32 %v353, %v383
      %v412 = vmul.f32 %v354, %v383
      %v413 = vmul.f32 %v355, %v383
      %v414 = vmul.f32 %v356, %v383
      %v415 = vmul.f32 %v357, %v383
      %v416 = vmul.f32 %v358, %v383
      %v417 = vmul.f32 %v359, %v383
      %v418 = vmul.f32 %v360, %v383
      %v419 = vmul.f32 %v361, %v383
      %v420 = vmul.f32 %v362, %v383
      %v421 = vmul.f32 %v363, %v383
      %v422 = vmul.f32 %v364, %v383
      %v423 = vmul.f32 %v365, %v383
      %v424 = vmul.f32 %v366, %v383
      %v425 = vmul.f32 %v367, %v383
      %v426 = vmul.f32 %v368, %v383
      %v427 = vmul.f32 %v369, %v383
      %v428 = vmul.f32 %v370, %v383
      %v429 = vmul.f32 %v371, %v383
      %v430 = vmul.f32 %v372, %v383
      %v431 = vmul.f32 %v373, %v383
      %v432 = vmul.f32 %v374, %v383
      %v433 = vmul.f32 %v375, %v383
      %v434 = vmul.f32 %v376, %v383
      %v435 = vmul.f32 %v377, %v383
      %v436 = vmul.f32 %v378, %v383
      %v437 = vmul.f32 %v379, %v383
      %v438 = vmul.f32 %v380, %v383
      %v439 = vld [vmem:[%s2] sm:$0x1]
      %v441 = vperm.slane %v439, 0
      %v443 = vadd.f32 %v385, %v441
      %v444 = vadd.f32 %v386, %v441
      %v445 = vadd.f32 %v387, %v441
      %v446 = vadd.f32 %v388, %v441
      %v447 = vadd.f32 %v389, %v441
      %v448 = vadd.f32 %v390, %v441
      %v449 = vadd.f32 %v391, %v441
      %v450 = vadd.f32 %v392, %v441
      %v451 = vadd.f32 %v393, %v441
      %v452 = vadd.f32 %v394, %v441
      %v453 = vadd.f32 %v395, %v441
      %v454 = vadd.f32 %v396, %v441
      %v455 = vadd.f32 %v397, %v441
      %v456 = vadd.f32 %v398, %v441
      %v457 = vadd.f32 %v399, %v441
      %v458 = vadd.f32 %v400, %v441
      %v459 = vadd.f32 %v401, %v441
      %v460 = vadd.f32 %v402, %v441
      %v461 = vadd.f32 %v403, %v441
      %v462 = vadd.f32 %v404, %v441
      %v463 = vadd.f32 %v405, %v441
      %v464 = vadd.f32 %v406, %v441
      %v465 = vadd.f32 %v407, %v441
      %v466 = vadd.f32 %v408, %v441
      %v467 = vadd.f32 %v409, %v441
      %v468 = vadd.f32 %v410, %v441
      %v469 = vadd.f32 %v411, %v441
      %v470 = vadd.f32 %v412, %v441
      %v471 = vadd.f32 %v413, %v441
      %v472 = vadd.f32 %v414, %v441
      %v473 = vadd.f32 %v415, %v441
      %v474 = vadd.f32 %v416, %v441
      %v475 = vadd.f32 %v417, %v441
      %v476 = vadd.f32 %v418, %v441
      %v477 = vadd.f32 %v419, %v441
      %v478 = vadd.f32 %v420, %v441
      %v479 = vadd.f32 %v421, %v441
      %v480 = vadd.f32 %v422, %v441
      %v481 = vadd.f32 %v423, %v441
      %v482 = vadd.f32 %v424, %v441
      %v483 = vadd.f32 %v425, %v441
      %v484 = vadd.f32 %v426, %v441
      %v485 = vadd.f32 %v427, %v441
      %v486 = vadd.f32 %v428, %v441
      %v487 = vadd.f32 %v429, %v441
      %v488 = vadd.f32 %v430, %v441
      %v489 = vadd.f32 %v431, %v441
      %v490 = vadd.f32 %v432, %v441
      %v491 = vadd.f32 %v433, %v441
      %v492 = vadd.f32 %v434, %v441
      %v493 = vadd.f32 %v435, %v441
      %v494 = vadd.f32 %v436, %v441
      %v495 = vadd.f32 %v437, %v441
      %v496 = vadd.f32 %v438, %v441
      %v497 = vmax.f32 %v443, 0.0
      %v498 = vmax.f32 %v444, 0.0
      %v499 = vmax.f32 %v445, 0.0
      %v500 = vmax.f32 %v446, 0.0
      %v501 = vmax.f32 %v447, 0.0
      %v502 = vmax.f32 %v448, 0.0
      %v503 = vmax.f32 %v449, 0.0
      %v504 = vmax.f32 %v450, 0.0
      %v505 = vmax.f32 %v451, 0.0
      %v506 = vmax.f32 %v452, 0.0
      %v507 = vmax.f32 %v453, 0.0
      %v508 = vmax.f32 %v454, 0.0
      %v509 = vmax.f32 %v455, 0.0
      %v510 = vmax.f32 %v456, 0.0
      %v511 = vmax.f32 %v457, 0.0
      %v512 = vmax.f32 %v458, 0.0
      %v513 = vmax.f32 %v459, 0.0
      %v514 = vmax.f32 %v460, 0.0
      %v515 = vmax.f32 %v461, 0.0
      %v516 = vmax.f32 %v462, 0.0
      %v517 = vmax.f32 %v463, 0.0
      %v518 = vmax.f32 %v464, 0.0
      %v519 = vmax.f32 %v465, 0.0
      %v520 = vmax.f32 %v466, 0.0
      %v521 = vmax.f32 %v467, 0.0
      %v522 = vmax.f32 %v468, 0.0
      %v523 = vmax.f32 %v469, 0.0
      %v524 = vmax.f32 %v470, 0.0
      %v525 = vmax.f32 %v471, 0.0
      %v526 = vmax.f32 %v472, 0.0
      %v527 = vmax.f32 %v473, 0.0
      %v528 = vmax.f32 %v474, 0.0
      %v529 = vmax.f32 %v475, 0.0
      %v530 = vmax.f32 %v476, 0.0
      %v531 = vmax.f32 %v477, 0.0
      %v532 = vmax.f32 %v478, 0.0
      %v533 = vmax.f32 %v479, 0.0
      %v534 = vmax.f32 %v480, 0.0
      %v535 = vmax.f32 %v481, 0.0
      %v536 = vmax.f32 %v482, 0.0
      %v537 = vmax.f32 %v483, 0.0
      %v538 = vmax.f32 %v484, 0.0
      %v539 = vmax.f32 %v485, 0.0
      %v540 = vmax.f32 %v486, 0.0
      %v541 = vmax.f32 %v487, 0.0
      %v542 = vmax.f32 %v488, 0.0
      %v543 = vmax.f32 %v489, 0.0
      %v544 = vmax.f32 %v490, 0.0
      %v545 = vmax.f32 %v491, 0.0
      %v546 = vmax.f32 %v492, 0.0
      %v547 = vmax.f32 %v493, 0.0
      %v548 = vmax.f32 %v494, 0.0
      %v549 = vmax.f32 %v495, 0.0
      %v550 = vmax.f32 %v496, 0.0
      %v551 = vlaneseq
      %v552 = vshrl.u32 %v551, 7
      %v553 = vadd.s32 %v552, 8
      %v554 = vadd.s32 %v552, 16
      %vm555 = vcmp.ge.s32.totalorder %v552, 1
      %vm556 = vcmp.ge.s32.totalorder %v553, 1
      %vm557 = vcmp.ge.s32.totalorder %v554, 1
      %vm558 = vmand 0, %vm555
      %vm559 = vmand 0, %vm556
      %vm560 = vmand 0, %vm557
      %vm561 = vmand 1, %vm555
      %vm562 = vmand 1, %vm556
      %vm563 = vmand 1, %vm557
      %vm564 = vcmp.le.s32.totalorder %v552, 16
      %vm565 = vcmp.le.s32.totalorder %v553, 16
      %vm566 = vcmp.le.s32.totalorder %v554, 16
      %vm567 = vmand %vm558, %vm564
      %vm568 = vmand %vm559, %vm565
      %vm569 = vmand %vm560, %vm566
      %vm570 = vmand %vm561, %vm564
      %vm571 = vmand %vm562, %vm565
      %vm572 = vmand %vm563, %vm566
      %v573 = vsel %vm567, %v497, 0.0
      %v574 = vsel %vm568, %v498, 0.0
      %v575 = vsel %vm569, %v499, 0.0
      %v576 = vsel %vm570, %v500, 0.0
      %v577 = vsel %vm571, %v501, 0.0
      %v578 = vsel %vm572, %v502, 0.0
      %v579 = vsel %vm570, %v503, 0.0
      %v580 = vsel %vm571, %v504, 0.0
      %v581 = vsel %vm572, %v505, 0.0
      %v582 = vsel %vm570, %v506, 0.0
      %v583 = vsel %vm571, %v507, 0.0
      %v584 = vsel %vm572, %v508, 0.0
      %v585 = vsel %vm570, %v509, 0.0
      %v586 = vsel %vm571, %v510, 0.0
      %v587 = vsel %vm572, %v511, 0.0
      %v588 = vsel %vm570, %v512, 0.0
      %v589 = vsel %vm571, %v513, 0.0
      %v590 = vsel %vm572, %v514, 0.0
      %v591 = vsel %vm570, %v515, 0.0
      %v592 = vsel %vm571, %v516, 0.0
      %v593 = vsel %vm572, %v517, 0.0
      %v594 = vsel %vm570, %v518, 0.0
      %v595 = vsel %vm571, %v519, 0.0
      %v596 = vsel %vm572, %v520, 0.0
      %v597 = vsel %vm570, %v521, 0.0
      %v598 = vsel %vm571, %v522, 0.0
      %v599 = vsel %vm572, %v523, 0.0
      %v600 = vsel %vm570, %v524, 0.0
      %v601 = vsel %vm571, %v525, 0.0
      %v602 = vsel %vm572, %v526, 0.0
      %v603 = vsel %vm570, %v527, 0.0
      %v604 = vsel %vm571, %v528, 0.0
      %v605 = vsel %vm572, %v529, 0.0
      %v606 = vsel %vm570, %v530, 0.0
      %v607 = vsel %vm571, %v531, 0.0
      %v608 = vsel %vm572, %v532, 0.0
      %v609 = vsel %vm570, %v533, 0.0
      %v610 = vsel %vm571, %v534, 0.0
      %v611 = vsel %vm572, %v535, 0.0
      %v612 = vsel %vm570, %v536, 0.0
      %v613 = vsel %vm571, %v537, 0.0
      %v614 = vsel %vm572, %v538, 0.0
      %v615 = vsel %vm570, %v539, 0.0
      %v616 = vsel %vm571, %v540, 0.0
      %v617 = vsel %vm572, %v541, 0.0
      %v618 = vsel %vm570, %v542, 0.0
      %v619 = vsel %vm571, %v543, 0.0
      %v620 = vsel %vm572, %v544, 0.0
      %v621 = vsel %vm570, %v545, 0.0
      %v622 = vsel %vm571, %v546, 0.0
      %v623 = vsel %vm572, %v547, 0.0
      %v624 = vsel %vm567, %v548, 0.0
      %v625 = vsel %vm568, %v549, 0.0
      %v626 = vsel %vm569, %v550, 0.0
      %v627 = vpack.c.bf16 %v574, %v573
      %v628 = vpack.c.bf16 %v577, %v576
      %v629 = vpack.c.bf16 %v580, %v579
      %v630 = vpack.c.bf16 %v583, %v582
      %v631 = vpack.c.bf16 %v586, %v585
      %v632 = vpack.c.bf16 %v589, %v588
      %v633 = vpack.c.bf16 %v592, %v591
      %v634 = vpack.c.bf16 %v595, %v594
      %v635 = vpack.c.bf16 %v598, %v597
      %v636 = vpack.c.bf16 %v601, %v600
      %v637 = vpack.c.bf16 %v604, %v603
      %v638 = vpack.c.bf16 %v607, %v606
      %v639 = vpack.c.bf16 %v610, %v609
      %v640 = vpack.c.bf16 %v613, %v612
      %v641 = vpack.c.bf16 %v616, %v615
      %v642 = vpack.c.bf16 %v619, %v618
      %v643 = vld [vmem:[%s3] sm:$0xf]
      %v644 = vld [vmem:[%s3 + $0x4] sm:$0xf]
      %v645 = vld [vmem:[%s3 + $0x8] sm:$0xf]
      %v646 = vld [vmem:[%s3 + $0xc] sm:$0xf]
      %v647 = vld [vmem:[%s3 + $0x10] sm:$0xf]
      %v648 = vld [vmem:[%s3 + $0x14] sm:$0xf]
      %v649 = vld [vmem:[%s3 + $0x18] sm:$0xf]
      %v650 = vld [vmem:[%s3 + $0x1c] sm:$0xf]
      %v651 = vld [vmem:[%s3 + $0x20] sm:$0xf]
      %v652 = vld [vmem:[%s3 + $0x24] sm:$0xf]
      %v653 = vld [vmem:[%s3 + $0x28] sm:$0xf]
      %v654 = vld [vmem:[%s3 + $0x2c] sm:$0xf]
      %v655 = vld [vmem:[%s3 + $0x30] sm:$0xf]
      %v656 = vld [vmem:[%s3 + $0x34] sm:$0xf]
      %v657 = vld [vmem:[%s3 + $0x38] sm:$0xf]
      %v658 = vld [vmem:[%s3 + $0x3c] sm:$0xf]
      %vm707 = vcmask 1046528
      %v708 = vrot.slane %v573, 1
      %v709 = vrot.slane %v574, 1
      %v710 = vsel %vm707, %v708, %v709
      %v711 = vrot.slane %v575, 1
      %v712 = vsel %vm707, %v709, %v711
      %v713 = vrot.slane %v576, 1
      %v714 = vrot.slane %v577, 1
      %v715 = vsel %vm707, %v713, %v714
      %v716 = vrot.slane %v578, 1
      %v717 = vsel %vm707, %v714, %v716
      %v718 = vrot.slane %v579, 1
      %v719 = vrot.slane %v580, 1
      %v720 = vsel %vm707, %v718, %v719
      %v721 = vrot.slane %v581, 1
      %v722 = vsel %vm707, %v719, %v721
      %v723 = vrot.slane %v582, 1
      %v724 = vrot.slane %v583, 1
      %v725 = vsel %vm707, %v723, %v724
      %v726 = vrot.slane %v584, 1
      %v727 = vsel %vm707, %v724, %v726
      %v728 = vrot.slane %v585, 1
      %v729 = vrot.slane %v586, 1
      %v730 = vsel %vm707, %v728, %v729
      %v731 = vrot.slane %v587, 1
      %v732 = vsel %vm707, %v729, %v731
      %v733 = vrot.slane %v588, 1
      %v734 = vrot.slane %v589, 1
      %v735 = vsel %vm707, %v733, %v734
      %v736 = vrot.slane %v590, 1
      %v737 = vsel %vm707, %v734, %v736
      %v738 = vrot.slane %v591, 1
      %v739 = vrot.slane %v592, 1
      %v740 = vsel %vm707, %v738, %v739
      %v741 = vrot.slane %v593, 1
      %v742 = vsel %vm707, %v739, %v741
      %v743 = vrot.slane %v594, 1
      %v744 = vrot.slane %v595, 1
      %v745 = vsel %vm707, %v743, %v744
      %v746 = vrot.slane %v596, 1
      %v747 = vsel %vm707, %v744, %v746
      %v748 = vrot.slane %v597, 1
      %v749 = vrot.slane %v598, 1
      %v750 = vsel %vm707, %v748, %v749
      %v751 = vrot.slane %v599, 1
      %v752 = vsel %vm707, %v749, %v751
      %v753 = vrot.slane %v600, 1
      %v754 = vrot.slane %v601, 1
      %v755 = vsel %vm707, %v753, %v754
      %v756 = vrot.slane %v602, 1
      %v757 = vsel %vm707, %v754, %v756
      %v758 = vrot.slane %v603, 1
      %v759 = vrot.slane %v604, 1
      %v760 = vsel %vm707, %v758, %v759
      %v761 = vrot.slane %v605, 1
      %v762 = vsel %vm707, %v759, %v761
      %v763 = vrot.slane %v606, 1
      %v764 = vrot.slane %v607, 1
      %v765 = vsel %vm707, %v763, %v764
      %v766 = vrot.slane %v608, 1
      %v767 = vsel %vm707, %v764, %v766
      %v768 = vrot.slane %v609, 1
      %v769 = vrot.slane %v610, 1
      %v770 = vsel %vm707, %v768, %v769
      %v771 = vrot.slane %v611, 1
      %v772 = vsel %vm707, %v769, %v771
      %v773 = vrot.slane %v612, 1
      %v774 = vrot.slane %v613, 1
      %v775 = vsel %vm707, %v773, %v774
      %v776 = vrot.slane %v614, 1
      %v777 = vsel %vm707, %v774, %v776
      %v778 = vrot.slane %v615, 1
      %v779 = vrot.slane %v616, 1
      %v780 = vsel %vm707, %v778, %v779
      %v781 = vrot.slane %v617, 1
      %v782 = vsel %vm707, %v779, %v781
      %v783 = vrot.slane %v618, 1
      %v784 = vrot.slane %v619, 1
      %v785 = vsel %vm707, %v783, %v784
      %v786 = vrot.slane %v620, 1
      %v787 = vsel %vm707, %v784, %v786
      %v820 = vpack.c.bf16 %v712, %v710
      %v821 = vpack.c.bf16 %v717, %v715
      %v822 = vpack.c.bf16 %v722, %v720
      %v823 = vpack.c.bf16 %v727, %v725
      %v824 = vpack.c.bf16 %v732, %v730
      %v825 = vpack.c.bf16 %v737, %v735
      %v826 = vpack.c.bf16 %v742, %v740
      %v827 = vpack.c.bf16 %v747, %v745
      %v828 = vpack.c.bf16 %v752, %v750
      %v829 = vpack.c.bf16 %v757, %v755
      %v830 = vpack.c.bf16 %v762, %v760
      %v831 = vpack.c.bf16 %v767, %v765
      %v832 = vpack.c.bf16 %v772, %v770
      %v833 = vpack.c.bf16 %v777, %v775
      %v834 = vpack.c.bf16 %v782, %v780
      %v835 = vpack.c.bf16 %v787, %v785
      %s836 = scalar_lea.vmem %s3, 64
      %v837 = vld [vmem:[%s836] sm:$0xf]
      %v838 = vld [vmem:[%s836 + $0x4] sm:$0xf]
      %v839 = vld [vmem:[%s836 + $0x8] sm:$0xf]
      %v840 = vld [vmem:[%s836 + $0xc] sm:$0xf]
      %v841 = vld [vmem:[%s836 + $0x10] sm:$0xf]
      %v842 = vld [vmem:[%s836 + $0x14] sm:$0xf]
      %v843 = vld [vmem:[%s836 + $0x18] sm:$0xf]
      %v844 = vld [vmem:[%s836 + $0x1c] sm:$0xf]
      %v845 = vld [vmem:[%s836 + $0x20] sm:$0xf]
      %v846 = vld [vmem:[%s836 + $0x24] sm:$0xf]
      %v847 = vld [vmem:[%s836 + $0x28] sm:$0xf]
      %v848 = vld [vmem:[%s836 + $0x2c] sm:$0xf]
      %v849 = vld [vmem:[%s836 + $0x30] sm:$0xf]
      %v850 = vld [vmem:[%s836 + $0x34] sm:$0xf]
      %v851 = vld [vmem:[%s836 + $0x38] sm:$0xf]
      %v852 = vld [vmem:[%s836 + $0x3c] sm:$0xf]
      %v869 = vunpack.c.l.b16 %v837
      %v870 = vunpack.c.l.b16 %v838
      %v871 = vunpack.c.l.b16 %v839
      %v872 = vunpack.c.l.b16 %v840
      %v873 = vunpack.c.l.b16 %v841
      %v874 = vunpack.c.l.b16 %v842
      %v875 = vunpack.c.l.b16 %v843
      %v876 = vunpack.c.l.b16 %v844
      %v877 = vunpack.c.l.b16 %v845
      %v878 = vunpack.c.l.b16 %v846
      %v879 = vunpack.c.l.b16 %v847
      %v880 = vunpack.c.l.b16 %v848
      %v881 = vunpack.c.l.b16 %v849
      %v882 = vunpack.c.l.b16 %v850
      %v883 = vunpack.c.l.b16 %v851
      %v884 = vunpack.c.l.b16 %v852
      %v885 = vpack.c.b16 %v870, %v869
      %v886 = vpack.c.b16 %v872, %v871
      %v887 = vpack.c.b16 %v874, %v873
      %v888 = vpack.c.b16 %v876, %v875
      %v889 = vpack.c.b16 %v878, %v877
      %v890 = vpack.c.b16 %v880, %v879
      %v891 = vpack.c.b16 %v882, %v881
      %v892 = vpack.c.b16 %v884, %v883
      %901 = vmatpush.bf16.msra.mxu0 %v892
      %902 = vmatpush.bf16.msra.mxu0 %v891
      %903 = vmatpush.bf16.msra.mxu0 %v890
      %904 = vmatpush.bf16.msra.mxu0 %v889
      %905 = vmatpush.bf16.msra.mxu0 %v888
      %906 = vmatpush.bf16.msra.mxu0 %v887
      %907 = vmatpush.bf16.msra.mxu0 %v886
      %908 = vmatpush.bf16.msra.mxu0 %v885
      %909 = vmatmul.bf16.gmra.mxu0 %v820
      %v910 = vpop.f32.mrf.mxu0
      %v911 = vadd.f32 0.0, %v910
      %v912 = vpop.f32.mrf.mxu0
      %v913 = vadd.f32 0.0, %v912
      %914 = vmatmul.bf16.gmra.mxu0 %v821
      %v915 = vpop.f32.mrf.mxu0
      %v916 = vadd.f32 0.0, %v915
      %v917 = vpop.f32.mrf.mxu0
      %v918 = vadd.f32 0.0, %v917
      %919 = vmatmul.bf16.gmra.mxu0 %v822
      %v920 = vpop.f32.mrf.mxu0
      %v921 = vadd.f32 0.0, %v920
      %v922 = vpop.f32.mrf.mxu0
      %v923 = vadd.f32 0.0, %v922
      %924 = vmatmul.bf16.gmra.mxu0 %v823
      %v925 = vpop.f32.mrf.mxu0
      %v926 = vadd.f32 0.0, %v925
      %v927 = vpop.f32.mrf.mxu0
      %v928 = vadd.f32 0.0, %v927
      %929 = vmatmul.bf16.gmra.mxu0 %v824
      %v930 = vpop.f32.mrf.mxu0
      %v931 = vadd.f32 0.0, %v930
      %v932 = vpop.f32.mrf.mxu0
      %v933 = vadd.f32 0.0, %v932
      %934 = vmatmul.bf16.gmra.mxu0 %v825
      %v935 = vpop.f32.mrf.mxu0
      %v936 = vadd.f32 0.0, %v935
      %v937 = vpop.f32.mrf.mxu0
      %v938 = vadd.f32 0.0, %v937
      %939 = vmatmul.bf16.gmra.mxu0 %v826
      %v940 = vpop.f32.mrf.mxu0
      %v941 = vadd.f32 0.0, %v940
      %v942 = vpop.f32.mrf.mxu0
      %v943 = vadd.f32 0.0, %v942
      %944 = vmatmul.bf16.gmra.mxu0 %v827
      %v945 = vpop.f32.mrf.mxu0
      %v946 = vadd.f32 0.0, %v945
      %v947 = vpop.f32.mrf.mxu0
      %v948 = vadd.f32 0.0, %v947
      %949 = vmatmul.bf16.gmra.mxu0 %v828
      %v950 = vpop.f32.mrf.mxu0
      %v951 = vadd.f32 0.0, %v950
      %v952 = vpop.f32.mrf.mxu0
      %v953 = vadd.f32 0.0, %v952
      %954 = vmatmul.bf16.gmra.mxu0 %v829
      %v955 = vpop.f32.mrf.mxu0
      %v956 = vadd.f32 0.0, %v955
      %v957 = vpop.f32.mrf.mxu0
      %v958 = vadd.f32 0.0, %v957
      %959 = vmatmul.bf16.gmra.mxu0 %v830
      %v960 = vpop.f32.mrf.mxu0
      %v961 = vadd.f32 0.0, %v960
      %v962 = vpop.f32.mrf.mxu0
      %v963 = vadd.f32 0.0, %v962
      %964 = vmatmul.bf16.gmra.mxu0 %v831
      %v965 = vpop.f32.mrf.mxu0
      %v966 = vadd.f32 0.0, %v965
      %v967 = vpop.f32.mrf.mxu0
      %v968 = vadd.f32 0.0, %v967
      %969 = vmatmul.bf16.gmra.mxu0 %v832
      %v970 = vpop.f32.mrf.mxu0
      %v971 = vadd.f32 0.0, %v970
      %v972 = vpop.f32.mrf.mxu0
      %v973 = vadd.f32 0.0, %v972
      %974 = vmatmul.bf16.gmra.mxu0 %v833
      %v975 = vpop.f32.mrf.mxu0
      %v976 = vadd.f32 0.0, %v975
      %v977 = vpop.f32.mrf.mxu0
      %v978 = vadd.f32 0.0, %v977
      %979 = vmatmul.bf16.gmra.mxu0 %v834
      %v980 = vpop.f32.mrf.mxu0
      %v981 = vadd.f32 0.0, %v980
      %v982 = vpop.f32.mrf.mxu0
      %v983 = vadd.f32 0.0, %v982
      %984 = vmatmul.bf16.gmra.mxu0 %v835
      %v985 = vpop.f32.mrf.mxu0
      %v986 = vadd.f32 0.0, %v985
      %v987 = vpop.f32.mrf.mxu0
      %v988 = vadd.f32 0.0, %v987
      %989 = vdwg.mxu0
      %v1006 = vunpack.c.l.b16 %v643
      %v1007 = vunpack.c.l.b16 %v644
      %v1008 = vunpack.c.l.b16 %v645
      %v1009 = vunpack.c.l.b16 %v646
      %v1010 = vunpack.c.l.b16 %v647
      %v1011 = vunpack.c.l.b16 %v648
      %v1012 = vunpack.c.l.b16 %v649
      %v1013 = vunpack.c.l.b16 %v650
      %v1014 = vunpack.c.l.b16 %v651
      %v1015 = vunpack.c.l.b16 %v652
      %v1016 = vunpack.c.l.b16 %v653
      %v1017 = vunpack.c.l.b16 %v654
      %v1018 = vunpack.c.l.b16 %v655
      %v1019 = vunpack.c.l.b16 %v656
      %v1020 = vunpack.c.l.b16 %v657
      %v1021 = vunpack.c.l.b16 %v658
      %v1022 = vpack.c.b16 %v1007, %v1006
      %v1023 = vpack.c.b16 %v1009, %v1008
      %v1024 = vpack.c.b16 %v1011, %v1010
      %v1025 = vpack.c.b16 %v1013, %v1012
      %v1026 = vpack.c.b16 %v1015, %v1014
      %v1027 = vpack.c.b16 %v1017, %v1016
      %v1028 = vpack.c.b16 %v1019, %v1018
      %v1029 = vpack.c.b16 %v1021, %v1020
      %1038 = vmatpush.bf16.msra.mxu0 %v1029
      %1039 = vmatpush.bf16.msra.mxu0 %v1028
      %1040 = vmatpush.bf16.msra.mxu0 %v1027
      %1041 = vmatpush.bf16.msra.mxu0 %v1026
      %1042 = vmatpush.bf16.msra.mxu0 %v1025
      %1043 = vmatpush.bf16.msra.mxu0 %v1024
      %1044 = vmatpush.bf16.msra.mxu0 %v1023
      %1045 = vmatpush.bf16.msra.mxu0 %v1022
      %1046 = vmatmul.bf16.gmra.mxu0 %v627
      %v1047 = vpop.f32.mrf.mxu0
      %v1048 = vadd.f32 %v911, %v1047
      %v1049 = vpop.f32.mrf.mxu0
      %v1050 = vadd.f32 %v913, %v1049
      %1051 = vmatmul.bf16.gmra.mxu0 %v628
      %v1052 = vpop.f32.mrf.mxu0
      %v1053 = vadd.f32 %v916, %v1052
      %v1054 = vpop.f32.mrf.mxu0
      %v1055 = vadd.f32 %v918, %v1054
      %1056 = vmatmul.bf16.gmra.mxu0 %v629
      %v1057 = vpop.f32.mrf.mxu0
      %v1058 = vadd.f32 %v921, %v1057
      %v1059 = vpop.f32.mrf.mxu0
      %v1060 = vadd.f32 %v923, %v1059
      %1061 = vmatmul.bf16.gmra.mxu0 %v630
      %v1062 = vpop.f32.mrf.mxu0
      %v1063 = vadd.f32 %v926, %v1062
      %v1064 = vpop.f32.mrf.mxu0
      %v1065 = vadd.f32 %v928, %v1064
      %1066 = vmatmul.bf16.gmra.mxu0 %v631
      %v1067 = vpop.f32.mrf.mxu0
      %v1068 = vadd.f32 %v931, %v1067
      %v1069 = vpop.f32.mrf.mxu0
      %v1070 = vadd.f32 %v933, %v1069
      %1071 = vmatmul.bf16.gmra.mxu0 %v632
      %v1072 = vpop.f32.mrf.mxu0
      %v1073 = vadd.f32 %v936, %v1072
      %v1074 = vpop.f32.mrf.mxu0
      %v1075 = vadd.f32 %v938, %v1074
      %1076 = vmatmul.bf16.gmra.mxu0 %v633
      %v1077 = vpop.f32.mrf.mxu0
      %v1078 = vadd.f32 %v941, %v1077
      %v1079 = vpop.f32.mrf.mxu0
      %v1080 = vadd.f32 %v943, %v1079
      %1081 = vmatmul.bf16.gmra.mxu0 %v634
      %v1082 = vpop.f32.mrf.mxu0
      %v1083 = vadd.f32 %v946, %v1082
      %v1084 = vpop.f32.mrf.mxu0
      %v1085 = vadd.f32 %v948, %v1084
      %1086 = vmatmul.bf16.gmra.mxu0 %v635
      %v1087 = vpop.f32.mrf.mxu0
      %v1088 = vadd.f32 %v951, %v1087
      %v1089 = vpop.f32.mrf.mxu0
      %v1090 = vadd.f32 %v953, %v1089
      %1091 = vmatmul.bf16.gmra.mxu0 %v636
      %v1092 = vpop.f32.mrf.mxu0
      %v1093 = vadd.f32 %v956, %v1092
      %v1094 = vpop.f32.mrf.mxu0
      %v1095 = vadd.f32 %v958, %v1094
      %1096 = vmatmul.bf16.gmra.mxu0 %v637
      %v1097 = vpop.f32.mrf.mxu0
      %v1098 = vadd.f32 %v961, %v1097
      %v1099 = vpop.f32.mrf.mxu0
      %v1100 = vadd.f32 %v963, %v1099
      %1101 = vmatmul.bf16.gmra.mxu0 %v638
      %v1102 = vpop.f32.mrf.mxu0
      %v1103 = vadd.f32 %v966, %v1102
      %v1104 = vpop.f32.mrf.mxu0
      %v1105 = vadd.f32 %v968, %v1104
      %1106 = vmatmul.bf16.gmra.mxu0 %v639
      %v1107 = vpop.f32.mrf.mxu0
      %v1108 = vadd.f32 %v971, %v1107
      %v1109 = vpop.f32.mrf.mxu0
      %v1110 = vadd.f32 %v973, %v1109
      %1111 = vmatmul.bf16.gmra.mxu0 %v640
      %v1112 = vpop.f32.mrf.mxu0
      %v1113 = vadd.f32 %v976, %v1112
      %v1114 = vpop.f32.mrf.mxu0
      %v1115 = vadd.f32 %v978, %v1114
      %1116 = vmatmul.bf16.gmra.mxu0 %v641
      %v1117 = vpop.f32.mrf.mxu0
      %v1118 = vadd.f32 %v981, %v1117
      %v1119 = vpop.f32.mrf.mxu0
      %v1120 = vadd.f32 %v983, %v1119
      %1121 = vmatmul.bf16.gmra.mxu0 %v642
      %v1122 = vpop.f32.mrf.mxu0
      %v1123 = vadd.f32 %v986, %v1122
      %v1124 = vpop.f32.mrf.mxu0
      %v1125 = vadd.f32 %v988, %v1124
      %1126 = vdwg.mxu0
      %vm1127 = vcmask 1045504
      %v1128 = vrot.slane %v573, 2
      %v1129 = vrot.slane %v574, 2
      %v1130 = vsel %vm1127, %v1128, %v1129
      %v1131 = vrot.slane %v575, 2
      %v1132 = vsel %vm1127, %v1129, %v1131
      %v1133 = vrot.slane %v576, 2
      %v1134 = vrot.slane %v577, 2
      %v1135 = vsel %vm1127, %v1133, %v1134
      %v1136 = vrot.slane %v578, 2
      %v1137 = vsel %vm1127, %v1134, %v1136
      %v1138 = vrot.slane %v579, 2
      %v1139 = vrot.slane %v580, 2
      %v1140 = vsel %vm1127, %v1138, %v1139
      %v1141 = vrot.slane %v581, 2
      %v1142 = vsel %vm1127, %v1139, %v1141
      %v1143 = vrot.slane %v582, 2
      %v1144 = vrot.slane %v583, 2
      %v1145 = vsel %vm1127, %v1143, %v1144
      %v1146 = vrot.slane %v584, 2
      %v1147 = vsel %vm1127, %v1144, %v1146
      %v1148 = vrot.slane %v585, 2
      %v1149 = vrot.slane %v586, 2
      %v1150 = vsel %vm1127, %v1148, %v1149
      %v1151 = vrot.slane %v587, 2
      %v1152 = vsel %vm1127, %v1149, %v1151
      %v1153 = vrot.slane %v588, 2
      %v1154 = vrot.slane %v589, 2
      %v1155 = vsel %vm1127, %v1153, %v1154
      %v1156 = vrot.slane %v590, 2
      %v1157 = vsel %vm1127, %v1154, %v1156
      %v1158 = vrot.slane %v591, 2
      %v1159 = vrot.slane %v592, 2
      %v1160 = vsel %vm1127, %v1158, %v1159
      %v1161 = vrot.slane %v593, 2
      %v1162 = vsel %vm1127, %v1159, %v1161
      %v1163 = vrot.slane %v594, 2
      %v1164 = vrot.slane %v595, 2
      %v1165 = vsel %vm1127, %v1163, %v1164
      %v1166 = vrot.slane %v596, 2
      %v1167 = vsel %vm1127, %v1164, %v1166
      %v1168 = vrot.slane %v597, 2
      %v1169 = vrot.slane %v598, 2
      %v1170 = vsel %vm1127, %v1168, %v1169
      %v1171 = vrot.slane %v599, 2
      %v1172 = vsel %vm1127, %v1169, %v1171
      %v1173 = vrot.slane %v600, 2
      %v1174 = vrot.slane %v601, 2
      %v1175 = vsel %vm1127, %v1173, %v1174
      %v1176 = vrot.slane %v602, 2
      %v1177 = vsel %vm1127, %v1174, %v1176
      %v1178 = vrot.slane %v603, 2
      %v1179 = vrot.slane %v604, 2
      %v1180 = vsel %vm1127, %v1178, %v1179
      %v1181 = vrot.slane %v605, 2
      %v1182 = vsel %vm1127, %v1179, %v1181
      %v1183 = vrot.slane %v606, 2
      %v1184 = vrot.slane %v607, 2
      %v1185 = vsel %vm1127, %v1183, %v1184
      %v1186 = vrot.slane %v608, 2
      %v1187 = vsel %vm1127, %v1184, %v1186
      %v1188 = vrot.slane %v609, 2
      %v1189 = vrot.slane %v610, 2
      %v1190 = vsel %vm1127, %v1188, %v1189
      %v1191 = vrot.slane %v611, 2
      %v1192 = vsel %vm1127, %v1189, %v1191
      %v1193 = vrot.slane %v612, 2
      %v1194 = vrot.slane %v613, 2
      %v1195 = vsel %vm1127, %v1193, %v1194
      %v1196 = vrot.slane %v614, 2
      %v1197 = vsel %vm1127, %v1194, %v1196
      %v1198 = vrot.slane %v615, 2
      %v1199 = vrot.slane %v616, 2
      %v1200 = vsel %vm1127, %v1198, %v1199
      %v1201 = vrot.slane %v617, 2
      %v1202 = vsel %vm1127, %v1199, %v1201
      %v1203 = vrot.slane %v618, 2
      %v1204 = vrot.slane %v619, 2
      %v1205 = vsel %vm1127, %v1203, %v1204
      %v1206 = vrot.slane %v620, 2
      %v1207 = vsel %vm1127, %v1204, %v1206
      %v1240 = vpack.c.bf16 %v1132, %v1130
      %v1241 = vpack.c.bf16 %v1137, %v1135
      %v1242 = vpack.c.bf16 %v1142, %v1140
      %v1243 = vpack.c.bf16 %v1147, %v1145
      %v1244 = vpack.c.bf16 %v1152, %v1150
      %v1245 = vpack.c.bf16 %v1157, %v1155
      %v1246 = vpack.c.bf16 %v1162, %v1160
      %v1247 = vpack.c.bf16 %v1167, %v1165
      %v1248 = vpack.c.bf16 %v1172, %v1170
      %v1249 = vpack.c.bf16 %v1177, %v1175
      %v1250 = vpack.c.bf16 %v1182, %v1180
      %v1251 = vpack.c.bf16 %v1187, %v1185
      %v1252 = vpack.c.bf16 %v1192, %v1190
      %v1253 = vpack.c.bf16 %v1197, %v1195
      %v1254 = vpack.c.bf16 %v1202, %v1200
      %v1255 = vpack.c.bf16 %v1207, %v1205
      %s1256 = scalar_lea.vmem %s3, 128
      %v1257 = vld [vmem:[%s1256] sm:$0xf]
      %v1258 = vld [vmem:[%s1256 + $0x4] sm:$0xf]
      %v1259 = vld [vmem:[%s1256 + $0x8] sm:$0xf]
      %v1260 = vld [vmem:[%s1256 + $0xc] sm:$0xf]
      %v1261 = vld [vmem:[%s1256 + $0x10] sm:$0xf]
      %v1262 = vld [vmem:[%s1256 + $0x14] sm:$0xf]
      %v1263 = vld [vmem:[%s1256 + $0x18] sm:$0xf]
      %v1264 = vld [vmem:[%s1256 + $0x1c] sm:$0xf]
      %v1265 = vld [vmem:[%s1256 + $0x20] sm:$0xf]
      %v1266 = vld [vmem:[%s1256 + $0x24] sm:$0xf]
      %v1267 = vld [vmem:[%s1256 + $0x28] sm:$0xf]
      %v1268 = vld [vmem:[%s1256 + $0x2c] sm:$0xf]
      %v1269 = vld [vmem:[%s1256 + $0x30] sm:$0xf]
      %v1270 = vld [vmem:[%s1256 + $0x34] sm:$0xf]
      %v1271 = vld [vmem:[%s1256 + $0x38] sm:$0xf]
      %v1272 = vld [vmem:[%s1256 + $0x3c] sm:$0xf]
      %v1289 = vunpack.c.l.b16 %v1257
      %v1290 = vunpack.c.l.b16 %v1258
      %v1291 = vunpack.c.l.b16 %v1259
      %v1292 = vunpack.c.l.b16 %v1260
      %v1293 = vunpack.c.l.b16 %v1261
      %v1294 = vunpack.c.l.b16 %v1262
      %v1295 = vunpack.c.l.b16 %v1263
      %v1296 = vunpack.c.l.b16 %v1264
      %v1297 = vunpack.c.l.b16 %v1265
      %v1298 = vunpack.c.l.b16 %v1266
      %v1299 = vunpack.c.l.b16 %v1267
      %v1300 = vunpack.c.l.b16 %v1268
      %v1301 = vunpack.c.l.b16 %v1269
      %v1302 = vunpack.c.l.b16 %v1270
      %v1303 = vunpack.c.l.b16 %v1271
      %v1304 = vunpack.c.l.b16 %v1272
      %v1305 = vpack.c.b16 %v1290, %v1289
      %v1306 = vpack.c.b16 %v1292, %v1291
      %v1307 = vpack.c.b16 %v1294, %v1293
      %v1308 = vpack.c.b16 %v1296, %v1295
      %v1309 = vpack.c.b16 %v1298, %v1297
      %v1310 = vpack.c.b16 %v1300, %v1299
      %v1311 = vpack.c.b16 %v1302, %v1301
      %v1312 = vpack.c.b16 %v1304, %v1303
      %1321 = vmatpush.bf16.msra.mxu0 %v1312
      %1322 = vmatpush.bf16.msra.mxu0 %v1311
      %1323 = vmatpush.bf16.msra.mxu0 %v1310
      %1324 = vmatpush.bf16.msra.mxu0 %v1309
      %1325 = vmatpush.bf16.msra.mxu0 %v1308
      %1326 = vmatpush.bf16.msra.mxu0 %v1307
      %1327 = vmatpush.bf16.msra.mxu0 %v1306
      %1328 = vmatpush.bf16.msra.mxu0 %v1305
      %1329 = vmatmul.bf16.gmra.mxu0 %v1240
      %v1330 = vpop.f32.mrf.mxu0
      %v1331 = vadd.f32 0.0, %v1330
      %v1332 = vpop.f32.mrf.mxu0
      %v1333 = vadd.f32 0.0, %v1332
      %1334 = vmatmul.bf16.gmra.mxu0 %v1241
      %v1335 = vpop.f32.mrf.mxu0
      %v1336 = vadd.f32 0.0, %v1335
      %v1337 = vpop.f32.mrf.mxu0
      %v1338 = vadd.f32 0.0, %v1337
      %1339 = vmatmul.bf16.gmra.mxu0 %v1242
      %v1340 = vpop.f32.mrf.mxu0
      %v1341 = vadd.f32 0.0, %v1340
      %v1342 = vpop.f32.mrf.mxu0
      %v1343 = vadd.f32 0.0, %v1342
      %1344 = vmatmul.bf16.gmra.mxu0 %v1243
      %v1345 = vpop.f32.mrf.mxu0
      %v1346 = vadd.f32 0.0, %v1345
      %v1347 = vpop.f32.mrf.mxu0
      %v1348 = vadd.f32 0.0, %v1347
      %1349 = vmatmul.bf16.gmra.mxu0 %v1244
      %v1350 = vpop.f32.mrf.mxu0
      %v1351 = vadd.f32 0.0, %v1350
      %v1352 = vpop.f32.mrf.mxu0
      %v1353 = vadd.f32 0.0, %v1352
      %1354 = vmatmul.bf16.gmra.mxu0 %v1245
      %v1355 = vpop.f32.mrf.mxu0
      %v1356 = vadd.f32 0.0, %v1355
      %v1357 = vpop.f32.mrf.mxu0
      %v1358 = vadd.f32 0.0, %v1357
      %1359 = vmatmul.bf16.gmra.mxu0 %v1246
      %v1360 = vpop.f32.mrf.mxu0
      %v1361 = vadd.f32 0.0, %v1360
      %v1362 = vpop.f32.mrf.mxu0
      %v1363 = vadd.f32 0.0, %v1362
      %1364 = vmatmul.bf16.gmra.mxu0 %v1247
      %v1365 = vpop.f32.mrf.mxu0
      %v1366 = vadd.f32 0.0, %v1365
      %v1367 = vpop.f32.mrf.mxu0
      %v1368 = vadd.f32 0.0, %v1367
      %1369 = vmatmul.bf16.gmra.mxu0 %v1248
      %v1370 = vpop.f32.mrf.mxu0
      %v1371 = vadd.f32 0.0, %v1370
      %v1372 = vpop.f32.mrf.mxu0
      %v1373 = vadd.f32 0.0, %v1372
      %1374 = vmatmul.bf16.gmra.mxu0 %v1249
      %v1375 = vpop.f32.mrf.mxu0
      %v1376 = vadd.f32 0.0, %v1375
      %v1377 = vpop.f32.mrf.mxu0
      %v1378 = vadd.f32 0.0, %v1377
      %1379 = vmatmul.bf16.gmra.mxu0 %v1250
      %v1380 = vpop.f32.mrf.mxu0
      %v1381 = vadd.f32 0.0, %v1380
      %v1382 = vpop.f32.mrf.mxu0
      %v1383 = vadd.f32 0.0, %v1382
      %1384 = vmatmul.bf16.gmra.mxu0 %v1251
      %v1385 = vpop.f32.mrf.mxu0
      %v1386 = vadd.f32 0.0, %v1385
      %v1387 = vpop.f32.mrf.mxu0
      %v1388 = vadd.f32 0.0, %v1387
      %1389 = vmatmul.bf16.gmra.mxu0 %v1252
      %v1390 = vpop.f32.mrf.mxu0
      %v1391 = vadd.f32 0.0, %v1390
      %v1392 = vpop.f32.mrf.mxu0
      %v1393 = vadd.f32 0.0, %v1392
      %1394 = vmatmul.bf16.gmra.mxu0 %v1253
      %v1395 = vpop.f32.mrf.mxu0
      %v1396 = vadd.f32 0.0, %v1395
      %v1397 = vpop.f32.mrf.mxu0
      %v1398 = vadd.f32 0.0, %v1397
      %1399 = vmatmul.bf16.gmra.mxu0 %v1254
      %v1400 = vpop.f32.mrf.mxu0
      %v1401 = vadd.f32 0.0, %v1400
      %v1402 = vpop.f32.mrf.mxu0
      %v1403 = vadd.f32 0.0, %v1402
      %1404 = vmatmul.bf16.gmra.mxu0 %v1255
      %v1405 = vpop.f32.mrf.mxu0
      %v1406 = vadd.f32 0.0, %v1405
      %v1407 = vpop.f32.mrf.mxu0
      %v1408 = vadd.f32 0.0, %v1407
      %1409 = vdwg.mxu0
      %v1410 = vadd.f32 %v1048, %v1331
      %v1411 = vadd.f32 %v1050, %v1333
      %v1412 = vadd.f32 %v1053, %v1336
      %v1413 = vadd.f32 %v1055, %v1338
      %v1414 = vadd.f32 %v1058, %v1341
      %v1415 = vadd.f32 %v1060, %v1343
      %v1416 = vadd.f32 %v1063, %v1346
      %v1417 = vadd.f32 %v1065, %v1348
      %v1418 = vadd.f32 %v1068, %v1351
      %v1419 = vadd.f32 %v1070, %v1353
      %v1420 = vadd.f32 %v1073, %v1356
      %v1421 = vadd.f32 %v1075, %v1358
      %v1422 = vadd.f32 %v1078, %v1361
      %v1423 = vadd.f32 %v1080, %v1363
      %v1424 = vadd.f32 %v1083, %v1366
      %v1425 = vadd.f32 %v1085, %v1368
      %v1426 = vadd.f32 %v1088, %v1371
      %v1427 = vadd.f32 %v1090, %v1373
      %v1428 = vadd.f32 %v1093, %v1376
      %v1429 = vadd.f32 %v1095, %v1378
      %v1430 = vadd.f32 %v1098, %v1381
      %v1431 = vadd.f32 %v1100, %v1383
      %v1432 = vadd.f32 %v1103, %v1386
      %v1433 = vadd.f32 %v1105, %v1388
      %v1434 = vadd.f32 %v1108, %v1391
      %v1435 = vadd.f32 %v1110, %v1393
      %v1436 = vadd.f32 %v1113, %v1396
      %v1437 = vadd.f32 %v1115, %v1398
      %v1438 = vadd.f32 %v1118, %v1401
      %v1439 = vadd.f32 %v1120, %v1403
      %v1440 = vadd.f32 %v1123, %v1406
      %v1441 = vadd.f32 %v1125, %v1408
      %v1442 = vpack.c.bf16 %v622, %v621
      %s1443 = scalar_lea.vmem %s3, 192
      %v1444 = vld [vmem:[%s1443] sm:$0xf]
      %v1445 = vld [vmem:[%s1443 + $0x4] sm:$0xf]
      %v1446 = vld [vmem:[%s1443 + $0x8] sm:$0xf]
      %v1447 = vld [vmem:[%s1443 + $0xc] sm:$0xf]
      %v1448 = vld [vmem:[%s1443 + $0x10] sm:$0xf]
      %v1449 = vld [vmem:[%s1443 + $0x14] sm:$0xf]
      %v1450 = vld [vmem:[%s1443 + $0x18] sm:$0xf]
      %v1451 = vld [vmem:[%s1443 + $0x1c] sm:$0xf]
      %v1452 = vld [vmem:[%s1443 + $0x20] sm:$0xf]
      %v1453 = vld [vmem:[%s1443 + $0x24] sm:$0xf]
      %v1454 = vld [vmem:[%s1443 + $0x28] sm:$0xf]
      %v1455 = vld [vmem:[%s1443 + $0x2c] sm:$0xf]
      %v1456 = vld [vmem:[%s1443 + $0x30] sm:$0xf]
      %v1457 = vld [vmem:[%s1443 + $0x34] sm:$0xf]
      %v1458 = vld [vmem:[%s1443 + $0x38] sm:$0xf]
      %v1459 = vld [vmem:[%s1443 + $0x3c] sm:$0xf]
      %v1476 = vunpack.c.l.b16 %v1444
      %v1477 = vunpack.c.l.b16 %v1445
      %v1478 = vunpack.c.l.b16 %v1446
      %v1479 = vunpack.c.l.b16 %v1447
      %v1480 = vunpack.c.l.b16 %v1448
      %v1481 = vunpack.c.l.b16 %v1449
      %v1482 = vunpack.c.l.b16 %v1450
      %v1483 = vunpack.c.l.b16 %v1451
      %v1484 = vunpack.c.l.b16 %v1452
      %v1485 = vunpack.c.l.b16 %v1453
      %v1486 = vunpack.c.l.b16 %v1454
      %v1487 = vunpack.c.l.b16 %v1455
      %v1488 = vunpack.c.l.b16 %v1456
      %v1489 = vunpack.c.l.b16 %v1457
      %v1490 = vunpack.c.l.b16 %v1458
      %v1491 = vunpack.c.l.b16 %v1459
      %v1492 = vpack.c.b16 %v1477, %v1476
      %v1493 = vpack.c.b16 %v1479, %v1478
      %v1494 = vpack.c.b16 %v1481, %v1480
      %v1495 = vpack.c.b16 %v1483, %v1482
      %v1496 = vpack.c.b16 %v1485, %v1484
      %v1497 = vpack.c.b16 %v1487, %v1486
      %v1498 = vpack.c.b16 %v1489, %v1488
      %v1499 = vpack.c.b16 %v1491, %v1490
      %1508 = vmatpush.bf16.msra.mxu0 %v1499
      %1509 = vmatpush.bf16.msra.mxu0 %v1498
      %1510 = vmatpush.bf16.msra.mxu0 %v1497
      %1511 = vmatpush.bf16.msra.mxu0 %v1496
      %1512 = vmatpush.bf16.msra.mxu0 %v1495
      %1513 = vmatpush.bf16.msra.mxu0 %v1494
      %1514 = vmatpush.bf16.msra.mxu0 %v1493
      %1515 = vmatpush.bf16.msra.mxu0 %v1492
      %1516 = vmatmul.bf16.gmra.mxu0 %v628
      %v1517 = vpop.f32.mrf.mxu0
      %v1518 = vadd.f32 0.0, %v1517
      %v1519 = vpop.f32.mrf.mxu0
      %v1520 = vadd.f32 0.0, %v1519
      %1521 = vmatmul.bf16.gmra.mxu0 %v629
      %v1522 = vpop.f32.mrf.mxu0
      %v1523 = vadd.f32 0.0, %v1522
      %v1524 = vpop.f32.mrf.mxu0
      %v1525 = vadd.f32 0.0, %v1524
      %1526 = vmatmul.bf16.gmra.mxu0 %v630
      %v1527 = vpop.f32.mrf.mxu0
      %v1528 = vadd.f32 0.0, %v1527
      %v1529 = vpop.f32.mrf.mxu0
      %v1530 = vadd.f32 0.0, %v1529
      %1531 = vmatmul.bf16.gmra.mxu0 %v631
      %v1532 = vpop.f32.mrf.mxu0
      %v1533 = vadd.f32 0.0, %v1532
      %v1534 = vpop.f32.mrf.mxu0
      %v1535 = vadd.f32 0.0, %v1534
      %1536 = vmatmul.bf16.gmra.mxu0 %v632
      %v1537 = vpop.f32.mrf.mxu0
      %v1538 = vadd.f32 0.0, %v1537
      %v1539 = vpop.f32.mrf.mxu0
      %v1540 = vadd.f32 0.0, %v1539
      %1541 = vmatmul.bf16.gmra.mxu0 %v633
      %v1542 = vpop.f32.mrf.mxu0
      %v1543 = vadd.f32 0.0, %v1542
      %v1544 = vpop.f32.mrf.mxu0
      %v1545 = vadd.f32 0.0, %v1544
      %1546 = vmatmul.bf16.gmra.mxu0 %v634
      %v1547 = vpop.f32.mrf.mxu0
      %v1548 = vadd.f32 0.0, %v1547
      %v1549 = vpop.f32.mrf.mxu0
      %v1550 = vadd.f32 0.0, %v1549
      %1551 = vmatmul.bf16.gmra.mxu0 %v635
      %v1552 = vpop.f32.mrf.mxu0
      %v1553 = vadd.f32 0.0, %v1552
      %v1554 = vpop.f32.mrf.mxu0
      %v1555 = vadd.f32 0.0, %v1554
      %1556 = vmatmul.bf16.gmra.mxu0 %v636
      %v1557 = vpop.f32.mrf.mxu0
      %v1558 = vadd.f32 0.0, %v1557
      %v1559 = vpop.f32.mrf.mxu0
      %v1560 = vadd.f32 0.0, %v1559
      %1561 = vmatmul.bf16.gmra.mxu0 %v637
      %v1562 = vpop.f32.mrf.mxu0
      %v1563 = vadd.f32 0.0, %v1562
      %v1564 = vpop.f32.mrf.mxu0
      %v1565 = vadd.f32 0.0, %v1564
      %1566 = vmatmul.bf16.gmra.mxu0 %v638
      %v1567 = vpop.f32.mrf.mxu0
      %v1568 = vadd.f32 0.0, %v1567
      %v1569 = vpop.f32.mrf.mxu0
      %v1570 = vadd.f32 0.0, %v1569
      %1571 = vmatmul.bf16.gmra.mxu0 %v639
      %v1572 = vpop.f32.mrf.mxu0
      %v1573 = vadd.f32 0.0, %v1572
      %v1574 = vpop.f32.mrf.mxu0
      %v1575 = vadd.f32 0.0, %v1574
      %1576 = vmatmul.bf16.gmra.mxu0 %v640
      %v1577 = vpop.f32.mrf.mxu0
      %v1578 = vadd.f32 0.0, %v1577
      %v1579 = vpop.f32.mrf.mxu0
      %v1580 = vadd.f32 0.0, %v1579
      %1581 = vmatmul.bf16.gmra.mxu0 %v641
      %v1582 = vpop.f32.mrf.mxu0
      %v1583 = vadd.f32 0.0, %v1582
      %v1584 = vpop.f32.mrf.mxu0
      %v1585 = vadd.f32 0.0, %v1584
      %1586 = vmatmul.bf16.gmra.mxu0 %v642
      %v1587 = vpop.f32.mrf.mxu0
      %v1588 = vadd.f32 0.0, %v1587
      %v1589 = vpop.f32.mrf.mxu0
      %v1590 = vadd.f32 0.0, %v1589
      %1591 = vmatmul.bf16.gmra.mxu0 %v1442
      %v1592 = vpop.f32.mrf.mxu0
      %v1593 = vadd.f32 0.0, %v1592
      %v1594 = vpop.f32.mrf.mxu0
      %v1595 = vadd.f32 0.0, %v1594
      %1596 = vdwg.mxu0
      %v1597 = vadd.f32 %v1410, %v1518
      %v1598 = vadd.f32 %v1411, %v1520
      %v1599 = vadd.f32 %v1412, %v1523
      %v1600 = vadd.f32 %v1413, %v1525
      %v1601 = vadd.f32 %v1414, %v1528
      %v1602 = vadd.f32 %v1415, %v1530
      %v1603 = vadd.f32 %v1416, %v1533
      %v1604 = vadd.f32 %v1417, %v1535
      %v1605 = vadd.f32 %v1418, %v1538
      %v1606 = vadd.f32 %v1419, %v1540
      %v1607 = vadd.f32 %v1420, %v1543
      %v1608 = vadd.f32 %v1421, %v1545
      %v1609 = vadd.f32 %v1422, %v1548
      %v1610 = vadd.f32 %v1423, %v1550
      %v1611 = vadd.f32 %v1424, %v1553
      %v1612 = vadd.f32 %v1425, %v1555
      %v1613 = vadd.f32 %v1426, %v1558
      %v1614 = vadd.f32 %v1427, %v1560
      %v1615 = vadd.f32 %v1428, %v1563
      %v1616 = vadd.f32 %v1429, %v1565
      %v1617 = vadd.f32 %v1430, %v1568
      %v1618 = vadd.f32 %v1431, %v1570
      %v1619 = vadd.f32 %v1432, %v1573
      %v1620 = vadd.f32 %v1433, %v1575
      %v1621 = vadd.f32 %v1434, %v1578
      %v1622 = vadd.f32 %v1435, %v1580
      %v1623 = vadd.f32 %v1436, %v1583
      %v1624 = vadd.f32 %v1437, %v1585
      %v1625 = vadd.f32 %v1438, %v1588
      %v1626 = vadd.f32 %v1439, %v1590
      %v1627 = vadd.f32 %v1440, %v1593
      %v1628 = vadd.f32 %v1441, %v1595
      %v1632 = vrot.slane %v621, 1
      %v1633 = vrot.slane %v622, 1
      %v1634 = vsel %vm707, %v1632, %v1633
      %v1635 = vrot.slane %v623, 1
      %v1636 = vsel %vm707, %v1633, %v1635
      %v1639 = vpack.c.bf16 %v1636, %v1634
      %s1640 = scalar_lea.vmem %s3, 256
      %v1641 = vld [vmem:[%s1640] sm:$0xf]
      %v1642 = vld [vmem:[%s1640 + $0x4] sm:$0xf]
      %v1643 = vld [vmem:[%s1640 + $0x8] sm:$0xf]
      %v1644 = vld [vmem:[%s1640 + $0xc] sm:$0xf]
      %v1645 = vld [vmem:[%s1640 + $0x10] sm:$0xf]
      %v1646 = vld [vmem:[%s1640 + $0x14] sm:$0xf]
      %v1647 = vld [vmem:[%s1640 + $0x18] sm:$0xf]
      %v1648 = vld [vmem:[%s1640 + $0x1c] sm:$0xf]
      %v1649 = vld [vmem:[%s1640 + $0x20] sm:$0xf]
      %v1650 = vld [vmem:[%s1640 + $0x24] sm:$0xf]
      %v1651 = vld [vmem:[%s1640 + $0x28] sm:$0xf]
      %v1652 = vld [vmem:[%s1640 + $0x2c] sm:$0xf]
      %v1653 = vld [vmem:[%s1640 + $0x30] sm:$0xf]
      %v1654 = vld [vmem:[%s1640 + $0x34] sm:$0xf]
      %v1655 = vld [vmem:[%s1640 + $0x38] sm:$0xf]
      %v1656 = vld [vmem:[%s1640 + $0x3c] sm:$0xf]
      %v1673 = vunpack.c.l.b16 %v1641
      %v1674 = vunpack.c.l.b16 %v1642
      %v1675 = vunpack.c.l.b16 %v1643
      %v1676 = vunpack.c.l.b16 %v1644
      %v1677 = vunpack.c.l.b16 %v1645
      %v1678 = vunpack.c.l.b16 %v1646
      %v1679 = vunpack.c.l.b16 %v1647
      %v1680 = vunpack.c.l.b16 %v1648
      %v1681 = vunpack.c.l.b16 %v1649
      %v1682 = vunpack.c.l.b16 %v1650
      %v1683 = vunpack.c.l.b16 %v1651
      %v1684 = vunpack.c.l.b16 %v1652
      %v1685 = vunpack.c.l.b16 %v1653
      %v1686 = vunpack.c.l.b16 %v1654
      %v1687 = vunpack.c.l.b16 %v1655
      %v1688 = vunpack.c.l.b16 %v1656
      %v1689 = vpack.c.b16 %v1674, %v1673
      %v1690 = vpack.c.b16 %v1676, %v1675
      %v1691 = vpack.c.b16 %v1678, %v1677
      %v1692 = vpack.c.b16 %v1680, %v1679
      %v1693 = vpack.c.b16 %v1682, %v1681
      %v1694 = vpack.c.b16 %v1684, %v1683
      %v1695 = vpack.c.b16 %v1686, %v1685
      %v1696 = vpack.c.b16 %v1688, %v1687
      %1705 = vmatpush.bf16.msra.mxu0 %v1696
      %1706 = vmatpush.bf16.msra.mxu0 %v1695
      %1707 = vmatpush.bf16.msra.mxu0 %v1694
      %1708 = vmatpush.bf16.msra.mxu0 %v1693
      %1709 = vmatpush.bf16.msra.mxu0 %v1692
      %1710 = vmatpush.bf16.msra.mxu0 %v1691
      %1711 = vmatpush.bf16.msra.mxu0 %v1690
      %1712 = vmatpush.bf16.msra.mxu0 %v1689
      %1713 = vmatmul.bf16.gmra.mxu0 %v821
      %v1714 = vpop.f32.mrf.mxu0
      %v1715 = vadd.f32 0.0, %v1714
      %v1716 = vpop.f32.mrf.mxu0
      %v1717 = vadd.f32 0.0, %v1716
      %1718 = vmatmul.bf16.gmra.mxu0 %v822
      %v1719 = vpop.f32.mrf.mxu0
      %v1720 = vadd.f32 0.0, %v1719
      %v1721 = vpop.f32.mrf.mxu0
      %v1722 = vadd.f32 0.0, %v1721
      %1723 = vmatmul.bf16.gmra.mxu0 %v823
      %v1724 = vpop.f32.mrf.mxu0
      %v1725 = vadd.f32 0.0, %v1724
      %v1726 = vpop.f32.mrf.mxu0
      %v1727 = vadd.f32 0.0, %v1726
      %1728 = vmatmul.bf16.gmra.mxu0 %v824
      %v1729 = vpop.f32.mrf.mxu0
      %v1730 = vadd.f32 0.0, %v1729
      %v1731 = vpop.f32.mrf.mxu0
      %v1732 = vadd.f32 0.0, %v1731
      %1733 = vmatmul.bf16.gmra.mxu0 %v825
      %v1734 = vpop.f32.mrf.mxu0
      %v1735 = vadd.f32 0.0, %v1734
      %v1736 = vpop.f32.mrf.mxu0
      %v1737 = vadd.f32 0.0, %v1736
      %1738 = vmatmul.bf16.gmra.mxu0 %v826
      %v1739 = vpop.f32.mrf.mxu0
      %v1740 = vadd.f32 0.0, %v1739
      %v1741 = vpop.f32.mrf.mxu0
      %v1742 = vadd.f32 0.0, %v1741
      %1743 = vmatmul.bf16.gmra.mxu0 %v827
      %v1744 = vpop.f32.mrf.mxu0
      %v1745 = vadd.f32 0.0, %v1744
      %v1746 = vpop.f32.mrf.mxu0
      %v1747 = vadd.f32 0.0, %v1746
      %1748 = vmatmul.bf16.gmra.mxu0 %v828
      %v1749 = vpop.f32.mrf.mxu0
      %v1750 = vadd.f32 0.0, %v1749
      %v1751 = vpop.f32.mrf.mxu0
      %v1752 = vadd.f32 0.0, %v1751
      %1753 = vmatmul.bf16.gmra.mxu0 %v829
      %v1754 = vpop.f32.mrf.mxu0
      %v1755 = vadd.f32 0.0, %v1754
      %v1756 = vpop.f32.mrf.mxu0
      %v1757 = vadd.f32 0.0, %v1756
      %1758 = vmatmul.bf16.gmra.mxu0 %v830
      %v1759 = vpop.f32.mrf.mxu0
      %v1760 = vadd.f32 0.0, %v1759
      %v1761 = vpop.f32.mrf.mxu0
      %v1762 = vadd.f32 0.0, %v1761
      %1763 = vmatmul.bf16.gmra.mxu0 %v831
      %v1764 = vpop.f32.mrf.mxu0
      %v1765 = vadd.f32 0.0, %v1764
      %v1766 = vpop.f32.mrf.mxu0
      %v1767 = vadd.f32 0.0, %v1766
      %1768 = vmatmul.bf16.gmra.mxu0 %v832
      %v1769 = vpop.f32.mrf.mxu0
      %v1770 = vadd.f32 0.0, %v1769
      %v1771 = vpop.f32.mrf.mxu0
      %v1772 = vadd.f32 0.0, %v1771
      %1773 = vmatmul.bf16.gmra.mxu0 %v833
      %v1774 = vpop.f32.mrf.mxu0
      %v1775 = vadd.f32 0.0, %v1774
      %v1776 = vpop.f32.mrf.mxu0
      %v1777 = vadd.f32 0.0, %v1776
      %1778 = vmatmul.bf16.gmra.mxu0 %v834
      %v1779 = vpop.f32.mrf.mxu0
      %v1780 = vadd.f32 0.0, %v1779
      %v1781 = vpop.f32.mrf.mxu0
      %v1782 = vadd.f32 0.0, %v1781
      %1783 = vmatmul.bf16.gmra.mxu0 %v835
      %v1784 = vpop.f32.mrf.mxu0
      %v1785 = vadd.f32 0.0, %v1784
      %v1786 = vpop.f32.mrf.mxu0
      %v1787 = vadd.f32 0.0, %v1786
      %1788 = vmatmul.bf16.gmra.mxu0 %v1639
      %v1789 = vpop.f32.mrf.mxu0
      %v1790 = vadd.f32 0.0, %v1789
      %v1791 = vpop.f32.mrf.mxu0
      %v1792 = vadd.f32 0.0, %v1791
      %1793 = vdwg.mxu0
      %v1794 = vadd.f32 %v1597, %v1715
      %v1795 = vadd.f32 %v1598, %v1717
      %v1796 = vadd.f32 %v1599, %v1720
      %v1797 = vadd.f32 %v1600, %v1722
      %v1798 = vadd.f32 %v1601, %v1725
      %v1799 = vadd.f32 %v1602, %v1727
      %v1800 = vadd.f32 %v1603, %v1730
      %v1801 = vadd.f32 %v1604, %v1732
      %v1802 = vadd.f32 %v1605, %v1735
      %v1803 = vadd.f32 %v1606, %v1737
      %v1804 = vadd.f32 %v1607, %v1740
      %v1805 = vadd.f32 %v1608, %v1742
      %v1806 = vadd.f32 %v1609, %v1745
      %v1807 = vadd.f32 %v1610, %v1747
      %v1808 = vadd.f32 %v1611, %v1750
      %v1809 = vadd.f32 %v1612, %v1752
      %v1810 = vadd.f32 %v1613, %v1755
      %v1811 = vadd.f32 %v1614, %v1757
      %v1812 = vadd.f32 %v1615, %v1760
      %v1813 = vadd.f32 %v1616, %v1762
      %v1814 = vadd.f32 %v1617, %v1765
      %v1815 = vadd.f32 %v1618, %v1767
      %v1816 = vadd.f32 %v1619, %v1770
      %v1817 = vadd.f32 %v1620, %v1772
      %v1818 = vadd.f32 %v1621, %v1775
      %v1819 = vadd.f32 %v1622, %v1777
      %v1820 = vadd.f32 %v1623, %v1780
      %v1821 = vadd.f32 %v1624, %v1782
      %v1822 = vadd.f32 %v1625, %v1785
      %v1823 = vadd.f32 %v1626, %v1787
      %v1824 = vadd.f32 %v1627, %v1790
      %v1825 = vadd.f32 %v1628, %v1792
      %v1826 = vrot.slane %v621, 2
      %v1827 = vrot.slane %v622, 2
      %v1828 = vsel %vm1127, %v1826, %v1827
      %v1829 = vrot.slane %v623, 2
      %v1830 = vsel %vm1127, %v1827, %v1829
      %v1833 = vpack.c.bf16 %v1830, %v1828
      %s1834 = scalar_lea.vmem %s3, 320
      %v1835 = vld [vmem:[%s1834] sm:$0xf]
      %v1836 = vld [vmem:[%s1834 + $0x4] sm:$0xf]
      %v1837 = vld [vmem:[%s1834 + $0x8] sm:$0xf]
      %v1838 = vld [vmem:[%s1834 + $0xc] sm:$0xf]
      %v1839 = vld [vmem:[%s1834 + $0x10] sm:$0xf]
      %v1840 = vld [vmem:[%s1834 + $0x14] sm:$0xf]
      %v1841 = vld [vmem:[%s1834 + $0x18] sm:$0xf]
      %v1842 = vld [vmem:[%s1834 + $0x1c] sm:$0xf]
      %v1843 = vld [vmem:[%s1834 + $0x20] sm:$0xf]
      %v1844 = vld [vmem:[%s1834 + $0x24] sm:$0xf]
      %v1845 = vld [vmem:[%s1834 + $0x28] sm:$0xf]
      %v1846 = vld [vmem:[%s1834 + $0x2c] sm:$0xf]
      %v1847 = vld [vmem:[%s1834 + $0x30] sm:$0xf]
      %v1848 = vld [vmem:[%s1834 + $0x34] sm:$0xf]
      %v1849 = vld [vmem:[%s1834 + $0x38] sm:$0xf]
      %v1850 = vld [vmem:[%s1834 + $0x3c] sm:$0xf]
      %v1867 = vunpack.c.l.b16 %v1835
      %v1868 = vunpack.c.l.b16 %v1836
      %v1869 = vunpack.c.l.b16 %v1837
      %v1870 = vunpack.c.l.b16 %v1838
      %v1871 = vunpack.c.l.b16 %v1839
      %v1872 = vunpack.c.l.b16 %v1840
      %v1873 = vunpack.c.l.b16 %v1841
      %v1874 = vunpack.c.l.b16 %v1842
      %v1875 = vunpack.c.l.b16 %v1843
      %v1876 = vunpack.c.l.b16 %v1844
      %v1877 = vunpack.c.l.b16 %v1845
      %v1878 = vunpack.c.l.b16 %v1846
      %v1879 = vunpack.c.l.b16 %v1847
      %v1880 = vunpack.c.l.b16 %v1848
      %v1881 = vunpack.c.l.b16 %v1849
      %v1882 = vunpack.c.l.b16 %v1850
      %v1883 = vpack.c.b16 %v1868, %v1867
      %v1884 = vpack.c.b16 %v1870, %v1869
      %v1885 = vpack.c.b16 %v1872, %v1871
      %v1886 = vpack.c.b16 %v1874, %v1873
      %v1887 = vpack.c.b16 %v1876, %v1875
      %v1888 = vpack.c.b16 %v1878, %v1877
      %v1889 = vpack.c.b16 %v1880, %v1879
      %v1890 = vpack.c.b16 %v1882, %v1881
      %1899 = vmatpush.bf16.msra.mxu0 %v1890
      %1900 = vmatpush.bf16.msra.mxu0 %v1889
      %1901 = vmatpush.bf16.msra.mxu0 %v1888
      %1902 = vmatpush.bf16.msra.mxu0 %v1887
      %1903 = vmatpush.bf16.msra.mxu0 %v1886
      %1904 = vmatpush.bf16.msra.mxu0 %v1885
      %1905 = vmatpush.bf16.msra.mxu0 %v1884
      %1906 = vmatpush.bf16.msra.mxu0 %v1883
      %1907 = vmatmul.bf16.gmra.mxu0 %v1241
      %v1908 = vpop.f32.mrf.mxu0
      %v1909 = vadd.f32 0.0, %v1908
      %v1910 = vpop.f32.mrf.mxu0
      %v1911 = vadd.f32 0.0, %v1910
      %1912 = vmatmul.bf16.gmra.mxu0 %v1242
      %v1913 = vpop.f32.mrf.mxu0
      %v1914 = vadd.f32 0.0, %v1913
      %v1915 = vpop.f32.mrf.mxu0
      %v1916 = vadd.f32 0.0, %v1915
      %1917 = vmatmul.bf16.gmra.mxu0 %v1243
      %v1918 = vpop.f32.mrf.mxu0
      %v1919 = vadd.f32 0.0, %v1918
      %v1920 = vpop.f32.mrf.mxu0
      %v1921 = vadd.f32 0.0, %v1920
      %1922 = vmatmul.bf16.gmra.mxu0 %v1244
      %v1923 = vpop.f32.mrf.mxu0
      %v1924 = vadd.f32 0.0, %v1923
      %v1925 = vpop.f32.mrf.mxu0
      %v1926 = vadd.f32 0.0, %v1925
      %1927 = vmatmul.bf16.gmra.mxu0 %v1245
      %v1928 = vpop.f32.mrf.mxu0
      %v1929 = vadd.f32 0.0, %v1928
      %v1930 = vpop.f32.mrf.mxu0
      %v1931 = vadd.f32 0.0, %v1930
      %1932 = vmatmul.bf16.gmra.mxu0 %v1246
      %v1933 = vpop.f32.mrf.mxu0
      %v1934 = vadd.f32 0.0, %v1933
      %v1935 = vpop.f32.mrf.mxu0
      %v1936 = vadd.f32 0.0, %v1935
      %1937 = vmatmul.bf16.gmra.mxu0 %v1247
      %v1938 = vpop.f32.mrf.mxu0
      %v1939 = vadd.f32 0.0, %v1938
      %v1940 = vpop.f32.mrf.mxu0
      %v1941 = vadd.f32 0.0, %v1940
      %1942 = vmatmul.bf16.gmra.mxu0 %v1248
      %v1943 = vpop.f32.mrf.mxu0
      %v1944 = vadd.f32 0.0, %v1943
      %v1945 = vpop.f32.mrf.mxu0
      %v1946 = vadd.f32 0.0, %v1945
      %1947 = vmatmul.bf16.gmra.mxu0 %v1249
      %v1948 = vpop.f32.mrf.mxu0
      %v1949 = vadd.f32 0.0, %v1948
      %v1950 = vpop.f32.mrf.mxu0
      %v1951 = vadd.f32 0.0, %v1950
      %1952 = vmatmul.bf16.gmra.mxu0 %v1250
      %v1953 = vpop.f32.mrf.mxu0
      %v1954 = vadd.f32 0.0, %v1953
      %v1955 = vpop.f32.mrf.mxu0
      %v1956 = vadd.f32 0.0, %v1955
      %1957 = vmatmul.bf16.gmra.mxu0 %v1251
      %v1958 = vpop.f32.mrf.mxu0
      %v1959 = vadd.f32 0.0, %v1958
      %v1960 = vpop.f32.mrf.mxu0
      %v1961 = vadd.f32 0.0, %v1960
      %1962 = vmatmul.bf16.gmra.mxu0 %v1252
      %v1963 = vpop.f32.mrf.mxu0
      %v1964 = vadd.f32 0.0, %v1963
      %v1965 = vpop.f32.mrf.mxu0
      %v1966 = vadd.f32 0.0, %v1965
      %1967 = vmatmul.bf16.gmra.mxu0 %v1253
      %v1968 = vpop.f32.mrf.mxu0
      %v1969 = vadd.f32 0.0, %v1968
      %v1970 = vpop.f32.mrf.mxu0
      %v1971 = vadd.f32 0.0, %v1970
      %1972 = vmatmul.bf16.gmra.mxu0 %v1254
      %v1973 = vpop.f32.mrf.mxu0
      %v1974 = vadd.f32 0.0, %v1973
      %v1975 = vpop.f32.mrf.mxu0
      %v1976 = vadd.f32 0.0, %v1975
      %1977 = vmatmul.bf16.gmra.mxu0 %v1255
      %v1978 = vpop.f32.mrf.mxu0
      %v1979 = vadd.f32 0.0, %v1978
      %v1980 = vpop.f32.mrf.mxu0
      %v1981 = vadd.f32 0.0, %v1980
      %1982 = vmatmul.bf16.gmra.mxu0 %v1833
      %v1983 = vpop.f32.mrf.mxu0
      %v1984 = vadd.f32 0.0, %v1983
      %v1985 = vpop.f32.mrf.mxu0
      %v1986 = vadd.f32 0.0, %v1985
      %1987 = vdwg.mxu0
      %v1988 = vadd.f32 %v1794, %v1909
      %v1989 = vadd.f32 %v1795, %v1911
      %v1990 = vadd.f32 %v1796, %v1914
      %v1991 = vadd.f32 %v1797, %v1916
      %v1992 = vadd.f32 %v1798, %v1919
      %v1993 = vadd.f32 %v1799, %v1921
      %v1994 = vadd.f32 %v1800, %v1924
      %v1995 = vadd.f32 %v1801, %v1926
      %v1996 = vadd.f32 %v1802, %v1929
      %v1997 = vadd.f32 %v1803, %v1931
      %v1998 = vadd.f32 %v1804, %v1934
      %v1999 = vadd.f32 %v1805, %v1936
      %v2000 = vadd.f32 %v1806, %v1939
      %v2001 = vadd.f32 %v1807, %v1941
      %v2002 = vadd.f32 %v1808, %v1944
      %v2003 = vadd.f32 %v1809, %v1946
      %v2004 = vadd.f32 %v1810, %v1949
      %v2005 = vadd.f32 %v1811, %v1951
      %v2006 = vadd.f32 %v1812, %v1954
      %v2007 = vadd.f32 %v1813, %v1956
      %v2008 = vadd.f32 %v1814, %v1959
      %v2009 = vadd.f32 %v1815, %v1961
      %v2010 = vadd.f32 %v1816, %v1964
      %v2011 = vadd.f32 %v1817, %v1966
      %v2012 = vadd.f32 %v1818, %v1969
      %v2013 = vadd.f32 %v1819, %v1971
      %v2014 = vadd.f32 %v1820, %v1974
      %v2015 = vadd.f32 %v1821, %v1976
      %v2016 = vadd.f32 %v1822, %v1979
      %v2017 = vadd.f32 %v1823, %v1981
      %v2018 = vadd.f32 %v1824, %v1984
      %v2019 = vadd.f32 %v1825, %v1986
      %v2020 = vpack.c.bf16 %v625, %v624
      %s2021 = scalar_lea.vmem %s3, 384
      %v2022 = vld [vmem:[%s2021] sm:$0xf]
      %v2023 = vld [vmem:[%s2021 + $0x4] sm:$0xf]
      %v2024 = vld [vmem:[%s2021 + $0x8] sm:$0xf]
      %v2025 = vld [vmem:[%s2021 + $0xc] sm:$0xf]
      %v2026 = vld [vmem:[%s2021 + $0x10] sm:$0xf]
      %v2027 = vld [vmem:[%s2021 + $0x14] sm:$0xf]
      %v2028 = vld [vmem:[%s2021 + $0x18] sm:$0xf]
      %v2029 = vld [vmem:[%s2021 + $0x1c] sm:$0xf]
      %v2030 = vld [vmem:[%s2021 + $0x20] sm:$0xf]
      %v2031 = vld [vmem:[%s2021 + $0x24] sm:$0xf]
      %v2032 = vld [vmem:[%s2021 + $0x28] sm:$0xf]
      %v2033 = vld [vmem:[%s2021 + $0x2c] sm:$0xf]
      %v2034 = vld [vmem:[%s2021 + $0x30] sm:$0xf]
      %v2035 = vld [vmem:[%s2021 + $0x34] sm:$0xf]
      %v2036 = vld [vmem:[%s2021 + $0x38] sm:$0xf]
      %v2037 = vld [vmem:[%s2021 + $0x3c] sm:$0xf]
      %v2054 = vunpack.c.l.b16 %v2022
      %v2055 = vunpack.c.l.b16 %v2023
      %v2056 = vunpack.c.l.b16 %v2024
      %v2057 = vunpack.c.l.b16 %v2025
      %v2058 = vunpack.c.l.b16 %v2026
      %v2059 = vunpack.c.l.b16 %v2027
      %v2060 = vunpack.c.l.b16 %v2028
      %v2061 = vunpack.c.l.b16 %v2029
      %v2062 = vunpack.c.l.b16 %v2030
      %v2063 = vunpack.c.l.b16 %v2031
      %v2064 = vunpack.c.l.b16 %v2032
      %v2065 = vunpack.c.l.b16 %v2033
      %v2066 = vunpack.c.l.b16 %v2034
      %v2067 = vunpack.c.l.b16 %v2035
      %v2068 = vunpack.c.l.b16 %v2036
      %v2069 = vunpack.c.l.b16 %v2037
      %v2070 = vpack.c.b16 %v2055, %v2054
      %v2071 = vpack.c.b16 %v2057, %v2056
      %v2072 = vpack.c.b16 %v2059, %v2058
      %v2073 = vpack.c.b16 %v2061, %v2060
      %v2074 = vpack.c.b16 %v2063, %v2062
      %v2075 = vpack.c.b16 %v2065, %v2064
      %v2076 = vpack.c.b16 %v2067, %v2066
      %v2077 = vpack.c.b16 %v2069, %v2068
      %2086 = vmatpush.bf16.msra.mxu0 %v2077
      %2087 = vmatpush.bf16.msra.mxu0 %v2076
      %2088 = vmatpush.bf16.msra.mxu0 %v2075
      %2089 = vmatpush.bf16.msra.mxu0 %v2074
      %2090 = vmatpush.bf16.msra.mxu0 %v2073
      %2091 = vmatpush.bf16.msra.mxu0 %v2072
      %2092 = vmatpush.bf16.msra.mxu0 %v2071
      %2093 = vmatpush.bf16.msra.mxu0 %v2070
      %2094 = vmatmul.bf16.gmra.mxu0 %v629
      %v2095 = vpop.f32.mrf.mxu0
      %v2096 = vadd.f32 0.0, %v2095
      %v2097 = vpop.f32.mrf.mxu0
      %v2098 = vadd.f32 0.0, %v2097
      %2099 = vmatmul.bf16.gmra.mxu0 %v630
      %v2100 = vpop.f32.mrf.mxu0
      %v2101 = vadd.f32 0.0, %v2100
      %v2102 = vpop.f32.mrf.mxu0
      %v2103 = vadd.f32 0.0, %v2102
      %2104 = vmatmul.bf16.gmra.mxu0 %v631
      %v2105 = vpop.f32.mrf.mxu0
      %v2106 = vadd.f32 0.0, %v2105
      %v2107 = vpop.f32.mrf.mxu0
      %v2108 = vadd.f32 0.0, %v2107
      %2109 = vmatmul.bf16.gmra.mxu0 %v632
      %v2110 = vpop.f32.mrf.mxu0
      %v2111 = vadd.f32 0.0, %v2110
      %v2112 = vpop.f32.mrf.mxu0
      %v2113 = vadd.f32 0.0, %v2112
      %2114 = vmatmul.bf16.gmra.mxu0 %v633
      %v2115 = vpop.f32.mrf.mxu0
      %v2116 = vadd.f32 0.0, %v2115
      %v2117 = vpop.f32.mrf.mxu0
      %v2118 = vadd.f32 0.0, %v2117
      %2119 = vmatmul.bf16.gmra.mxu0 %v634
      %v2120 = vpop.f32.mrf.mxu0
      %v2121 = vadd.f32 0.0, %v2120
      %v2122 = vpop.f32.mrf.mxu0
      %v2123 = vadd.f32 0.0, %v2122
      %2124 = vmatmul.bf16.gmra.mxu0 %v635
      %v2125 = vpop.f32.mrf.mxu0
      %v2126 = vadd.f32 0.0, %v2125
      %v2127 = vpop.f32.mrf.mxu0
      %v2128 = vadd.f32 0.0, %v2127
      %2129 = vmatmul.bf16.gmra.mxu0 %v636
      %v2130 = vpop.f32.mrf.mxu0
      %v2131 = vadd.f32 0.0, %v2130
      %v2132 = vpop.f32.mrf.mxu0
      %v2133 = vadd.f32 0.0, %v2132
      %2134 = vmatmul.bf16.gmra.mxu0 %v637
      %v2135 = vpop.f32.mrf.mxu0
      %v2136 = vadd.f32 0.0, %v2135
      %v2137 = vpop.f32.mrf.mxu0
      %v2138 = vadd.f32 0.0, %v2137
      %2139 = vmatmul.bf16.gmra.mxu0 %v638
      %v2140 = vpop.f32.mrf.mxu0
      %v2141 = vadd.f32 0.0, %v2140
      %v2142 = vpop.f32.mrf.mxu0
      %v2143 = vadd.f32 0.0, %v2142
      %2144 = vmatmul.bf16.gmra.mxu0 %v639
      %v2145 = vpop.f32.mrf.mxu0
      %v2146 = vadd.f32 0.0, %v2145
      %v2147 = vpop.f32.mrf.mxu0
      %v2148 = vadd.f32 0.0, %v2147
      %2149 = vmatmul.bf16.gmra.mxu0 %v640
      %v2150 = vpop.f32.mrf.mxu0
      %v2151 = vadd.f32 0.0, %v2150
      %v2152 = vpop.f32.mrf.mxu0
      %v2153 = vadd.f32 0.0, %v2152
      %2154 = vmatmul.bf16.gmra.mxu0 %v641
      %v2155 = vpop.f32.mrf.mxu0
      %v2156 = vadd.f32 0.0, %v2155
      %v2157 = vpop.f32.mrf.mxu0
      %v2158 = vadd.f32 0.0, %v2157
      %2159 = vmatmul.bf16.gmra.mxu0 %v642
      %v2160 = vpop.f32.mrf.mxu0
      %v2161 = vadd.f32 0.0, %v2160
      %v2162 = vpop.f32.mrf.mxu0
      %v2163 = vadd.f32 0.0, %v2162
      %2164 = vmatmul.bf16.gmra.mxu0 %v1442
      %v2165 = vpop.f32.mrf.mxu0
      %v2166 = vadd.f32 0.0, %v2165
      %v2167 = vpop.f32.mrf.mxu0
      %v2168 = vadd.f32 0.0, %v2167
      %2169 = vmatmul.bf16.gmra.mxu0 %v2020
      %v2170 = vpop.f32.mrf.mxu0
      %v2171 = vadd.f32 0.0, %v2170
      %v2172 = vpop.f32.mrf.mxu0
      %v2173 = vadd.f32 0.0, %v2172
      %2174 = vdwg.mxu0
      %v2175 = vadd.f32 %v1988, %v2096
      %v2176 = vadd.f32 %v1989, %v2098
      %v2177 = vadd.f32 %v1990, %v2101
      %v2178 = vadd.f32 %v1991, %v2103
      %v2179 = vadd.f32 %v1992, %v2106
      %v2180 = vadd.f32 %v1993, %v2108
      %v2181 = vadd.f32 %v1994, %v2111
      %v2182 = vadd.f32 %v1995, %v2113
      %v2183 = vadd.f32 %v1996, %v2116
      %v2184 = vadd.f32 %v1997, %v2118
      %v2185 = vadd.f32 %v1998, %v2121
      %v2186 = vadd.f32 %v1999, %v2123
      %v2187 = vadd.f32 %v2000, %v2126
      %v2188 = vadd.f32 %v2001, %v2128
      %v2189 = vadd.f32 %v2002, %v2131
      %v2190 = vadd.f32 %v2003, %v2133
      %v2191 = vadd.f32 %v2004, %v2136
      %v2192 = vadd.f32 %v2005, %v2138
      %v2193 = vadd.f32 %v2006, %v2141
      %v2194 = vadd.f32 %v2007, %v2143
      %v2195 = vadd.f32 %v2008, %v2146
      %v2196 = vadd.f32 %v2009, %v2148
      %v2197 = vadd.f32 %v2010, %v2151
      %v2198 = vadd.f32 %v2011, %v2153
      %v2199 = vadd.f32 %v2012, %v2156
      %v2200 = vadd.f32 %v2013, %v2158
      %v2201 = vadd.f32 %v2014, %v2161
      %v2202 = vadd.f32 %v2015, %v2163
      %v2203 = vadd.f32 %v2016, %v2166
      %v2204 = vadd.f32 %v2017, %v2168
      %v2205 = vadd.f32 %v2018, %v2171
      %v2206 = vadd.f32 %v2019, %v2173
      %v2210 = vrot.slane %v624, 1
      %v2211 = vrot.slane %v625, 1
      %v2212 = vsel %vm707, %v2210, %v2211
      %v2213 = vrot.slane %v626, 1
      %v2214 = vsel %vm707, %v2211, %v2213
      %v2217 = vpack.c.bf16 %v2214, %v2212
      %s2218 = scalar_lea.vmem %s3, 448
      %v2219 = vld [vmem:[%s2218] sm:$0xf]
      %v2220 = vld [vmem:[%s2218 + $0x4] sm:$0xf]
      %v2221 = vld [vmem:[%s2218 + $0x8] sm:$0xf]
      %v2222 = vld [vmem:[%s2218 + $0xc] sm:$0xf]
      %v2223 = vld [vmem:[%s2218 + $0x10] sm:$0xf]
      %v2224 = vld [vmem:[%s2218 + $0x14] sm:$0xf]
      %v2225 = vld [vmem:[%s2218 + $0x18] sm:$0xf]
      %v2226 = vld [vmem:[%s2218 + $0x1c] sm:$0xf]
      %v2227 = vld [vmem:[%s2218 + $0x20] sm:$0xf]
      %v2228 = vld [vmem:[%s2218 + $0x24] sm:$0xf]
      %v2229 = vld [vmem:[%s2218 + $0x28] sm:$0xf]
      %v2230 = vld [vmem:[%s2218 + $0x2c] sm:$0xf]
      %v2231 = vld [vmem:[%s2218 + $0x30] sm:$0xf]
      %v2232 = vld [vmem:[%s2218 + $0x34] sm:$0xf]
      %v2233 = vld [vmem:[%s2218 + $0x38] sm:$0xf]
      %v2234 = vld [vmem:[%s2218 + $0x3c] sm:$0xf]
      %v2251 = vunpack.c.l.b16 %v2219
      %v2252 = vunpack.c.l.b16 %v2220
      %v2253 = vunpack.c.l.b16 %v2221
      %v2254 = vunpack.c.l.b16 %v2222
      %v2255 = vunpack.c.l.b16 %v2223
      %v2256 = vunpack.c.l.b16 %v2224
      %v2257 = vunpack.c.l.b16 %v2225
      %v2258 = vunpack.c.l.b16 %v2226
      %v2259 = vunpack.c.l.b16 %v2227
      %v2260 = vunpack.c.l.b16 %v2228
      %v2261 = vunpack.c.l.b16 %v2229
      %v2262 = vunpack.c.l.b16 %v2230
      %v2263 = vunpack.c.l.b16 %v2231
      %v2264 = vunpack.c.l.b16 %v2232
      %v2265 = vunpack.c.l.b16 %v2233
      %v2266 = vunpack.c.l.b16 %v2234
      %v2267 = vpack.c.b16 %v2252, %v2251
      %v2268 = vpack.c.b16 %v2254, %v2253
      %v2269 = vpack.c.b16 %v2256, %v2255
      %v2270 = vpack.c.b16 %v2258, %v2257
      %v2271 = vpack.c.b16 %v2260, %v2259
      %v2272 = vpack.c.b16 %v2262, %v2261
      %v2273 = vpack.c.b16 %v2264, %v2263
      %v2274 = vpack.c.b16 %v2266, %v2265
      %2283 = vmatpush.bf16.msra.mxu0 %v2274
      %2284 = vmatpush.bf16.msra.mxu0 %v2273
      %2285 = vmatpush.bf16.msra.mxu0 %v2272
      %2286 = vmatpush.bf16.msra.mxu0 %v2271
      %2287 = vmatpush.bf16.msra.mxu0 %v2270
      %2288 = vmatpush.bf16.msra.mxu0 %v2269
      %2289 = vmatpush.bf16.msra.mxu0 %v2268
      %2290 = vmatpush.bf16.msra.mxu0 %v2267
      %2291 = vmatmul.bf16.gmra.mxu0 %v822
      %v2292 = vpop.f32.mrf.mxu0
      %v2293 = vadd.f32 0.0, %v2292
      %v2294 = vpop.f32.mrf.mxu0
      %v2295 = vadd.f32 0.0, %v2294
      %2296 = vmatmul.bf16.gmra.mxu0 %v823
      %v2297 = vpop.f32.mrf.mxu0
      %v2298 = vadd.f32 0.0, %v2297
      %v2299 = vpop.f32.mrf.mxu0
      %v2300 = vadd.f32 0.0, %v2299
      %2301 = vmatmul.bf16.gmra.mxu0 %v824
      %v2302 = vpop.f32.mrf.mxu0
      %v2303 = vadd.f32 0.0, %v2302
      %v2304 = vpop.f32.mrf.mxu0
      %v2305 = vadd.f32 0.0, %v2304
      %2306 = vmatmul.bf16.gmra.mxu0 %v825
      %v2307 = vpop.f32.mrf.mxu0
      %v2308 = vadd.f32 0.0, %v2307
      %v2309 = vpop.f32.mrf.mxu0
      %v2310 = vadd.f32 0.0, %v2309
      %2311 = vmatmul.bf16.gmra.mxu0 %v826
      %v2312 = vpop.f32.mrf.mxu0
      %v2313 = vadd.f32 0.0, %v2312
      %v2314 = vpop.f32.mrf.mxu0
      %v2315 = vadd.f32 0.0, %v2314
      %2316 = vmatmul.bf16.gmra.mxu0 %v827
      %v2317 = vpop.f32.mrf.mxu0
      %v2318 = vadd.f32 0.0, %v2317
      %v2319 = vpop.f32.mrf.mxu0
      %v2320 = vadd.f32 0.0, %v2319
      %2321 = vmatmul.bf16.gmra.mxu0 %v828
      %v2322 = vpop.f32.mrf.mxu0
      %v2323 = vadd.f32 0.0, %v2322
      %v2324 = vpop.f32.mrf.mxu0
      %v2325 = vadd.f32 0.0, %v2324
      %2326 = vmatmul.bf16.gmra.mxu0 %v829
      %v2327 = vpop.f32.mrf.mxu0
      %v2328 = vadd.f32 0.0, %v2327
      %v2329 = vpop.f32.mrf.mxu0
      %v2330 = vadd.f32 0.0, %v2329
      %2331 = vmatmul.bf16.gmra.mxu0 %v830
      %v2332 = vpop.f32.mrf.mxu0
      %v2333 = vadd.f32 0.0, %v2332
      %v2334 = vpop.f32.mrf.mxu0
      %v2335 = vadd.f32 0.0, %v2334
      %2336 = vmatmul.bf16.gmra.mxu0 %v831
      %v2337 = vpop.f32.mrf.mxu0
      %v2338 = vadd.f32 0.0, %v2337
      %v2339 = vpop.f32.mrf.mxu0
      %v2340 = vadd.f32 0.0, %v2339
      %2341 = vmatmul.bf16.gmra.mxu0 %v832
      %v2342 = vpop.f32.mrf.mxu0
      %v2343 = vadd.f32 0.0, %v2342
      %v2344 = vpop.f32.mrf.mxu0
      %v2345 = vadd.f32 0.0, %v2344
      %2346 = vmatmul.bf16.gmra.mxu0 %v833
      %v2347 = vpop.f32.mrf.mxu0
      %v2348 = vadd.f32 0.0, %v2347
      %v2349 = vpop.f32.mrf.mxu0
      %v2350 = vadd.f32 0.0, %v2349
      %2351 = vmatmul.bf16.gmra.mxu0 %v834
      %v2352 = vpop.f32.mrf.mxu0
      %v2353 = vadd.f32 0.0, %v2352
      %v2354 = vpop.f32.mrf.mxu0
      %v2355 = vadd.f32 0.0, %v2354
      %2356 = vmatmul.bf16.gmra.mxu0 %v835
      %v2357 = vpop.f32.mrf.mxu0
      %v2358 = vadd.f32 0.0, %v2357
      %v2359 = vpop.f32.mrf.mxu0
      %v2360 = vadd.f32 0.0, %v2359
      %2361 = vmatmul.bf16.gmra.mxu0 %v1639
      %v2362 = vpop.f32.mrf.mxu0
      %v2363 = vadd.f32 0.0, %v2362
      %v2364 = vpop.f32.mrf.mxu0
      %v2365 = vadd.f32 0.0, %v2364
      %2366 = vmatmul.bf16.gmra.mxu0 %v2217
      %v2367 = vpop.f32.mrf.mxu0
      %v2368 = vadd.f32 0.0, %v2367
      %v2369 = vpop.f32.mrf.mxu0
      %v2370 = vadd.f32 0.0, %v2369
      %2371 = vdwg.mxu0
      %v2372 = vadd.f32 %v2175, %v2293
      %v2373 = vadd.f32 %v2176, %v2295
      %v2374 = vadd.f32 %v2177, %v2298
      %v2375 = vadd.f32 %v2178, %v2300
      %v2376 = vadd.f32 %v2179, %v2303
      %v2377 = vadd.f32 %v2180, %v2305
      %v2378 = vadd.f32 %v2181, %v2308
      %v2379 = vadd.f32 %v2182, %v2310
      %v2380 = vadd.f32 %v2183, %v2313
      %v2381 = vadd.f32 %v2184, %v2315
      %v2382 = vadd.f32 %v2185, %v2318
      %v2383 = vadd.f32 %v2186, %v2320
      %v2384 = vadd.f32 %v2187, %v2323
      %v2385 = vadd.f32 %v2188, %v2325
      %v2386 = vadd.f32 %v2189, %v2328
      %v2387 = vadd.f32 %v2190, %v2330
      %v2388 = vadd.f32 %v2191, %v2333
      %v2389 = vadd.f32 %v2192, %v2335
      %v2390 = vadd.f32 %v2193, %v2338
      %v2391 = vadd.f32 %v2194, %v2340
      %v2392 = vadd.f32 %v2195, %v2343
      %v2393 = vadd.f32 %v2196, %v2345
      %v2394 = vadd.f32 %v2197, %v2348
      %v2395 = vadd.f32 %v2198, %v2350
      %v2396 = vadd.f32 %v2199, %v2353
      %v2397 = vadd.f32 %v2200, %v2355
      %v2398 = vadd.f32 %v2201, %v2358
      %v2399 = vadd.f32 %v2202, %v2360
      %v2400 = vadd.f32 %v2203, %v2363
      %v2401 = vadd.f32 %v2204, %v2365
      %v2402 = vadd.f32 %v2205, %v2368
      %v2403 = vadd.f32 %v2206, %v2370
      %v2404 = vrot.slane %v624, 2
      %v2405 = vrot.slane %v625, 2
      %v2406 = vsel %vm1127, %v2404, %v2405
      %v2407 = vrot.slane %v626, 2
      %v2408 = vsel %vm1127, %v2405, %v2407
      %v2411 = vpack.c.bf16 %v2408, %v2406
      %s2412 = scalar_lea.vmem %s3, 512
      %v2413 = vld [vmem:[%s2412] sm:$0xf]
      %v2414 = vld [vmem:[%s2412 + $0x4] sm:$0xf]
      %v2415 = vld [vmem:[%s2412 + $0x8] sm:$0xf]
      %v2416 = vld [vmem:[%s2412 + $0xc] sm:$0xf]
      %v2417 = vld [vmem:[%s2412 + $0x10] sm:$0xf]
      %v2418 = vld [vmem:[%s2412 + $0x14] sm:$0xf]
      %v2419 = vld [vmem:[%s2412 + $0x18] sm:$0xf]
      %v2420 = vld [vmem:[%s2412 + $0x1c] sm:$0xf]
      %v2421 = vld [vmem:[%s2412 + $0x20] sm:$0xf]
      %v2422 = vld [vmem:[%s2412 + $0x24] sm:$0xf]
      %v2423 = vld [vmem:[%s2412 + $0x28] sm:$0xf]
      %v2424 = vld [vmem:[%s2412 + $0x2c] sm:$0xf]
      %v2425 = vld [vmem:[%s2412 + $0x30] sm:$0xf]
      %v2426 = vld [vmem:[%s2412 + $0x34] sm:$0xf]
      %v2427 = vld [vmem:[%s2412 + $0x38] sm:$0xf]
      %v2428 = vld [vmem:[%s2412 + $0x3c] sm:$0xf]
      %v2445 = vunpack.c.l.b16 %v2413
      %v2446 = vunpack.c.l.b16 %v2414
      %v2447 = vunpack.c.l.b16 %v2415
      %v2448 = vunpack.c.l.b16 %v2416
      %v2449 = vunpack.c.l.b16 %v2417
      %v2450 = vunpack.c.l.b16 %v2418
      %v2451 = vunpack.c.l.b16 %v2419
      %v2452 = vunpack.c.l.b16 %v2420
      %v2453 = vunpack.c.l.b16 %v2421
      %v2454 = vunpack.c.l.b16 %v2422
      %v2455 = vunpack.c.l.b16 %v2423
      %v2456 = vunpack.c.l.b16 %v2424
      %v2457 = vunpack.c.l.b16 %v2425
      %v2458 = vunpack.c.l.b16 %v2426
      %v2459 = vunpack.c.l.b16 %v2427
      %v2460 = vunpack.c.l.b16 %v2428
      %v2461 = vpack.c.b16 %v2446, %v2445
      %v2462 = vpack.c.b16 %v2448, %v2447
      %v2463 = vpack.c.b16 %v2450, %v2449
      %v2464 = vpack.c.b16 %v2452, %v2451
      %v2465 = vpack.c.b16 %v2454, %v2453
      %v2466 = vpack.c.b16 %v2456, %v2455
      %v2467 = vpack.c.b16 %v2458, %v2457
      %v2468 = vpack.c.b16 %v2460, %v2459
      %2477 = vmatpush.bf16.msra.mxu0 %v2468
      %2478 = vmatpush.bf16.msra.mxu0 %v2467
      %2479 = vmatpush.bf16.msra.mxu0 %v2466
      %2480 = vmatpush.bf16.msra.mxu0 %v2465
      %2481 = vmatpush.bf16.msra.mxu0 %v2464
      %2482 = vmatpush.bf16.msra.mxu0 %v2463
      %2483 = vmatpush.bf16.msra.mxu0 %v2462
      %2484 = vmatpush.bf16.msra.mxu0 %v2461
      %2485 = vmatmul.bf16.gmra.mxu0 %v1242
      %v2486 = vpop.f32.mrf.mxu0
      %v2487 = vadd.f32 0.0, %v2486
      %v2488 = vpop.f32.mrf.mxu0
      %v2489 = vadd.f32 0.0, %v2488
      %2490 = vmatmul.bf16.gmra.mxu0 %v1243
      %v2491 = vpop.f32.mrf.mxu0
      %v2492 = vadd.f32 0.0, %v2491
      %v2493 = vpop.f32.mrf.mxu0
      %v2494 = vadd.f32 0.0, %v2493
      %2495 = vmatmul.bf16.gmra.mxu0 %v1244
      %v2496 = vpop.f32.mrf.mxu0
      %v2497 = vadd.f32 0.0, %v2496
      %v2498 = vpop.f32.mrf.mxu0
      %v2499 = vadd.f32 0.0, %v2498
      %2500 = vmatmul.bf16.gmra.mxu0 %v1245
      %v2501 = vpop.f32.mrf.mxu0
      %v2502 = vadd.f32 0.0, %v2501
      %v2503 = vpop.f32.mrf.mxu0
      %v2504 = vadd.f32 0.0, %v2503
      %2505 = vmatmul.bf16.gmra.mxu0 %v1246
      %v2506 = vpop.f32.mrf.mxu0
      %v2507 = vadd.f32 0.0, %v2506
      %v2508 = vpop.f32.mrf.mxu0
      %v2509 = vadd.f32 0.0, %v2508
      %2510 = vmatmul.bf16.gmra.mxu0 %v1247
      %v2511 = vpop.f32.mrf.mxu0
      %v2512 = vadd.f32 0.0, %v2511
      %v2513 = vpop.f32.mrf.mxu0
      %v2514 = vadd.f32 0.0, %v2513
      %2515 = vmatmul.bf16.gmra.mxu0 %v1248
      %v2516 = vpop.f32.mrf.mxu0
      %v2517 = vadd.f32 0.0, %v2516
      %v2518 = vpop.f32.mrf.mxu0
      %v2519 = vadd.f32 0.0, %v2518
      %2520 = vmatmul.bf16.gmra.mxu0 %v1249
      %v2521 = vpop.f32.mrf.mxu0
      %v2522 = vadd.f32 0.0, %v2521
      %v2523 = vpop.f32.mrf.mxu0
      %v2524 = vadd.f32 0.0, %v2523
      %2525 = vmatmul.bf16.gmra.mxu0 %v1250
      %v2526 = vpop.f32.mrf.mxu0
      %v2527 = vadd.f32 0.0, %v2526
      %v2528 = vpop.f32.mrf.mxu0
      %v2529 = vadd.f32 0.0, %v2528
      %2530 = vmatmul.bf16.gmra.mxu0 %v1251
      %v2531 = vpop.f32.mrf.mxu0
      %v2532 = vadd.f32 0.0, %v2531
      %v2533 = vpop.f32.mrf.mxu0
      %v2534 = vadd.f32 0.0, %v2533
      %2535 = vmatmul.bf16.gmra.mxu0 %v1252
      %v2536 = vpop.f32.mrf.mxu0
      %v2537 = vadd.f32 0.0, %v2536
      %v2538 = vpop.f32.mrf.mxu0
      %v2539 = vadd.f32 0.0, %v2538
      %2540 = vmatmul.bf16.gmra.mxu0 %v1253
      %v2541 = vpop.f32.mrf.mxu0
      %v2542 = vadd.f32 0.0, %v2541
      %v2543 = vpop.f32.mrf.mxu0
      %v2544 = vadd.f32 0.0, %v2543
      %2545 = vmatmul.bf16.gmra.mxu0 %v1254
      %v2546 = vpop.f32.mrf.mxu0
      %v2547 = vadd.f32 0.0, %v2546
      %v2548 = vpop.f32.mrf.mxu0
      %v2549 = vadd.f32 0.0, %v2548
      %2550 = vmatmul.bf16.gmra.mxu0 %v1255
      %v2551 = vpop.f32.mrf.mxu0
      %v2552 = vadd.f32 0.0, %v2551
      %v2553 = vpop.f32.mrf.mxu0
      %v2554 = vadd.f32 0.0, %v2553
      %2555 = vmatmul.bf16.gmra.mxu0 %v1833
      %v2556 = vpop.f32.mrf.mxu0
      %v2557 = vadd.f32 0.0, %v2556
      %v2558 = vpop.f32.mrf.mxu0
      %v2559 = vadd.f32 0.0, %v2558
      %2560 = vmatmul.bf16.gmra.mxu0 %v2411
      %v2561 = vpop.f32.mrf.mxu0
      %v2562 = vadd.f32 0.0, %v2561
      %v2563 = vpop.f32.mrf.mxu0
      %v2564 = vadd.f32 0.0, %v2563
      %2565 = vdwg.mxu0
      %v2566 = vadd.f32 %v2372, %v2487
      %v2567 = vadd.f32 %v2373, %v2489
      %v2568 = vadd.f32 %v2374, %v2492
      %v2569 = vadd.f32 %v2375, %v2494
      %v2570 = vadd.f32 %v2376, %v2497
      %v2571 = vadd.f32 %v2377, %v2499
      %v2572 = vadd.f32 %v2378, %v2502
      %v2573 = vadd.f32 %v2379, %v2504
      %v2574 = vadd.f32 %v2380, %v2507
      %v2575 = vadd.f32 %v2381, %v2509
      %v2576 = vadd.f32 %v2382, %v2512
      %v2577 = vadd.f32 %v2383, %v2514
      %v2578 = vadd.f32 %v2384, %v2517
      %v2579 = vadd.f32 %v2385, %v2519
      %v2580 = vadd.f32 %v2386, %v2522
      %v2581 = vadd.f32 %v2387, %v2524
      %v2582 = vadd.f32 %v2388, %v2527
      %v2583 = vadd.f32 %v2389, %v2529
      %v2584 = vadd.f32 %v2390, %v2532
      %v2585 = vadd.f32 %v2391, %v2534
      %v2586 = vadd.f32 %v2392, %v2537
      %v2587 = vadd.f32 %v2393, %v2539
      %v2588 = vadd.f32 %v2394, %v2542
      %v2589 = vadd.f32 %v2395, %v2544
      %v2590 = vadd.f32 %v2396, %v2547
      %v2591 = vadd.f32 %v2397, %v2549
      %v2592 = vadd.f32 %v2398, %v2552
      %v2593 = vadd.f32 %v2399, %v2554
      %v2594 = vadd.f32 %v2400, %v2557
      %v2595 = vadd.f32 %v2401, %v2559
      %v2596 = vadd.f32 %v2402, %v2562
      %v2597 = vadd.f32 %v2403, %v2564
      %v2598 = vpack.c.bf16 %v2566, %v2566
      %v2599 = vpack.c.bf16 %v2567, %v2567
      %v2600 = vpack.c.bf16 %v2568, %v2568
      %v2601 = vpack.c.bf16 %v2569, %v2569
      %v2602 = vpack.c.bf16 %v2570, %v2570
      %v2603 = vpack.c.bf16 %v2571, %v2571
      %v2604 = vpack.c.bf16 %v2572, %v2572
      %v2605 = vpack.c.bf16 %v2573, %v2573
      %v2606 = vpack.c.bf16 %v2574, %v2574
      %v2607 = vpack.c.bf16 %v2575, %v2575
      %v2608 = vpack.c.bf16 %v2576, %v2576
      %v2609 = vpack.c.bf16 %v2577, %v2577
      %v2610 = vpack.c.bf16 %v2578, %v2578
      %v2611 = vpack.c.bf16 %v2579, %v2579
      %v2612 = vpack.c.bf16 %v2580, %v2580
      %v2613 = vpack.c.bf16 %v2581, %v2581
      %v2614 = vpack.c.bf16 %v2582, %v2582
      %v2615 = vpack.c.bf16 %v2583, %v2583
      %v2616 = vpack.c.bf16 %v2584, %v2584
      %v2617 = vpack.c.bf16 %v2585, %v2585
      %v2618 = vpack.c.bf16 %v2586, %v2586
      %v2619 = vpack.c.bf16 %v2587, %v2587
      %v2620 = vpack.c.bf16 %v2588, %v2588
      %v2621 = vpack.c.bf16 %v2589, %v2589
      %v2622 = vpack.c.bf16 %v2590, %v2590
      %v2623 = vpack.c.bf16 %v2591, %v2591
      %v2624 = vpack.c.bf16 %v2592, %v2592
      %v2625 = vpack.c.bf16 %v2593, %v2593
      %v2626 = vpack.c.bf16 %v2594, %v2594
      %v2627 = vpack.c.bf16 %v2595, %v2595
      %v2628 = vpack.c.bf16 %v2596, %v2596
      %v2629 = vpack.c.bf16 %v2597, %v2597
      %2630 = vst [vmem:[%s264] sm:$0xf] %v2598
      %2631 = vst [vmem:[%s264 + $0x4] sm:$0xf] %v2599
      %2632 = vst [vmem:[%s264 + $0x8] sm:$0xf] %v2600
      %2633 = vst [vmem:[%s264 + $0xc] sm:$0xf] %v2601
      %2634 = vst [vmem:[%s264 + $0x10] sm:$0xf] %v2602
      %2635 = vst [vmem:[%s264 + $0x14] sm:$0xf] %v2603
      %2636 = vst [vmem:[%s264 + $0x18] sm:$0xf] %v2604
      %2637 = vst [vmem:[%s264 + $0x1c] sm:$0xf] %v2605
      %2638 = vst [vmem:[%s264 + $0x20] sm:$0xf] %v2606
      %2639 = vst [vmem:[%s264 + $0x24] sm:$0xf] %v2607
      %2640 = vst [vmem:[%s264 + $0x28] sm:$0xf] %v2608
      %2641 = vst [vmem:[%s264 + $0x2c] sm:$0xf] %v2609
      %2642 = vst [vmem:[%s264 + $0x30] sm:$0xf] %v2610
      %2643 = vst [vmem:[%s264 + $0x34] sm:$0xf] %v2611
      %2644 = vst [vmem:[%s264 + $0x38] sm:$0xf] %v2612
      %2645 = vst [vmem:[%s264 + $0x3c] sm:$0xf] %v2613
      %2646 = vst [vmem:[%s264 + $0x40] sm:$0xf] %v2614
      %2647 = vst [vmem:[%s264 + $0x44] sm:$0xf] %v2615
      %2648 = vst [vmem:[%s264 + $0x48] sm:$0xf] %v2616
      %2649 = vst [vmem:[%s264 + $0x4c] sm:$0xf] %v2617
      %2650 = vst [vmem:[%s264 + $0x50] sm:$0xf] %v2618
      %2651 = vst [vmem:[%s264 + $0x54] sm:$0xf] %v2619
      %2652 = vst [vmem:[%s264 + $0x58] sm:$0xf] %v2620
      %2653 = vst [vmem:[%s264 + $0x5c] sm:$0xf] %v2621
      %2654 = vst [vmem:[%s264 + $0x60] sm:$0xf] %v2622
      %2655 = vst [vmem:[%s264 + $0x64] sm:$0xf] %v2623
      %2656 = vst [vmem:[%s264 + $0x68] sm:$0xf] %v2624
      %2657 = vst [vmem:[%s264 + $0x6c] sm:$0xf] %v2625
      %2658 = vst [vmem:[%s264 + $0x70] sm:$0xf] %v2626
      %2659 = vst [vmem:[%s264 + $0x74] sm:$0xf] %v2627
      %2660 = vst [vmem:[%s264 + $0x78] sm:$0xf] %v2628
      %2661 = vst [vmem:[%s264 + $0x7c] sm:$0xf] %v2629
      %v2662 = vadd.f32 %v2566, %v2567
      %v2663 = vadd.f32 %v2662, %v2568
      %v2664 = vadd.f32 %v2663, %v2569
      %v2665 = vadd.f32 %v2664, %v2570
      %v2666 = vadd.f32 %v2665, %v2571
      %v2667 = vadd.f32 %v2666, %v2572
      %v2668 = vadd.f32 %v2667, %v2573
      %v2669 = vadd.f32 %v2668, %v2574
      %v2670 = vadd.f32 %v2669, %v2575
      %v2671 = vadd.f32 %v2670, %v2576
      %v2672 = vadd.f32 %v2671, %v2577
      %v2673 = vadd.f32 %v2672, %v2578
      %v2674 = vadd.f32 %v2673, %v2579
      %v2675 = vadd.f32 %v2674, %v2580
      %v2676 = vadd.f32 %v2675, %v2581
      %v2677 = vadd.f32 %v2676, %v2582
      %v2678 = vadd.f32 %v2677, %v2583
      %v2679 = vadd.f32 %v2678, %v2584
      %v2680 = vadd.f32 %v2679, %v2585
      %v2681 = vadd.f32 %v2680, %v2586
      %v2682 = vadd.f32 %v2681, %v2587
      %v2683 = vadd.f32 %v2682, %v2588
      %v2684 = vadd.f32 %v2683, %v2589
      %v2685 = vadd.f32 %v2684, %v2590
      %v2686 = vadd.f32 %v2685, %v2591
      %v2687 = vadd.f32 %v2686, %v2592
      %v2688 = vadd.f32 %v2687, %v2593
      %v2689 = vadd.f32 %v2688, %v2594
      %v2690 = vadd.f32 %v2689, %v2595
      %v2691 = vadd.f32 %v2690, %v2596
      %v2692 = vadd.f32 %v2691, %v2597
      %v2693 = vrot.slane %v2692, 4
      %v2694 = vadd.f32 %v2692, %v2693
      %v2695 = vrot.slane %v2694, 2
      %v2696 = vadd.f32 %v2694, %v2695
      %v2697 = vrot.slane %v2696, 1
      %v2698 = vadd.f32 %v2696, %v2697
      %2699 = vst [vmem:[%s268] sm:$0xff] %v2698
      %v2700 = vmul.f32 %v2566, %v2566
      %v2701 = vmul.f32 %v2567, %v2567
      %v2702 = vmul.f32 %v2568, %v2568
      %v2703 = vmul.f32 %v2569, %v2569
      %v2704 = vmul.f32 %v2570, %v2570
      %v2705 = vmul.f32 %v2571, %v2571
      %v2706 = vmul.f32 %v2572, %v2572
      %v2707 = vmul.f32 %v2573, %v2573
      %v2708 = vmul.f32 %v2574, %v2574
      %v2709 = vmul.f32 %v2575, %v2575
      %v2710 = vmul.f32 %v2576, %v2576
      %v2711 = vmul.f32 %v2577, %v2577
      %v2712 = vmul.f32 %v2578, %v2578
      %v2713 = vmul.f32 %v2579, %v2579
      %v2714 = vmul.f32 %v2580, %v2580
      %v2715 = vmul.f32 %v2581, %v2581
      %v2716 = vmul.f32 %v2582, %v2582
      %v2717 = vmul.f32 %v2583, %v2583
      %v2718 = vmul.f32 %v2584, %v2584
      %v2719 = vmul.f32 %v2585, %v2585
      %v2720 = vmul.f32 %v2586, %v2586
      %v2721 = vmul.f32 %v2587, %v2587
      %v2722 = vmul.f32 %v2588, %v2588
      %v2723 = vmul.f32 %v2589, %v2589
      %v2724 = vmul.f32 %v2590, %v2590
      %v2725 = vmul.f32 %v2591, %v2591
      %v2726 = vmul.f32 %v2592, %v2592
      %v2727 = vmul.f32 %v2593, %v2593
      %v2728 = vmul.f32 %v2594, %v2594
      %v2729 = vmul.f32 %v2595, %v2595
      %v2730 = vmul.f32 %v2596, %v2596
      %v2731 = vmul.f32 %v2597, %v2597
      %v2732 = vadd.f32 %v2700, %v2701
      %v2733 = vadd.f32 %v2732, %v2702
      %v2734 = vadd.f32 %v2733, %v2703
      %v2735 = vadd.f32 %v2734, %v2704
      %v2736 = vadd.f32 %v2735, %v2705
      %v2737 = vadd.f32 %v2736, %v2706
      %v2738 = vadd.f32 %v2737, %v2707
      %v2739 = vadd.f32 %v2738, %v2708
      %v2740 = vadd.f32 %v2739, %v2709
      %v2741 = vadd.f32 %v2740, %v2710
      %v2742 = vadd.f32 %v2741, %v2711
      %v2743 = vadd.f32 %v2742, %v2712
      %v2744 = vadd.f32 %v2743, %v2713
      %v2745 = vadd.f32 %v2744, %v2714
      %v2746 = vadd.f32 %v2745, %v2715
      %v2747 = vadd.f32 %v2746, %v2716
      %v2748 = vadd.f32 %v2747, %v2717
      %v2749 = vadd.f32 %v2748, %v2718
      %v2750 = vadd.f32 %v2749, %v2719
      %v2751 = vadd.f32 %v2750, %v2720
      %v2752 = vadd.f32 %v2751, %v2721
      %v2753 = vadd.f32 %v2752, %v2722
      %v2754 = vadd.f32 %v2753, %v2723
      %v2755 = vadd.f32 %v2754, %v2724
      %v2756 = vadd.f32 %v2755, %v2725
      %v2757 = vadd.f32 %v2756, %v2726
      %v2758 = vadd.f32 %v2757, %v2727
      %v2759 = vadd.f32 %v2758, %v2728
      %v2760 = vadd.f32 %v2759, %v2729
      %v2761 = vadd.f32 %v2760, %v2730
      %v2762 = vadd.f32 %v2761, %v2731
      %v2763 = vrot.slane %v2762, 4
      %v2764 = vadd.f32 %v2762, %v2763
      %v2765 = vrot.slane %v2764, 2
      %v2766 = vadd.f32 %v2764, %v2765
      %v2767 = vrot.slane %v2766, 1
      %v2768 = vadd.f32 %v2766, %v2767
      %2769 = vst [vmem:[%s272] sm:$0xff] %v2768
      %p2770 = scmp.lt.s32.totalorder %s18, 1
      %s2771 = scalar_select %p2770, %s18, 1
      %s2772 = smul.addr %s2771, 32
      %s2773 = smul.addr %s2772, 4
      %s2774 = scalar_lea.vmem %s4, %s2773
      %p2775 = scmp.lt.s32.totalorder %s18, 1
      %s2776 = scalar_select %p2775, %s18, 1
      %s2777 = smul.addr %s2776, 8
      %s2778 = scalar_lea.vmem %s5, %s2777
      %p2779 = scmp.lt.s32.totalorder %s18, 1
      %s2780 = scalar_select %p2779, %s18, 1
      %s2781 = smul.addr %s2780, 8
      %s2782 = scalar_lea.vmem %s6, %s2781
      // Predicated region
      $region37: #{_lambda_.5} parent=35 // pred_check
        %p2783 = pneg %p125
      $region38: #{_lambda_.5} parent=35 // pred_check_branch
        %2785 = sbr.rel (%p2783) target = $region40
      $region39: #{_lambda_.5} parent=35 // pred_region
        _
      $region40: #{_lambda_.5} parent=35 // pred_fallthru
        _
      // Predicated region
      $region41: #{_lambda_.5} parent=35 // pred_check
        %p2786 = pneg %p151
      $region42: #{_lambda_.5} parent=35 // pred_check_branch
        %2788 = sbr.rel (%p2786) target = $region44
      $region43: #{_lambda_.5} parent=35 // pred_region
        _
      $region44: #{_lambda_.5} parent=35 // pred_fallthru
        _
      // Predicated region
      $region45: #{_lambda_.5} parent=35 // pred_check
        %p2789 = pneg %p177
      $region46: #{_lambda_.5} parent=35 // pred_check_branch
        %2791 = sbr.rel (%p2789) target = $region48
      $region47: #{_lambda_.5} parent=35 // pred_region
        _
      $region48: #{_lambda_.5} parent=35 // pred_fallthru
        _
    $region36: #{_lambda_.5} parent=5 // pred_fallthru
      _
    %p2792 = scmp.le.s32.totalorder 2, %s13
    // Predicated region
    $region49: #{_lambda_.5} parent=5 // pred_check
      %p2793 = pneg %p2792
    $region50: #{_lambda_.5} parent=5 // pred_check_branch
      %2795 = sbr.rel (%p2793) target = $region52
    $region51: #{_lambda_.5} parent=5 // pred_region
      %s2796 = ssub.s32 %s13, 2
      // Predicated region
      $region53: #{_lambda_.5} parent=51 // pred_check
        %p2797 = pneg %p131
      $region54: #{_lambda_.5} parent=51 // pred_check_branch
        %2799 = sbr.rel (%p2797) target = $region56
      $region55: #{_lambda_.5} parent=51 // pred_region
        %p2800 = scmp.lt.s32.totalorder %s19, 1
        %s2801 = scalar_select %p2800, %s19, 1
        %s2802 = smul.addr %s2801, 32
        %s2803 = smul.addr %s2802, 4
        %s2804 = scalar_lea.vmem %s4, %s2803
      $region56: #{_lambda_.5} parent=51 // pred_fallthru
        _
      // Predicated region
      $region57: #{_lambda_.5} parent=51 // pred_check
        %p2805 = pneg %p157
      $region58: #{_lambda_.5} parent=51 // pred_check_branch
        %2807 = sbr.rel (%p2805) target = $region60
      $region59: #{_lambda_.5} parent=51 // pred_region
        %p2808 = scmp.lt.s32.totalorder %s19, 1
        %s2809 = scalar_select %p2808, %s19, 1
        %s2810 = smul.addr %s2809, 8
        %s2811 = scalar_lea.vmem %s5, %s2810
      $region60: #{_lambda_.5} parent=51 // pred_fallthru
        _
      // Predicated region
      $region61: #{_lambda_.5} parent=51 // pred_check
        %p2812 = pneg %p183
      $region62: #{_lambda_.5} parent=51 // pred_check_branch
        %2814 = sbr.rel (%p2812) target = $region64
      $region63: #{_lambda_.5} parent=51 // pred_region
        %p2815 = scmp.lt.s32.totalorder %s19, 1
        %s2816 = scalar_select %p2815, %s19, 1
        %s2817 = smul.addr %s2816, 8
        %s2818 = scalar_lea.vmem %s6, %s2817
      $region64: #{_lambda_.5} parent=51 // pred_fallthru
        _
    $region52: #{_lambda_.5} parent=5 // pred_fallthru
      _
  $region6: #{_lambda_.5} parent=0 // loop_footer
    %s17 = sadd.s32 1, %s13
  $region7: #{_lambda_.5} parent=0 // loop_footer_branch
    %12 = sbr.rel target = $region3
  $region8: #{_lambda_.5} parent=0 // loop_exit
    _

</llo_original>
